<compile_context>
chip_gen: v7x
topology: tpu7x:2x2x1
jax: 0.10.0
libtpu: 0.0.40
codegen_flags: <defaults>
</compile_context>

<pallas_src>
import functools

import jax
import jax.numpy as jnp
import numpy as np
from jax.experimental import pallas as pl
from jax.experimental.pallas import tpu as pltpu


# --------------------------------------------------------------------------------------
# Pallas kernel: one (window-block, head) grid step.
# --------------------------------------------------------------------------------------
def _win_attn_kernel(x_ref, wqkv_ref, bqkv_ref, relb_ref, *rest,
                     WB, N, hd, has_mask):
    if has_mask:
        mask_ref, wproj_ref, bproj_ref, o_ref, acc_ref = rest
    else:
        wproj_ref, bproj_ref, o_ref, acc_ref = rest

    h = pl.program_id(1)

    @pl.when(h == 0)
    def _():
        acc_ref[...] = jnp.zeros_like(acc_ref)

    x = x_ref[...]                                               # (WB*N, C) bf16

    # Per-head q/k/v; the head slice of each weight is chosen by the BlockSpec
    # index_map, so there is no in-kernel lane slicing.  scale is pre-folded into q.
    q = jnp.dot(x, wqkv_ref[0, 0], preferred_element_type=jnp.float32) + bqkv_ref[0, 0]
    k = jnp.dot(x, wqkv_ref[1, 0], preferred_element_type=jnp.float32) + bqkv_ref[1, 0]
    v = jnp.dot(x, wqkv_ref[2, 0], preferred_element_type=jnp.float32) + bqkv_ref[2, 0]

    q3 = q.astype(jnp.bfloat16).reshape(WB, N, hd)               # leading-dim split (cheap)
    k3 = k.astype(jnp.bfloat16).reshape(WB, N, hd)
    v3 = v.astype(jnp.bfloat16).reshape(WB, N, hd)

    # Scores for this head, batched over the WB windows: (WB, N, N), f32.
    s = jnp.einsum('wnd,wmd->wnm', q3, k3, preferred_element_type=jnp.float32)
    s = s + relb_ref[0]
    if has_mask:
        s = s + mask_ref[...]

    # Numerically-stable softmax in f32; the divide goes to the EUP slot.
    s = s - jnp.max(s, axis=-1, keepdims=True)
    p = jnp.exp(s)
    p = p * pl.reciprocal(jnp.sum(p, axis=-1, keepdims=True), approx=True)
    # TODO(synk): attn_drop / proj_drop with p > 0 not implemented (module default is 0.0).

    o = jnp.einsum('wnm,wmd->wnd', p.astype(jnp.bfloat16), v3,
                   preferred_element_type=jnp.float32)           # (WB, N, hd)
    o2 = o.reshape(WB * N, hd).astype(jnp.bfloat16)

    # This head's slice of the output projection, accumulated over heads.
    acc_ref[...] += jnp.dot(o2, wproj_ref[0], preferred_element_type=jnp.float32)

    @pl.when(h == pl.num_programs(1) - 1)
    def _():
        o_ref[...] = (acc_ref[...] + bproj_ref[...]).astype(o_ref.dtype)


# --------------------------------------------------------------------------------------
# Wrapper.
# --------------------------------------------------------------------------------------
def _pick_window_batch(B_, N):
    """Smallest divisor of B_ giving >= 256 rows per block (capped at 2048 rows)."""
    target_rows, max_rows = 256, 2048
    best = 1
    for d in range(1, B_ + 1):
        if B_ % d or d * N > max_rows:
            continue
        best = d
        if d * N >= target_rows:
            break
    return best


def window_attention(x, wqkv, bqkv, wproj, bproj, rel_bias, num_heads,
                     mask=None, window_batch=None):
    """Forward pass of WindowAttention.

    x:        (B_, N, C)
    wqkv:     (3C, C)   qkv Linear weight (torch layout: out x in)
    bqkv:     (3C,)     qkv Linear bias
    wproj:    (C, C)    proj Linear weight
    bproj:    (C,)      proj Linear bias
    rel_bias: (H, N, N) gathered relative position bias
    mask:     optional (nW, N, N) additive attention mask (shifted-window masking)
    """
    B_, N, C = x.shape
    H = num_heads
    hd = C // H
    scale = hd ** (-0.5)

    WB = window_batch if window_batch is not None else _pick_window_batch(B_, N)
    assert B_ % WB == 0, f"window_batch {WB} must divide B_={B_}"
    nblk = B_ // WB

    # ---- loop-invariant parameter preprocessing (plain-JAX glue) ---------------------
    # Per-head *transposed* weights (no .T inside the kernel); scale folded into q;
    # bf16 matmul operands, f32 biases.
    scale_vec = jnp.asarray([scale, 1.0, 1.0], jnp.float32)
    wqkv_t = jnp.transpose(wqkv.reshape(3, H, hd, C), (0, 1, 3, 2))       # (3, H, C, hd)
    wqkv_t = (wqkv_t * scale_vec[:, None, None, None]).astype(jnp.bfloat16)
    bqkv_h = (bqkv.reshape(3, H, 1, hd) * scale_vec[:, None, None, None]).astype(jnp.float32)
    wproj_t = wproj.T.reshape(H, hd, C).astype(jnp.bfloat16)              # (H, hd, C)
    bproj_2 = bproj.reshape(1, C).astype(jnp.float32)
    relb = rel_bias.astype(jnp.float32)                                   # (H, N, N)

    x_flat = x.reshape(B_ * N, C).astype(jnp.bfloat16)

    # ---- BlockSpecs ------------------------------------------------------------------
    x_spec = pl.BlockSpec((WB * N, C), lambda b, h: (b, 0))
    wqkv_spec = pl.BlockSpec((3, 1, C, hd), lambda b, h: (0, h, 0, 0))
    bqkv_spec = pl.BlockSpec((3, 1, 1, hd), lambda b, h: (0, h, 0, 0))
    relb_spec = pl.BlockSpec((1, N, N), lambda b, h: (h, 0, 0))
    wproj_spec = pl.BlockSpec((1, hd, C), lambda b, h: (h, 0, 0))
    bproj_spec = pl.BlockSpec((1, C), lambda b, h: (0, 0))
    out_spec = pl.BlockSpec((WB * N, C), lambda b, h: (b, 0))

    has_mask = mask is not None
    operands = [x_flat, wqkv_t, bqkv_h, relb]
    in_specs = [x_spec, wqkv_spec, bqkv_spec, relb_spec]
    if has_mask:
        nW = mask.shape[0]
        mask_f = mask.astype(jnp.float32)
        if WB % nW == 0:
            # Mask pattern repeats every nW windows -> one constant (WB, N, N) block.
            mask_arr = jnp.tile(mask_f, (WB // nW, 1, 1))
            mask_spec = pl.BlockSpec((WB, N, N), lambda b, h: (0, 0, 0))
        elif nW % WB == 0:
            period = nW // WB
            mask_arr = mask_f
            mask_spec = pl.BlockSpec((WB, N, N), lambda b, h: (b % period, 0, 0))
        else:
            # Fallback: expand the mask per window (window g uses mask[g % nW]).
            reps = -(-B_ // nW)
            mask_arr = jnp.tile(mask_f, (reps, 1, 1))[:B_]
            mask_spec = pl.BlockSpec((WB, N, N), lambda b, h: (b, 0, 0))
        operands.append(mask_arr)
        in_specs.append(mask_spec)
    operands += [wproj_t, bproj_2]
    in_specs += [wproj_spec, bproj_spec]

    kernel = functools.partial(_win_attn_kernel, WB=WB, N=N, hd=hd, has_mask=has_mask)

    out_flat = pl.pallas_call(
        kernel,
        out_shape=jax.ShapeDtypeStruct((B_ * N, C), x.dtype),
        grid_spec=pltpu.PrefetchScalarGridSpec(
            num_scalar_prefetch=0,
            grid=(nblk, H),                       # heads innermost: output accumulator axis
            in_specs=in_specs,
            out_specs=out_spec,
            scratch_shapes=[pltpu.VMEM((WB * N, C), jnp.float32)]),
        compiler_params=pltpu.CompilerParams(
            dimension_semantics=("parallel", "arbitrary")),
    )(*operands)

    return out_flat.reshape(B_, N, C)


# --------------------------------------------------------------------------------------
# Relative position index (mirrors the PyTorch __init__ buffer construction).
# --------------------------------------------------------------------------------------
def make_relative_index(window_size):
    ws = tuple(window_size)
    coords = jnp.stack(jnp.meshgrid(*[jnp.arange(w) for w in ws], indexing="ij"))
    coords_flat = coords.reshape(len(ws), -1)                         # (ndim, N)
    rel = coords_flat[:, :, None] - coords_flat[:, None, :]           # (ndim, N, N)
    rel = jnp.transpose(rel, (1, 2, 0))                               # (N, N, ndim)
    rel = rel + jnp.array([w - 1 for w in ws], dtype=rel.dtype)
    multipliers = [1]
    for w in ws[:-1][::-1]:
        multipliers.insert(0, multipliers[0] * (2 * w - 1))
    index = rel[..., 0] * multipliers[0]
    for i in range(1, len(ws)):
        index = index + rel[..., i] * multipliers[i]
    return index                                                      # (N, N) int32


# --------------------------------------------------------------------------------------
# Pure-JAX reference (mirrors the PyTorch forward) for the correctness check.
# --------------------------------------------------------------------------------------
def reference(x, wqkv, bqkv, wproj, bproj, rel_bias, num_heads, mask=None):
    B_, N, C = x.shape
    hd = C // num_heads
    scale = hd ** (-0.5)
    qkv = x @ wqkv.T + bqkv
    qkv = qkv.reshape(B_, N, 3, num_heads, hd).transpose(2, 0, 3, 1, 4)
    q, k, v = qkv[0] * scale, qkv[1], qkv[2]
    attn = jnp.einsum("bhnd,bhmd->bhnm", q, k)
    attn = attn + rel_bias[None]
    if mask is not None:
        nW = mask.shape[0]
        attn = attn.reshape(-1, nW, num_heads, N, N) + mask[None, :, None]
        attn = attn.reshape(-1, num_heads, N, N)
    attn = jax.nn.softmax(attn, axis=-1)
    out = jnp.einsum("bhnm,bhmd->bhnd", attn, v).transpose(0, 2, 1, 3).reshape(B_, N, C)
    return out @ wproj.T + bproj


if __name__ == "__main__":
    # Small, module-consistent shapes.
    window_size = (4, 4)
    N = int(np.prod(window_size))        # 16 tokens per window
    dim = 32                             # C
    num_heads = 4                        # head_dim = 8
    nW = 8                               # windows per image (for the shift mask)
    B = 4                                # images
    B_ = B * nW                          # 32 windows total

    key = jax.random.PRNGKey(0)
    k_x, k_wqkv, k_bqkv, k_wproj, k_bproj, k_tab, k_mask = jax.random.split(key, 7)

    x = jax.random.normal(k_x, (B_, N, dim), jnp.float32)

    # Deterministic synthetic parameters (same shapes as the nn.Module's parameters).
    wqkv = jax.random.normal(k_wqkv, (3 * dim, dim), jnp.float32) * 0.05
    bqkv = jax.random.normal(k_bqkv, (3 * dim,), jnp.float32) * 0.05
    wproj = jax.random.normal(k_wproj, (dim, dim), jnp.float32) * 0.05
    bproj = jax.random.normal(k_bproj, (dim,), jnp.float32) * 0.05
    relative_size = int(np.prod([2 * w - 1 for w in window_size]))
    rel_bias_table = jax.random.normal(k_tab, (relative_size, num_heads), jnp.float32) * 0.02

    # Gather relative position bias: (N, N, H) -> (H, N, N)   (glue, done once)
    rel_index = make_relative_index(window_size)
    rel_bias = rel_bias_table[rel_index.reshape(-1)].reshape(N, N, num_heads)
    rel_bias = jnp.transpose(rel_bias, (2, 0, 1))

    # Shifted-window attention mask, shape (nW, N, N).
    mask = jnp.where(jax.random.uniform(k_mask, (nW, N, N)) > 0.8, -100.0, 0.0).astype(jnp.float32)

    out = jax.block_until_ready(
        window_attention(x, wqkv, bqkv, wproj, bproj, rel_bias, num_heads, mask=mask))
    ref = reference(x, wqkv, bqkv, wproj, bproj, rel_bias, num_heads, mask=mask)
    # bf16 matmul operands + approx reciprocal -> slightly relaxed tolerance vs f32 reference.
    np.testing.assert_allclose(np.asarray(out), np.asarray(ref), atol=1e-2, rtol=1e-2)

    # Also exercise the mask=None variant (separately traced kernel without the mask input).
    out_nm = jax.block_until_ready(
        window_attention(x, wqkv, bqkv, wproj, bproj, rel_bias, num_heads, mask=None))
    ref_nm = reference(x, wqkv, bqkv, wproj, bproj, rel_bias, num_heads, mask=None)
    np.testing.assert_allclose(np.asarray(out_nm), np.asarray(ref_nm), atol=1e-2, rtol=1e-2)

    print("KERNEL_OK")
</pallas_src>

<mosaic_0001>
module attributes {stable_mosaic.version = 11 : i64} {
  func.func @_win_attn_kernel(%arg0: i32, %arg1: i32, %arg2: memref<256x32xbf16, #tpu.memory_space<vmem>>, %arg3: memref<3x1x32x8xbf16, #tpu.memory_space<vmem>>, %arg4: memref<3x1x1x8xf32, #tpu.memory_space<vmem>>, %arg5: memref<1x16x16xf32, #tpu.memory_space<vmem>>, %arg6: memref<16x16x16xf32, #tpu.memory_space<vmem>>, %arg7: memref<1x8x32xbf16, #tpu.memory_space<vmem>>, %arg8: memref<1x32xf32, #tpu.memory_space<vmem>>, %arg9: memref<256x32xf32, #tpu.memory_space<vmem>>, %arg10: memref<256x32xf32, #tpu.memory_space<vmem>>) attributes {dimension_semantics = [#tpu.dimension_semantics<parallel>, #tpu.dimension_semantics<arbitrary>], iteration_bounds = array<i64: 2, 4>, scalar_prefetch = 0 : i64, scratch_operands = 1 : i64, tpu.core_type = #tpu.core_type<tc>, window_params = [{transform_indices = @transform_0, window_bounds = array<i64: 256, 32>}, {transform_indices = @transform_1, window_bounds = array<i64: 3, 1, 32, 8>}, {transform_indices = @transform_2, window_bounds = array<i64: 3, 1, 1, 8>}, {transform_indices = @transform_3, window_bounds = array<i64: 1, 16, 16>}, {pipeline_mode = #tpu.pipeline_mode<synchronous>, transform_indices = @transform_4, window_bounds = array<i64: 16, 16, 16>}, {transform_indices = @transform_5, window_bounds = array<i64: 1, 8, 32>}, {pipeline_mode = #tpu.pipeline_mode<synchronous>, transform_indices = @transform_6, window_bounds = array<i64: 1, 32>}, {transform_indices = @transform_7, window_bounds = array<i64: 256, 32>}]} {
    %c0_i32 = arith.constant 0 : i32
    %0 = arith.cmpi eq, %arg1, %c0_i32 : i32
    %1 = arith.extui %0 : i1 to i32
    %c0_i32_0 = arith.constant 0 : i32
    %2 = arith.cmpi ne, %1, %c0_i32_0 : i32
    scf.if %2 {
      %cst_45 = arith.constant 0.000000e+00 : f32
      %62 = vector.broadcast %cst_45 : f32 to vector<256x32xf32>
      %c0_46 = arith.constant 0 : index
      %c0_47 = arith.constant 0 : index
      %63 = vector.load %arg10[%c0_46, %c0_47] : memref<256x32xf32, #tpu.memory_space<vmem>>, vector<256x32xf32>
      tpu.vector_store %arg10[%c0_46, %c0_47], %62 {strides = array<i32>} : memref<256x32xf32, #tpu.memory_space<vmem>>, vector<256x32xf32>,
    } else {
    }
    %c0 = arith.constant 0 : index
    %c0_1 = arith.constant 0 : index
    %3 = vector.load %arg2[%c0, %c0_1] : memref<256x32xbf16, #tpu.memory_space<vmem>>, vector<256x32xbf16>
    %c0_2 = arith.constant 0 : index
    %c0_3 = arith.constant 0 : index
    %c0_4 = arith.constant 0 : index
    %c0_5 = arith.constant 0 : index
    %4 = vector.load %arg3[%c0_2, %c0_3, %c0_4, %c0_5] : memref<3x1x32x8xbf16, #tpu.memory_space<vmem>>, vector<1x1x32x8xbf16>
    %5 = vector.shape_cast %4 : vector<1x1x32x8xbf16> to vector<32x8xbf16>
    %cst = arith.constant dense<0.000000e+00> : vector<256x8xf32>
    %6 = tpu.matmul %3, %5, %cst {dimension_numbers = #tpu.dot_dimension_numbers<[1], [0], [0], [1], [0, 0, 1, 1], [], []>} : vector<256x32xbf16>, vector<32x8xbf16>, vector<256x8xf32> -> vector<256x8xf32>
    %c0_6 = arith.constant 0 : index
    %c0_7 = arith.constant 0 : index
    %c0_8 = arith.constant 0 : index
    %c0_9 = arith.constant 0 : index
    %7 = vector.load %arg4[%c0_6, %c0_7, %c0_8, %c0_9] : memref<3x1x1x8xf32, #tpu.memory_space<vmem>>, vector<1x1x1x8xf32>
    %8 = vector.shape_cast %7 : vector<1x1x1x8xf32> to vector<1x8xf32>
    %9 = vector.broadcast %8 : vector<1x8xf32> to vector<256x8xf32>
    %10 = arith.addf %6, %9 : vector<256x8xf32>
    %c1 = arith.constant 1 : index
    %c0_10 = arith.constant 0 : index
    %c0_11 = arith.constant 0 : index
    %c0_12 = arith.constant 0 : index
    %11 = vector.load %arg3[%c1, %c0_10, %c0_11, %c0_12] : memref<3x1x32x8xbf16, #tpu.memory_space<vmem>>, vector<1x1x32x8xbf16>
    %12 = vector.shape_cast %11 : vector<1x1x32x8xbf16> to vector<32x8xbf16>
    %cst_13 = arith.constant dense<0.000000e+00> : vector<256x8xf32>
    %13 = tpu.matmul %3, %12, %cst_13 {dimension_numbers = #tpu.dot_dimension_numbers<[1], [0], [0], [1], [0, 0, 1, 1], [], []>} : vector<256x32xbf16>, vector<32x8xbf16>, vector<256x8xf32> -> vector<256x8xf32>
    %c1_14 = arith.constant 1 : index
    %c0_15 = arith.constant 0 : index
    %c0_16 = arith.constant 0 : index
    %c0_17 = arith.constant 0 : index
    %14 = vector.load %arg4[%c1_14, %c0_15, %c0_16, %c0_17] : memref<3x1x1x8xf32, #tpu.memory_space<vmem>>, vector<1x1x1x8xf32>
    %15 = vector.shape_cast %14 : vector<1x1x1x8xf32> to vector<1x8xf32>
    %16 = vector.broadcast %15 : vector<1x8xf32> to vector<256x8xf32>
    %17 = arith.addf %13, %16 : vector<256x8xf32>
    %c2 = arith.constant 2 : index
    %c0_18 = arith.constant 0 : index
    %c0_19 = arith.constant 0 : index
    %c0_20 = arith.constant 0 : index
    %18 = vector.load %arg3[%c2, %c0_18, %c0_19, %c0_20] : memref<3x1x32x8xbf16, #tpu.memory_space<vmem>>, vector<1x1x32x8xbf16>
    %19 = vector.shape_cast %18 : vector<1x1x32x8xbf16> to vector<32x8xbf16>
    %cst_21 = arith.constant dense<0.000000e+00> : vector<256x8xf32>
    %20 = tpu.matmul %3, %19, %cst_21 {dimension_numbers = #tpu.dot_dimension_numbers<[1], [0], [0], [1], [0, 0, 1, 1], [], []>} : vector<256x32xbf16>, vector<32x8xbf16>, vector<256x8xf32> -> vector<256x8xf32>
    %c2_22 = arith.constant 2 : index
    %c0_23 = arith.constant 0 : index
    %c0_24 = arith.constant 0 : index
    %c0_25 = arith.constant 0 : index
    %21 = vector.load %arg4[%c2_22, %c0_23, %c0_24, %c0_25] : memref<3x1x1x8xf32, #tpu.memory_space<vmem>>, vector<1x1x1x8xf32>
    %22 = vector.shape_cast %21 : vector<1x1x1x8xf32> to vector<1x8xf32>
    %23 = vector.broadcast %22 : vector<1x8xf32> to vector<256x8xf32>
    %24 = arith.addf %20, %23 : vector<256x8xf32>
    %25 = arith.truncf %10 : vector<256x8xf32> to vector<256x8xbf16>
    %26 = vector.shape_cast %25 : vector<256x8xbf16> to vector<16x16x8xbf16>
    %27 = arith.truncf %17 : vector<256x8xf32> to vector<256x8xbf16>
    %28 = vector.shape_cast %27 : vector<256x8xbf16> to vector<16x16x8xbf16>
    %29 = arith.truncf %24 : vector<256x8xf32> to vector<256x8xbf16>
    %30 = vector.shape_cast %29 : vector<256x8xbf16> to vector<16x16x8xbf16>
    "tpu.trace_start"() <{level = 10 : i32, message = "wnd,wmd->wnm"}> : () -> ()
    %cst_26 = arith.constant dense<0.000000e+00> : vector<16x16x16xf32>
    %31 = tpu.matmul %26, %28, %cst_26 {dimension_numbers = #tpu.dot_dimension_numbers<[2], [2], [1], [1], [0, 0, 0, 1, 1, 1], [0], [0]>} : vector<16x16x8xbf16>, vector<16x16x8xbf16>, vector<16x16x16xf32> -> vector<16x16x16xf32>
    "tpu.trace_stop"() : () -> ()
    %c0_27 = arith.constant 0 : index
    %c0_28 = arith.constant 0 : index
    %c0_29 = arith.constant 0 : index
    %32 = vector.load %arg5[%c0_27, %c0_28, %c0_29] : memref<1x16x16xf32, #tpu.memory_space<vmem>>, vector<1x16x16xf32>
    %33 = vector.shape_cast %32 : vector<1x16x16xf32> to vector<16x16xf32>
    %34 = vector.shape_cast %33 : vector<16x16xf32> to vector<1x16x16xf32>
    %35 = vector.broadcast %34 : vector<1x16x16xf32> to vector<16x16x16xf32>
    %36 = arith.addf %31, %35 : vector<16x16x16xf32>
    %c0_30 = arith.constant 0 : index
    %c0_31 = arith.constant 0 : index
    %c0_32 = arith.constant 0 : index
    %37 = vector.load %arg6[%c0_30, %c0_31, %c0_32] : memref<16x16x16xf32, #tpu.memory_space<vmem>>, vector<16x16x16xf32>
    %38 = arith.addf %36, %37 : vector<16x16x16xf32>
    %cst_33 = arith.constant dense<0xFF800000> : vector<16x16xf32>
    %39 = vector.multi_reduction <maximumf>, %38, %cst_33 [2] : vector<16x16x16xf32> to vector<16x16xf32>
    %40 = vector.shape_cast %39 : vector<16x16xf32> to vector<16x16x1xf32>
    %41 = vector.broadcast %40 : vector<16x16x1xf32> to vector<16x16x16xf32>
    %42 = arith.subf %38, %41 : vector<16x16x16xf32>
    %43 = math.exp %42 : vector<16x16x16xf32>
    %cst_34 = arith.constant dense<0.000000e+00> : vector<16x16xf32>
    %44 = vector.multi_reduction <add>, %43, %cst_34 [2] : vector<16x16x16xf32> to vector<16x16xf32>
    %45 = vector.shape_cast %44 : vector<16x16xf32> to vector<16x16x1xf32>
    %46 = tpu.reciprocal %45 {approx = true} : vector<16x16x1xf32> -> vector<16x16x1xf32>
    %47 = vector.broadcast %46 : vector<16x16x1xf32> to vector<16x16x16xf32>
    %48 = arith.mulf %43, %47 : vector<16x16x16xf32>
    %49 = arith.truncf %48 : vector<16x16x16xf32> to vector<16x16x16xbf16>
    "tpu.trace_start"() <{level = 10 : i32, message = "wnm,wmd->wnd"}> : () -> ()
    %cst_35 = arith.constant dense<0.000000e+00> : vector<16x16x8xf32>
    %50 = tpu.matmul %49, %30, %cst_35 {dimension_numbers = #tpu.dot_dimension_numbers<[2], [1], [1], [2], [0, 0, 0, 1, 1, 2], [0], [0]>} : vector<16x16x16xbf16>, vector<16x16x8xbf16>, vector<16x16x8xf32> -> vector<16x16x8xf32>
    "tpu.trace_stop"() : () -> ()
    %51 = vector.shape_cast %50 : vector<16x16x8xf32> to vector<256x8xf32>
    %52 = arith.truncf %51 : vector<256x8xf32> to vector<256x8xbf16>
    %c0_36 = arith.constant 0 : index
    %c0_37 = arith.constant 0 : index
    %53 = vector.load %arg10[%c0_36, %c0_37] : memref<256x32xf32, #tpu.memory_space<vmem>>, vector<256x32xf32>
    %c0_38 = arith.constant 0 : index
    %c0_39 = arith.constant 0 : index
    %c0_40 = arith.constant 0 : index
    %54 = vector.load %arg7[%c0_38, %c0_39, %c0_40] : memref<1x8x32xbf16, #tpu.memory_space<vmem>>, vector<1x8x32xbf16>
    %55 = vector.shape_cast %54 : vector<1x8x32xbf16> to vector<8x32xbf16>
    %cst_41 = arith.constant dense<0.000000e+00> : vector<256x32xf32>
    %56 = tpu.matmul %52, %55, %cst_41 {dimension_numbers = #tpu.dot_dimension_numbers<[1], [0], [0], [1], [0, 0, 1, 1], [], []>} : vector<256x8xbf16>, vector<8x32xbf16>, vector<256x32xf32> -> vector<256x32xf32>
    %57 = arith.addf %53, %56 : vector<256x32xf32>
    %c0_42 = arith.constant 0 : index
    %c0_43 = arith.constant 0 : index
    %58 = vector.load %arg10[%c0_42, %c0_43] : memref<256x32xf32, #tpu.memory_space<vmem>>, vector<256x32xf32>
    tpu.vector_store %arg10[%c0_42, %c0_43], %57 {strides = array<i32>} : memref<256x32xf32, #tpu.memory_space<vmem>>, vector<256x32xf32>,
    %c3_i32 = arith.constant 3 : i32
    %59 = arith.cmpi eq, %arg1, %c3_i32 : i32
    %60 = arith.extui %59 : i1 to i32
    %c0_i32_44 = arith.constant 0 : i32
    %61 = arith.cmpi ne, %60, %c0_i32_44 : i32
    scf.if %61 {
      %c0_45 = arith.constant 0 : index
      %c0_46 = arith.constant 0 : index
      %62 = vector.load %arg10[%c0_45, %c0_46] : memref<256x32xf32, #tpu.memory_space<vmem>>, vector<256x32xf32>
      %c0_47 = arith.constant 0 : index
      %c0_48 = arith.constant 0 : index
      %63 = vector.load %arg8[%c0_47, %c0_48] : memref<1x32xf32, #tpu.memory_space<vmem>>, vector<1x32xf32>
      %64 = vector.broadcast %63 : vector<1x32xf32> to vector<256x32xf32>
      %65 = arith.addf %62, %64 : vector<256x32xf32>
      %c0_49 = arith.constant 0 : index
      %c0_50 = arith.constant 0 : index
      %66 = vector.load %arg9[%c0_49, %c0_50] : memref<256x32xf32, #tpu.memory_space<vmem>>, vector<256x32xf32>
      tpu.vector_store %arg9[%c0_49, %c0_50], %65 {strides = array<i32>} : memref<256x32xf32, #tpu.memory_space<vmem>>, vector<256x32xf32>,
    } else {
    }
    return
  }
  func.func @transform_0(%arg0: i32, %arg1: i32) -> (i32, i32) {
    %c0_i32 = arith.constant 0 : i32
    %c0_i32_0 = arith.constant 0 : i32
    return %arg0, %c0_i32 : i32, i32
  }
  func.func @transform_1(%arg0: i32, %arg1: i32) -> (i32, i32, i32, i32) {
    %c0_i32 = arith.constant 0 : i32
    %c0_i32_0 = arith.constant 0 : i32
    %c0_i32_1 = arith.constant 0 : i32
    %c0_i32_2 = arith.constant 0 : i32
    return %c0_i32, %arg1, %c0_i32_0, %c0_i32_1 : i32, i32, i32, i32
  }
  func.func @transform_2(%arg0: i32, %arg1: i32) -> (i32, i32, i32, i32) {
    %c0_i32 = arith.constant 0 : i32
    %c0_i32_0 = arith.constant 0 : i32
    %c0_i32_1 = arith.constant 0 : i32
    %c0_i32_2 = arith.constant 0 : i32
    return %c0_i32, %arg1, %c0_i32_0, %c0_i32_1 : i32, i32, i32, i32
  }
  func.func @transform_3(%arg0: i32, %arg1: i32) -> (i32, i32, i32) {
    %c0_i32 = arith.constant 0 : i32
    %c0_i32_0 = arith.constant 0 : i32
    %c0_i32_1 = arith.constant 0 : i32
    return %arg1, %c0_i32, %c0_i32_0 : i32, i32, i32
  }
  func.func @transform_4(%arg0: i32, %arg1: i32) -> (i32, i32, i32) {
    %c0_i32 = arith.constant 0 : i32
    %c0_i32_0 = arith.constant 0 : i32
    %c0_i32_1 = arith.constant 0 : i32
    %c0_i32_2 = arith.constant 0 : i32
    return %c0_i32, %c0_i32_0, %c0_i32_1 : i32, i32, i32
  }
  func.func @transform_5(%arg0: i32, %arg1: i32) -> (i32, i32, i32) {
    %c0_i32 = arith.constant 0 : i32
    %c0_i32_0 = arith.constant 0 : i32
    %c0_i32_1 = arith.constant 0 : i32
    return %arg1, %c0_i32, %c0_i32_0 : i32, i32, i32
  }
  func.func @transform_6(%arg0: i32, %arg1: i32) -> (i32, i32) {
    %c0_i32 = arith.constant 0 : i32
    %c0_i32_0 = arith.constant 0 : i32
    %c0_i32_1 = arith.constant 0 : i32
    return %c0_i32, %c0_i32_0 : i32, i32
  }
  func.func @transform_7(%arg0: i32, %arg1: i32) -> (i32, i32) {
    %c0_i32 = arith.constant 0 : i32
    %c0_i32_0 = arith.constant 0 : i32
    return %arg0, %c0_i32 : i32, i32
  }
}

</mosaic_0001>

<llo_original>
// kernel: tpu_custom_call.1
$region0: #{tpu_custom_call.1}
  #allocation0 [shape = 'u32[]', space=smem, size = 0x4, offset = 0x4, fixed_abs, tag = 'smem constant byte address 0x4 - core index']
  #allocation1 [shape = 'u32[144,128]{1,0:T(1,128)}', space=vmem, size = 0x12000, scoped, tag = 'internal scratch']
  #allocation2 [shape = 'f32[256,32]{1,0:T(8,128)}', space=vmem, size = 0x20000, scoped, tag = 'scratch operand']
  %s0 = inlined_call_operand.vmem [shape: bf16[512,32], index: 0, kind: input, shape index: {}]
  %s1 = inlined_call_operand.vmem [shape: bf16[3,4,32,8], index: 1, kind: input, shape index: {}]
  %s2 = inlined_call_operand.vmem [shape: f32[3,4,1,8], index: 2, kind: input, shape index: {}]
  %s3 = inlined_call_operand.vmem [shape: f32[4,16,16], index: 3, kind: input, shape index: {}]
  %s4 = inlined_call_operand.vmem [shape: f32[16,16,16], index: 4, kind: input, shape index: {}]
  %s5 = inlined_call_operand.vmem [shape: bf16[4,8,32], index: 5, kind: input, shape index: {}]
  %s6 = inlined_call_operand.vmem [shape: f32[1,32], index: 6, kind: input, shape index: {}]
  %s7 = inlined_call_operand.vmem [shape: f32[512,32], index: 7, kind: output, shape index: {}]
  %s8 = sld [smem:[#allocation0]]
  $region144: #{tpu_custom_call.1} parent=0
    _
  %s10 = ssub.s32 1, %s8
  %s11 = scalar_select 0, %s10, %s8
  $region1: #{tpu_custom_call.1} parent=0
    #allocation3 [shape = 'u8[49152]{0}', space=vmem, size = 0xc000, scoped, tag = 'input window, operand 1']
    #allocation4 [shape = 'u8[3072]{0}', space=vmem, size = 0xc00, scoped, tag = 'input window, operand 2']
    loop: start=0, step=1, limit=10
    $region2: #{tpu_custom_call.1} parent=1 // loop_pre_header
      _
    $region3: #{tpu_custom_call.1} parent=1 // loop_header
      %s13 = sphi 0, %s17
      %p14 = scmp.ge.s32.totalorder %s13, 10
      %s20 = sphi 0, %s32
      %s21 = sphi 0, %s28
      %s22 = sphi 0, %s20
      %s23 = sphi 0, %s21
      %s24 = sphi 0, %s22
      %s25 = sphi 0, %s23
      %s35 = sphi 0, %s37
      %s38 = sphi 0, %s35
      %s39 = sphi 0, %s38
      %s55 = sphi 0, %s39
      %s61 = sphi 0, %s63
      %s64 = sphi 0, %s61
      %s65 = sphi 0, %s64
      %s81 = sphi 0, %s65
      %s87 = sphi 0, %s89
      %s90 = sphi 0, %s87
      %s91 = sphi 0, %s90
      %s107 = sphi 0, %s91
      %s113 = sphi 0, %s115
      %s116 = sphi 0, %s113
      %s117 = sphi 0, %s116
      %s133 = sphi 0, %s117
      %s137 = sphi 0, %s137
      %s139 = sphi 0, %s137
      %s140 = sphi 0, %s139
      %s154 = sphi 0, %s140
      %s160 = sphi 0, %s162
      %s163 = sphi 0, %s160
      %s164 = sphi 0, %s163
      %s180 = sphi 0, %s164
      %s184 = sphi 0, %s184
      %s186 = sphi 0, %s184
      %s187 = sphi 0, %s186
      %s201 = sphi 0, %s187
      %s207 = sphi 0, %s209
      %s210 = sphi 0, %s207
      %s211 = sphi 0, %s210
      %s227 = sphi 0, %s211
    $region4: #{tpu_custom_call.1} parent=1 // loop_header_branch
      %16 = sbr.rel (%p14) target = $region8
    $region5: #{tpu_custom_call.1} parent=1 // loop_body
      %s18 = ssub.s32 %s13, 1
      %s19 = ssub.s32 %s13, 2
      %s26 = sadd.s32 1, %s21
      %p27 = scmp.ge.s32.totalorder %s26, 4
      %s28 = scalar_select %p27, 0, %s26
      %s29 = sadd.s32 1, %s20
      %s30 = scalar_select %p27, %s29, %s20
      %p31 = scmp.ge.s32.totalorder %s30, 2
      %s32 = scalar_select %p31, 0, %s30
      %s33 = ssub.s32 %s20, %s32
      %p34 = scmp.eq.s32.totalorder %s33, 0
      %s36 = sadd.s32 %s35, 1
      %s37 = scalar_select %p34, %s35, %s36
      %p40 = pneg %p34
      %p41 = scmp.eq.s32.totalorder %s13, 7
      %p42 = por %p40, %p41
      %p43 = scmp.ne.s32.totalorder %s35, %s38
      %p44 = scmp.eq.s32.totalorder %s13, 0
      %p45 = por %p43, %p44
      %p46 = scmp.ne.s32.totalorder %s35, %s38
      %p47 = scmp.eq.s32.totalorder %s18, 7
      %p48 = por %p46, %p47
      %p49 = scmp.ne.s32.totalorder %s38, %s39
      %p50 = scmp.eq.s32.totalorder %s18, 0
      %p51 = por %p49, %p50
      %p52 = scmp.ne.s32.totalorder %s38, %s39
      %p53 = scmp.eq.s32.totalorder %s19, 7
      %p54 = por %p52, %p53
      %p56 = scmp.ne.s32.totalorder %s39, %s55
      %p57 = scmp.eq.s32.totalorder %s19, 0
      %p58 = por %p56, %p57
      %s59 = ssub.s32 %s21, %s28
      %p60 = scmp.eq.s32.totalorder %s59, 0
      %s62 = sadd.s32 %s61, 1
      %s63 = scalar_select %p60, %s61, %s62
      %p66 = pneg %p60
      %p67 = scmp.eq.s32.totalorder %s13, 7
      %p68 = por %p66, %p67
      %p69 = scmp.ne.s32.totalorder %s61, %s64
      %p70 = scmp.eq.s32.totalorder %s13, 0
      %p71 = por %p69, %p70
      %p72 = scmp.ne.s32.totalorder %s61, %s64
      %p73 = scmp.eq.s32.totalorder %s18, 7
      %p74 = por %p72, %p73
      %p75 = scmp.ne.s32.totalorder %s64, %s65
      %p76 = scmp.eq.s32.totalorder %s18, 0
      %p77 = por %p75, %p76
      %p78 = scmp.ne.s32.totalorder %s64, %s65
      %p79 = scmp.eq.s32.totalorder %s19, 7
      %p80 = por %p78, %p79
      %p82 = scmp.ne.s32.totalorder %s65, %s81
      %p83 = scmp.eq.s32.totalorder %s19, 0
      %p84 = por %p82, %p83
      %s85 = ssub.s32 %s21, %s28
      %p86 = scmp.eq.s32.totalorder %s85, 0
      %s88 = sadd.s32 %s87, 1
      %s89 = scalar_select %p86, %s87, %s88
      %p92 = pneg %p86
      %p93 = scmp.eq.s32.totalorder %s13, 7
      %p94 = por %p92, %p93
      %p95 = scmp.ne.s32.totalorder %s87, %s90
      %p96 = scmp.eq.s32.totalorder %s13, 0
      %p97 = por %p95, %p96
      %p98 = scmp.ne.s32.totalorder %s87, %s90
      %p99 = scmp.eq.s32.totalorder %s18, 7
      %p100 = por %p98, %p99
      %p101 = scmp.ne.s32.totalorder %s90, %s91
      %p102 = scmp.eq.s32.totalorder %s18, 0
      %p103 = por %p101, %p102
      %p104 = scmp.ne.s32.totalorder %s90, %s91
      %p105 = scmp.eq.s32.totalorder %s19, 7
      %p106 = por %p104, %p105
      %p108 = scmp.ne.s32.totalorder %s91, %s107
      %p109 = scmp.eq.s32.totalorder %s19, 0
      %p110 = por %p108, %p109
      %s111 = ssub.s32 %s21, %s28
      %p112 = scmp.eq.s32.totalorder %s111, 0
      %s114 = sadd.s32 %s113, 1
      %s115 = scalar_select %p112, %s113, %s114
      %p118 = pneg %p112
      %p119 = scmp.eq.s32.totalorder %s13, 7
      %p120 = por %p118, %p119
      %p121 = scmp.ne.s32.totalorder %s113, %s116
      %p122 = scmp.eq.s32.totalorder %s13, 0
      %p123 = por %p121, %p122
      %p124 = scmp.ne.s32.totalorder %s113, %s116
      %p125 = scmp.eq.s32.totalorder %s18, 7
      %p126 = por %p124, %p125
      %p127 = scmp.ne.s32.totalorder %s116, %s117
      %p128 = scmp.eq.s32.totalorder %s18, 0
      %p129 = por %p127, %p128
      %p130 = scmp.ne.s32.totalorder %s116, %s117
      %p131 = scmp.eq.s32.totalorder %s19, 7
      %p132 = por %p130, %p131
      %p134 = scmp.ne.s32.totalorder %s117, %s133
      %p135 = scmp.eq.s32.totalorder %s19, 0
      %p136 = por %p134, %p135
      %s138 = sadd.s32 %s137, 1
      %p141 = scmp.eq.s32.totalorder %s13, 7
      %p142 = scmp.ne.s32.totalorder %s137, %s139
      %p143 = scmp.eq.s32.totalorder %s13, 0
      %p144 = por %p142, %p143
      %p145 = scmp.ne.s32.totalorder %s137, %s139
      %p146 = scmp.eq.s32.totalorder %s18, 7
      %p147 = por %p145, %p146
      %p148 = scmp.ne.s32.totalorder %s139, %s140
      %p149 = scmp.eq.s32.totalorder %s18, 0
      %p150 = por %p148, %p149
      %p151 = scmp.ne.s32.totalorder %s139, %s140
      %p152 = scmp.eq.s32.totalorder %s19, 7
      %p153 = por %p151, %p152
      %p155 = scmp.ne.s32.totalorder %s140, %s154
      %p156 = scmp.eq.s32.totalorder %s19, 0
      %p157 = por %p155, %p156
      %s158 = ssub.s32 %s21, %s28
      %p159 = scmp.eq.s32.totalorder %s158, 0
      %s161 = sadd.s32 %s160, 1
      %s162 = scalar_select %p159, %s160, %s161
      %p165 = pneg %p159
      %p166 = scmp.eq.s32.totalorder %s13, 7
      %p167 = por %p165, %p166
      %p168 = scmp.ne.s32.totalorder %s160, %s163
      %p169 = scmp.eq.s32.totalorder %s13, 0
      %p170 = por %p168, %p169
      %p171 = scmp.ne.s32.totalorder %s160, %s163
      %p172 = scmp.eq.s32.totalorder %s18, 7
      %p173 = por %p171, %p172
      %p174 = scmp.ne.s32.totalorder %s163, %s164
      %p175 = scmp.eq.s32.totalorder %s18, 0
      %p176 = por %p174, %p175
      %p177 = scmp.ne.s32.totalorder %s163, %s164
      %p178 = scmp.eq.s32.totalorder %s19, 7
      %p179 = por %p177, %p178
      %p181 = scmp.ne.s32.totalorder %s164, %s180
      %p182 = scmp.eq.s32.totalorder %s19, 0
      %p183 = por %p181, %p182
      %s185 = sadd.s32 %s184, 1
      %p188 = scmp.eq.s32.totalorder %s13, 7
      %p189 = scmp.ne.s32.totalorder %s184, %s186
      %p190 = scmp.eq.s32.totalorder %s13, 0
      %p191 = por %p189, %p190
      %p192 = scmp.ne.s32.totalorder %s184, %s186
      %p193 = scmp.eq.s32.totalorder %s18, 7
      %p194 = por %p192, %p193
      %p195 = scmp.ne.s32.totalorder %s186, %s187
      %p196 = scmp.eq.s32.totalorder %s18, 0
      %p197 = por %p195, %p196
      %p198 = scmp.ne.s32.totalorder %s186, %s187
      %p199 = scmp.eq.s32.totalorder %s19, 7
      %p200 = por %p198, %p199
      %p202 = scmp.ne.s32.totalorder %s187, %s201
      %p203 = scmp.eq.s32.totalorder %s19, 0
      %p204 = por %p202, %p203
      %s205 = ssub.s32 %s20, %s32
      %p206 = scmp.eq.s32.totalorder %s205, 0
      %s208 = sadd.s32 %s207, 1
      %s209 = scalar_select %p206, %s207, %s208
      %p212 = pneg %p206
      %p213 = scmp.eq.s32.totalorder %s13, 7
      %p214 = por %p212, %p213
      %p215 = scmp.ne.s32.totalorder %s207, %s210
      %p216 = scmp.eq.s32.totalorder %s13, 0
      %p217 = por %p215, %p216
      %p218 = scmp.ne.s32.totalorder %s207, %s210
      %p219 = scmp.eq.s32.totalorder %s18, 7
      %p220 = por %p218, %p219
      %p221 = scmp.ne.s32.totalorder %s210, %s211
      %p222 = scmp.eq.s32.totalorder %s18, 0
      %p223 = por %p221, %p222
      %p224 = scmp.ne.s32.totalorder %s210, %s211
      %p225 = scmp.eq.s32.totalorder %s19, 7
      %p226 = por %p224, %p225
      %p228 = scmp.ne.s32.totalorder %s211, %s227
      %p229 = scmp.eq.s32.totalorder %s19, 0
      %p230 = por %p228, %p229
      %p231 = scmp.le.s32.totalorder 1, %s13
      %p232 = scmp.lt.s32.totalorder %s13, 9
      %p233 = pnand %p231, %p232
      %p234 = pneg %p233
      // Predicated region
      $region9: #{tpu_custom_call.1} parent=5 // pred_check
        _
      $region10: #{tpu_custom_call.1} parent=5 // pred_check_branch
        %236 = sbr.rel (%p233) target = $region12
      $region11: #{tpu_custom_call.1} parent=5 // pred_region
        %s237 = ssub.s32 %s13, 1
        // Predicated region
        $region13: #{tpu_custom_call.1} parent=11 // pred_check
          %p238 = pneg %p150
        $region14: #{tpu_custom_call.1} parent=11 // pred_check_branch
          %240 = sbr.rel (%p238) target = $region16
        $region15: #{tpu_custom_call.1} parent=11 // pred_region
          _
        $region16: #{tpu_custom_call.1} parent=11 // pred_fallthru
          _
        // Predicated region
        $region17: #{tpu_custom_call.1} parent=11 // pred_check
          %p241 = pneg %p197
        $region18: #{tpu_custom_call.1} parent=11 // pred_check_branch
          %243 = sbr.rel (%p241) target = $region20
        $region19: #{tpu_custom_call.1} parent=11 // pred_region
          _
        $region20: #{tpu_custom_call.1} parent=11 // pred_fallthru
          _
      $region12: #{tpu_custom_call.1} parent=5 // pred_fallthru
        _
      %p244 = scmp.lt.s32.totalorder %s13, 8
      // Predicated region
      $region21: #{tpu_custom_call.1} parent=5 // pred_check
        %p245 = pneg %p244
      $region22: #{tpu_custom_call.1} parent=5 // pred_check_branch
        %247 = sbr.rel (%p245) target = $region24
      $region23: #{tpu_custom_call.1} parent=5 // pred_region
        // Predicated region
        $region25: #{tpu_custom_call.1} parent=23 // pred_check
          %p248 = pneg %p45
        $region26: #{tpu_custom_call.1} parent=23 // pred_check_branch
          %250 = sbr.rel (%p248) target = $region28
        $region27: #{tpu_custom_call.1} parent=23 // pred_region
          %s251 = smul.u32 32, %s20
          %p252 = scmp.lt.s32.totalorder %s251, 63
          %s253 = scalar_select %p252, %s251, 63
          %s254 = smul.addr %s253, 4
          %s255 = scalar_lea.vmem %s0, %s254
          %s256 = smul.u32 32, %s20
        $region28: #{tpu_custom_call.1} parent=23 // pred_fallthru
          _
        // Predicated region
        $region29: #{tpu_custom_call.1} parent=23 // pred_check
          %p257 = pneg %p71
        $region30: #{tpu_custom_call.1} parent=23 // pred_check_branch
          %259 = sbr.rel (%p257) target = $region32
        $region31: #{tpu_custom_call.1} parent=23 // pred_region
          %s260 = sand.u32 %s61, 1
          %s261 = sand.u32 %s61, 1
          %s262 = smul.addr %s261, 48
          %s263 = scalar_lea.vmem [#allocation3], %s262
          %s264 = smul.addr %s21, 4
          %s265 = smul.addr %s264, 4
          %s266 = scalar_lea.vmem %s1, %s265
          // Predicated region
          $region33: #{tpu_custom_call.1} parent=31 // pred_check
            _
          $region34: #{tpu_custom_call.1} parent=31 // pred_check_branch
            %268 = sbr.rel (0) target = $region36
          $region35: #{tpu_custom_call.1} parent=31 // pred_region
            // Predicated region
            $region37: #{tpu_custom_call.1} parent=35 // pred_check
              _
            $region38: #{tpu_custom_call.1} parent=35 // pred_check_branch
              %270 = sbr.rel target = $region40
            $region39: #{tpu_custom_call.1} parent=35 // pred_region
              // Predicated region
              $region52: #{tpu_custom_call.1} parent=39 // pred_check
                _
              $region53: #{tpu_custom_call.1} parent=39 // pred_check_branch
                %307 = sbr.rel (0) target = $region55
              $region54: #{tpu_custom_call.1} parent=39 // pred_region
                loop: start=0, step=1, limit=1
                $region56: #{tpu_custom_call.1} parent=54 // loop_pre_header
                  _
                $region57: #{tpu_custom_call.1} parent=54 // loop_header
                  %s309 = sphi 0, %s313
                  %p310 = scmp.ge.s32.totalorder %s309, 1
                  %s314 = sphi %s266, %s266
                  %s315 = sphi %s263, %s263
                $region58: #{tpu_custom_call.1} parent=54 // loop_header_branch
                  %312 = sbr.rel (%p310) target = $region62
                $region59: #{tpu_custom_call.1} parent=54 // loop_body
                  _
                $region60: #{tpu_custom_call.1} parent=54 // loop_footer
                  %s313 = sadd.s32 1, %s309
                $region61: #{tpu_custom_call.1} parent=54 // loop_footer_branch
                  %308 = sbr.rel target = $region57
                $region62: #{tpu_custom_call.1} parent=54 // loop_exit
                  _
                loop: start=0, step=1, limit=1
                $region63: #{tpu_custom_call.1} parent=54 // loop_pre_header
                  _
                $region64: #{tpu_custom_call.1} parent=54 // loop_header
                  %s318 = sphi 0, %s322
                  %p319 = scmp.ge.s32.totalorder %s318, 1
                  %s323 = sphi %s266, %s266
                  %s324 = sphi %s263, %s263
                $region65: #{tpu_custom_call.1} parent=54 // loop_header_branch
                  %321 = sbr.rel (%p319) target = $region69
                $region66: #{tpu_custom_call.1} parent=54 // loop_body
                  %v325 = vld [vmem:[%s323] sm:$0xf]
                  %326 = vst [vmem:[%s324] sm:$0xf] %v325
                  %v327 = vld [vmem:[%s323 + $0x4] sm:$0xf]
                  %328 = vst [vmem:[%s324 + $0x4] sm:$0xf] %v327
                  %v329 = vld [vmem:[%s323 + $0x8] sm:$0xf]
                  %330 = vst [vmem:[%s324 + $0x8] sm:$0xf] %v329
                  %v331 = vld [vmem:[%s323 + $0xc] sm:$0xf]
                  %332 = vst [vmem:[%s324 + $0xc] sm:$0xf] %v331
                  %v333 = vld [vmem:[%s323 + $0x40] sm:$0xf]
                  %334 = vst [vmem:[%s324 + $0x10] sm:$0xf] %v333
                  %v335 = vld [vmem:[%s323 + $0x44] sm:$0xf]
                  %336 = vst [vmem:[%s324 + $0x14] sm:$0xf] %v335
                  %v337 = vld [vmem:[%s323 + $0x48] sm:$0xf]
                  %338 = vst [vmem:[%s324 + $0x18] sm:$0xf] %v337
                  %v339 = vld [vmem:[%s323 + $0x4c] sm:$0xf]
                  %340 = vst [vmem:[%s324 + $0x1c] sm:$0xf] %v339
                  %v341 = vld [vmem:[%s323 + $0x80] sm:$0xf]
                  %342 = vst [vmem:[%s324 + $0x20] sm:$0xf] %v341
                  %v343 = vld [vmem:[%s323 + $0x84] sm:$0xf]
                  %344 = vst [vmem:[%s324 + $0x24] sm:$0xf] %v343
                  %v345 = vld [vmem:[%s323 + $0x88] sm:$0xf]
                  %346 = vst [vmem:[%s324 + $0x28] sm:$0xf] %v345
                  %v347 = vld [vmem:[%s323 + $0x8c] sm:$0xf]
                  %348 = vst [vmem:[%s324 + $0x2c] sm:$0xf] %v347
                $region67: #{tpu_custom_call.1} parent=54 // loop_footer
                  %s322 = sadd.s32 1, %s318
                $region68: #{tpu_custom_call.1} parent=54 // loop_footer_branch
                  %317 = sbr.rel target = $region64
                $region69: #{tpu_custom_call.1} parent=54 // loop_exit
                  _
              $region55: #{tpu_custom_call.1} parent=39 // pred_fallthru
                _
            $region40: #{tpu_custom_call.1} parent=35 // pred_fallthru
              _
            // Predicated region
            $region41: #{tpu_custom_call.1} parent=35 // pred_check
              _
            $region42: #{tpu_custom_call.1} parent=35 // pred_check_branch
              %272 = sbr.rel (0) target = $region44
            $region43: #{tpu_custom_call.1} parent=35 // pred_region
              loop: start=0, step=1, limit=1
              $region45: #{tpu_custom_call.1} parent=43 // loop_pre_header
                _
              $region46: #{tpu_custom_call.1} parent=43 // loop_header
                %s275 = sphi 0, %s279
                %p276 = scmp.ge.s32.totalorder %s275, 1
                %s280 = sphi %s266, %s266
                %s281 = sphi %s263, %s263
              $region47: #{tpu_custom_call.1} parent=43 // loop_header_branch
                %278 = sbr.rel (%p276) target = $region51
              $region48: #{tpu_custom_call.1} parent=43 // loop_body
                %v282 = vld [vmem:[%s280] sm:$0xf]
                %283 = vst [vmem:[%s281] sm:$0xf] %v282
                %v284 = vld [vmem:[%s280 + $0x4] sm:$0xf]
                %285 = vst [vmem:[%s281 + $0x4] sm:$0xf] %v284
                %v286 = vld [vmem:[%s280 + $0x8] sm:$0xf]
                %287 = vst [vmem:[%s281 + $0x8] sm:$0xf] %v286
                %v288 = vld [vmem:[%s280 + $0xc] sm:$0xf]
                %289 = vst [vmem:[%s281 + $0xc] sm:$0xf] %v288
                %v290 = vld [vmem:[%s280 + $0x40] sm:$0xf]
                %291 = vst [vmem:[%s281 + $0x10] sm:$0xf] %v290
                %v292 = vld [vmem:[%s280 + $0x44] sm:$0xf]
                %293 = vst [vmem:[%s281 + $0x14] sm:$0xf] %v292
                %v294 = vld [vmem:[%s280 + $0x48] sm:$0xf]
                %295 = vst [vmem:[%s281 + $0x18] sm:$0xf] %v294
                %v296 = vld [vmem:[%s280 + $0x4c] sm:$0xf]
                %297 = vst [vmem:[%s281 + $0x1c] sm:$0xf] %v296
                %v298 = vld [vmem:[%s280 + $0x80] sm:$0xf]
                %299 = vst [vmem:[%s281 + $0x20] sm:$0xf] %v298
                %v300 = vld [vmem:[%s280 + $0x84] sm:$0xf]
                %301 = vst [vmem:[%s281 + $0x24] sm:$0xf] %v300
                %v302 = vld [vmem:[%s280 + $0x88] sm:$0xf]
                %303 = vst [vmem:[%s281 + $0x28] sm:$0xf] %v302
                %v304 = vld [vmem:[%s280 + $0x8c] sm:$0xf]
                %305 = vst [vmem:[%s281 + $0x2c] sm:$0xf] %v304
              $region49: #{tpu_custom_call.1} parent=43 // loop_footer
                %s279 = sadd.s32 1, %s275
              $region50: #{tpu_custom_call.1} parent=43 // loop_footer_branch
                %274 = sbr.rel target = $region46
              $region51: #{tpu_custom_call.1} parent=43 // loop_exit
                _
            $region44: #{tpu_custom_call.1} parent=35 // pred_fallthru
              _
          $region36: #{tpu_custom_call.1} parent=31 // pred_fallthru
            _
          %349 = vnop
        $region32: #{tpu_custom_call.1} parent=23 // pred_fallthru
          _
        // Predicated region
        $region70: #{tpu_custom_call.1} parent=23 // pred_check
          %p350 = pneg %p97
        $region71: #{tpu_custom_call.1} parent=23 // pred_check_branch
          %352 = sbr.rel (%p350) target = $region73
        $region72: #{tpu_custom_call.1} parent=23 // pred_region
          %s353 = sand.u32 %s87, 1
          %s354 = sand.u32 %s87, 1
          %s355 = smul.addr %s354, 3
          %s356 = scalar_lea.vmem [#allocation4], %s355
          %s357 = scalar_lea.vmem %s2, %s21
          // Predicated region
          $region74: #{tpu_custom_call.1} parent=72 // pred_check
            _
          $region75: #{tpu_custom_call.1} parent=72 // pred_check_branch
            %359 = sbr.rel (0) target = $region77
          $region76: #{tpu_custom_call.1} parent=72 // pred_region
            // Predicated region
            $region78: #{tpu_custom_call.1} parent=76 // pred_check
              _
            $region79: #{tpu_custom_call.1} parent=76 // pred_check_branch
              %361 = sbr.rel target = $region81
            $region80: #{tpu_custom_call.1} parent=76 // pred_region
              // Predicated region
              $region93: #{tpu_custom_call.1} parent=80 // pred_check
                _
              $region94: #{tpu_custom_call.1} parent=80 // pred_check_branch
                %380 = sbr.rel (0) target = $region96
              $region95: #{tpu_custom_call.1} parent=80 // pred_region
                loop: start=0, step=1, limit=1
                $region97: #{tpu_custom_call.1} parent=95 // loop_pre_header
                  _
                $region98: #{tpu_custom_call.1} parent=95 // loop_header
                  %s383 = sphi 0, %s387
                  %p384 = scmp.ge.s32.totalorder %s383, 1
                  %s388 = sphi %s357, %s357
                  %s389 = sphi %s356, %s356
                $region99: #{tpu_custom_call.1} parent=95 // loop_header_branch
                  %386 = sbr.rel (%p384) target = $region103
                $region100: #{tpu_custom_call.1} parent=95 // loop_body
                  %v390 = vld [vmem:[%s388] sm:$0x1]
                  %391 = vst [vmem:[%s389] sm:$0x1] %v390
                  %v392 = vld [vmem:[%s388 + $0x4] sm:$0x1]
                  %393 = vst [vmem:[%s389 + $0x1] sm:$0x1] %v392
                  %v394 = vld [vmem:[%s388 + $0x8] sm:$0x1]
                  %395 = vst [vmem:[%s389 + $0x2] sm:$0x1] %v394
                $region101: #{tpu_custom_call.1} parent=95 // loop_footer
                  %s387 = sadd.s32 1, %s383
                $region102: #{tpu_custom_call.1} parent=95 // loop_footer_branch
                  %382 = sbr.rel target = $region98
                $region103: #{tpu_custom_call.1} parent=95 // loop_exit
                  _
              $region96: #{tpu_custom_call.1} parent=80 // pred_fallthru
                _
            $region81: #{tpu_custom_call.1} parent=76 // pred_fallthru
              _
            // Predicated region
            $region82: #{tpu_custom_call.1} parent=76 // pred_check
              _
            $region83: #{tpu_custom_call.1} parent=76 // pred_check_branch
              %363 = sbr.rel (0) target = $region85
            $region84: #{tpu_custom_call.1} parent=76 // pred_region
              loop: start=0, step=1, limit=1
              $region86: #{tpu_custom_call.1} parent=84 // loop_pre_header
                _
              $region87: #{tpu_custom_call.1} parent=84 // loop_header
                %s366 = sphi 0, %s370
                %p367 = scmp.ge.s32.totalorder %s366, 1
                %s371 = sphi %s357, %s357
                %s372 = sphi %s356, %s356
              $region88: #{tpu_custom_call.1} parent=84 // loop_header_branch
                %369 = sbr.rel (%p367) target = $region92
              $region89: #{tpu_custom_call.1} parent=84 // loop_body
                %v373 = vld [vmem:[%s371] sm:$0x1]
                %374 = vst [vmem:[%s372] sm:$0x1] %v373
                %v375 = vld [vmem:[%s371 + $0x4] sm:$0x1]
                %376 = vst [vmem:[%s372 + $0x1] sm:$0x1] %v375
                %v377 = vld [vmem:[%s371 + $0x8] sm:$0x1]
                %378 = vst [vmem:[%s372 + $0x2] sm:$0x1] %v377
              $region90: #{tpu_custom_call.1} parent=84 // loop_footer
                %s370 = sadd.s32 1, %s366
              $region91: #{tpu_custom_call.1} parent=84 // loop_footer_branch
                %365 = sbr.rel target = $region87
              $region92: #{tpu_custom_call.1} parent=84 // loop_exit
                _
            $region85: #{tpu_custom_call.1} parent=76 // pred_fallthru
              _
          $region77: #{tpu_custom_call.1} parent=72 // pred_fallthru
            _
          %396 = vnop
        $region73: #{tpu_custom_call.1} parent=23 // pred_fallthru
          _
        // Predicated region
        $region104: #{tpu_custom_call.1} parent=23 // pred_check
          %p397 = pneg %p123
        $region105: #{tpu_custom_call.1} parent=23 // pred_check_branch
          %399 = sbr.rel (%p397) target = $region107
        $region106: #{tpu_custom_call.1} parent=23 // pred_region
          %p400 = scmp.lt.s32.totalorder %s21, 3
          %s401 = scalar_select %p400, %s21, 3
          %s402 = smul.addr %s401, 2
          %s403 = smul.addr %s402, 8
          %s404 = scalar_lea.vmem %s3, %s403
        $region107: #{tpu_custom_call.1} parent=23 // pred_fallthru
          _
        // Predicated region
        $region108: #{tpu_custom_call.1} parent=23 // pred_check
          %p405 = pneg %p170
        $region109: #{tpu_custom_call.1} parent=23 // pred_check_branch
          %407 = sbr.rel (%p405) target = $region111
        $region110: #{tpu_custom_call.1} parent=23 // pred_region
          %p408 = scmp.lt.s32.totalorder %s21, 3
          %s409 = scalar_select %p408, %s21, 3
          %s410 = smul.addr %s409, 4
          %s411 = scalar_lea.vmem %s5, %s410
        $region111: #{tpu_custom_call.1} parent=23 // pred_fallthru
          _
      $region24: #{tpu_custom_call.1} parent=5 // pred_fallthru
        _
      %p412 = scmp.le.s32.totalorder 1, %s13
      %p413 = scmp.lt.s32.totalorder %s13, 9
      %p414 = pnand %p412, %p413
      %p415 = pneg %p414
      // Predicated region
      $region112: #{tpu_custom_call.1} parent=5 // pred_check
        _
      $region113: #{tpu_custom_call.1} parent=5 // pred_check_branch
        %417 = sbr.rel (%p414) target = $region115
      $region114: #{tpu_custom_call.1} parent=5 // pred_region
        %s418 = ssub.s32 %s13, 1
        %s419 = sand.u32 %s64, 1
        %s420 = sand.u32 %s64, 1
        %s421 = smul.addr %s420, 48
        %s422 = scalar_lea.vmem [#allocation3], %s421
        // Predicated region
        $region116: #{tpu_custom_call.1} parent=114 // pred_check
          %p423 = pneg %p77
        $region117: #{tpu_custom_call.1} parent=114 // pred_check_branch
          %425 = sbr.rel (%p423) target = $region119
        $region118: #{tpu_custom_call.1} parent=114 // pred_region
          _
        $region119: #{tpu_custom_call.1} parent=114 // pred_fallthru
          _
        %s426 = sand.u32 %s90, 1
        %s427 = sand.u32 %s90, 1
        %s428 = smul.addr %s427, 3
        %s429 = scalar_lea.vmem [#allocation4], %s428
        // Predicated region
        $region120: #{tpu_custom_call.1} parent=114 // pred_check
          %p430 = pneg %p103
        $region121: #{tpu_custom_call.1} parent=114 // pred_check_branch
          %432 = sbr.rel (%p430) target = $region123
        $region122: #{tpu_custom_call.1} parent=114 // pred_region
          _
        $region123: #{tpu_custom_call.1} parent=114 // pred_fallthru
          _
        %s433 = smul.u32 32, %s22
        %p434 = scmp.lt.s32.totalorder %s433, 63
        %s435 = scalar_select %p434, %s433, 63
        %s436 = smul.addr %s435, 4
        %s437 = scalar_lea.vmem %s0, %s436
        %p438 = pneg %p51
        %p439 = pneg %p48
        %s440 = sand.u32 %s64, 1
        %s441 = sand.u32 %s64, 1
        %s442 = smul.addr %s441, 48
        %s443 = scalar_lea.vmem [#allocation3], %s442
        %p444 = pneg %p77
        %p445 = pneg %p74
        %s446 = sand.u32 %s90, 1
        %s447 = sand.u32 %s90, 1
        %s448 = smul.addr %s447, 3
        %s449 = scalar_lea.vmem [#allocation4], %s448
        %p450 = pneg %p103
        %p451 = pneg %p100
        %p452 = scmp.lt.s32.totalorder %s23, 3
        %s453 = scalar_select %p452, %s23, 3
        %s454 = smul.addr %s453, 2
        %s455 = smul.addr %s454, 8
        %s456 = scalar_lea.vmem %s3, %s455
        %p457 = pneg %p129
        %p458 = pneg %p126
        %p459 = pneg %p150
        %p460 = pneg %p147
        %p461 = scmp.lt.s32.totalorder %s23, 3
        %s462 = scalar_select %p461, %s23, 3
        %s463 = smul.addr %s462, 4
        %s464 = scalar_lea.vmem %s5, %s463
        %p465 = pneg %p176
        %p466 = pneg %p173
        %p467 = pneg %p197
        %p468 = pneg %p194
        %p469 = pneg %p223
        %p470 = pneg %p220
        %s471 = smul.u32 32, %s22
        %p472 = scmp.lt.s32.totalorder %s471, 63
        %s473 = scalar_select %p472, %s471, 63
        %s474 = smul.addr %s473, 8
        %s475 = scalar_lea.vmem %s7, %s474
        %s476 = smul.u32 32, %s22
        %p477 = scmp.lt.s32.totalorder %s476, 63
        %s478 = scalar_select %p477, %s476, 63
        %s479 = smul.addr %s478, 4
        %s480 = scalar_lea.vmem %s0, %s479
        %s481 = smul.u32 32, %s22
        %p482 = scmp.lt.s32.totalorder %s23, 3
        %s483 = scalar_select %p482, %s23, 3
        %s484 = smul.addr %s483, 2
        %s485 = smul.addr %s484, 8
        %s486 = scalar_lea.vmem %s3, %s485
        %p487 = scmp.lt.s32.totalorder %s23, 3
        %s488 = scalar_select %p487, %s23, 3
        %s489 = smul.addr %s488, 4
        %s490 = scalar_lea.vmem %s5, %s489
        %s491 = smul.u32 32, %s22
        %p492 = scmp.lt.s32.totalorder %s491, 63
        %s493 = scalar_select %p492, %s491, 63
        %s494 = smul.addr %s493, 8
        %s495 = scalar_lea.vmem %s7, %s494
        %s496 = smul.u32 32, %s22
        %p498 = scmp.eq.s32.totalorder %s23, 0
        // Predicated region
        $region124: #{tpu_custom_call.1} parent=114 // pred_check
          %p499 = pneg %p498
        $region125: #{tpu_custom_call.1} parent=114 // pred_check_branch
          %501 = sbr.rel (%p499) target = $region127
        $region126: #{tpu_custom_call.1} parent=114 // pred_region
          %vm502 = vcmask 261120
          %503 = vst.msk [vmem:[#allocation2] sm:$0xff] %vm502, 0.0
          %504 = vst.msk [vmem:[#allocation2 + $0x8] sm:$0xff] %vm502, 0.0
          %505 = vst.msk [vmem:[#allocation2 + $0x10] sm:$0xff] %vm502, 0.0
          %506 = vst.msk [vmem:[#allocation2 + $0x18] sm:$0xff] %vm502, 0.0
          %507 = vst.msk [vmem:[#allocation2 + $0x20] sm:$0xff] %vm502, 0.0
          %508 = vst.msk [vmem:[#allocation2 + $0x28] sm:$0xff] %vm502, 0.0
          %509 = vst.msk [vmem:[#allocation2 + $0x30] sm:$0xff] %vm502, 0.0
          %510 = vst.msk [vmem:[#allocation2 + $0x38] sm:$0xff] %vm502, 0.0
          %511 = vst.msk [vmem:[#allocation2 + $0x40] sm:$0xff] %vm502, 0.0
          %512 = vst.msk [vmem:[#allocation2 + $0x48] sm:$0xff] %vm502, 0.0
          %513 = vst.msk [vmem:[#allocation2 + $0x50] sm:$0xff] %vm502, 0.0
          %514 = vst.msk [vmem:[#allocation2 + $0x58] sm:$0xff] %vm502, 0.0
          %515 = vst.msk [vmem:[#allocation2 + $0x60] sm:$0xff] %vm502, 0.0
          %516 = vst.msk [vmem:[#allocation2 + $0x68] sm:$0xff] %vm502, 0.0
          %517 = vst.msk [vmem:[#allocation2 + $0x70] sm:$0xff] %vm502, 0.0
          %518 = vst.msk [vmem:[#allocation2 + $0x78] sm:$0xff] %vm502, 0.0
          %519 = vst.msk [vmem:[#allocation2 + $0x80] sm:$0xff] %vm502, 0.0
          %520 = vst.msk [vmem:[#allocation2 + $0x88] sm:$0xff] %vm502, 0.0
          %521 = vst.msk [vmem:[#allocation2 + $0x90] sm:$0xff] %vm502, 0.0
          %522 = vst.msk [vmem:[#allocation2 + $0x98] sm:$0xff] %vm502, 0.0
          %523 = vst.msk [vmem:[#allocation2 + $0xa0] sm:$0xff] %vm502, 0.0
          %524 = vst.msk [vmem:[#allocation2 + $0xa8] sm:$0xff] %vm502, 0.0
          %525 = vst.msk [vmem:[#allocation2 + $0xb0] sm:$0xff] %vm502, 0.0
          %526 = vst.msk [vmem:[#allocation2 + $0xb8] sm:$0xff] %vm502, 0.0
          %527 = vst.msk [vmem:[#allocation2 + $0xc0] sm:$0xff] %vm502, 0.0
          %528 = vst.msk [vmem:[#allocation2 + $0xc8] sm:$0xff] %vm502, 0.0
          %529 = vst.msk [vmem:[#allocation2 + $0xd0] sm:$0xff] %vm502, 0.0
          %530 = vst.msk [vmem:[#allocation2 + $0xd8] sm:$0xff] %vm502, 0.0
          %531 = vst.msk [vmem:[#allocation2 + $0xe0] sm:$0xff] %vm502, 0.0
          %532 = vst.msk [vmem:[#allocation2 + $0xe8] sm:$0xff] %vm502, 0.0
          %533 = vst.msk [vmem:[#allocation2 + $0xf0] sm:$0xff] %vm502, 0.0
          %534 = vst.msk [vmem:[#allocation2 + $0xf8] sm:$0xff] %vm502, 0.0
        $region127: #{tpu_custom_call.1} parent=114 // pred_fallthru
          _
        %v535 = vld [vmem:[%s480] sm:$0xf]
        %v536 = vld [vmem:[%s480 + $0x4] sm:$0xf]
        %v537 = vld [vmem:[%s480 + $0x8] sm:$0xf]
        %v538 = vld [vmem:[%s480 + $0xc] sm:$0xf]
        %v539 = vld [vmem:[%s480 + $0x10] sm:$0xf]
        %v540 = vld [vmem:[%s480 + $0x14] sm:$0xf]
        %v541 = vld [vmem:[%s480 + $0x18] sm:$0xf]
        %v542 = vld [vmem:[%s480 + $0x1c] sm:$0xf]
        %v543 = vld [vmem:[%s480 + $0x20] sm:$0xf]
        %v544 = vld [vmem:[%s480 + $0x24] sm:$0xf]
        %v545 = vld [vmem:[%s480 + $0x28] sm:$0xf]
        %v546 = vld [vmem:[%s480 + $0x2c] sm:$0xf]
        %v547 = vld [vmem:[%s480 + $0x30] sm:$0xf]
        %v548 = vld [vmem:[%s480 + $0x34] sm:$0xf]
        %v549 = vld [vmem:[%s480 + $0x38] sm:$0xf]
        %v550 = vld [vmem:[%s480 + $0x3c] sm:$0xf]
        %v551 = vld [vmem:[%s480 + $0x40] sm:$0xf]
        %v552 = vld [vmem:[%s480 + $0x44] sm:$0xf]
        %v553 = vld [vmem:[%s480 + $0x48] sm:$0xf]
        %v554 = vld [vmem:[%s480 + $0x4c] sm:$0xf]
        %v555 = vld [vmem:[%s480 + $0x50] sm:$0xf]
        %v556 = vld [vmem:[%s480 + $0x54] sm:$0xf]
        %v557 = vld [vmem:[%s480 + $0x58] sm:$0xf]
        %v558 = vld [vmem:[%s480 + $0x5c] sm:$0xf]
        %v559 = vld [vmem:[%s480 + $0x60] sm:$0xf]
        %v560 = vld [vmem:[%s480 + $0x64] sm:$0xf]
        %v561 = vld [vmem:[%s480 + $0x68] sm:$0xf]
        %v562 = vld [vmem:[%s480 + $0x6c] sm:$0xf]
        %v563 = vld [vmem:[%s480 + $0x70] sm:$0xf]
        %v564 = vld [vmem:[%s480 + $0x74] sm:$0xf]
        %v565 = vld [vmem:[%s480 + $0x78] sm:$0xf]
        %v566 = vld [vmem:[%s480 + $0x7c] sm:$0xf]
        %v567 = vld [vmem:[%s422] sm:$0xf]
        %v568 = vld [vmem:[%s422 + $0x4] sm:$0xf]
        %v569 = vld [vmem:[%s422 + $0x8] sm:$0xf]
        %v570 = vld [vmem:[%s422 + $0xc] sm:$0xf]
        %v571 = vld [vmem:[%s429] sm:$0x1]
        %v573 = vlaneseq
        %v574 = vshrl.u32 %v573, 7
        %v575 = vsub.s32 0, %v574
        %v576 = vrot.slane %v571, %v575
        %v610 = vunpack.c.l.b16 %v535
        %v611 = vunpack.c.l.b16 %v536
        %v612 = vunpack.c.l.b16 %v537
        %v613 = vunpack.c.l.b16 %v538
        %v614 = vunpack.c.l.b16 %v539
        %v615 = vunpack.c.l.b16 %v540
        %v616 = vunpack.c.l.b16 %v541
        %v617 = vunpack.c.l.b16 %v542
        %v618 = vunpack.c.l.b16 %v543
        %v619 = vunpack.c.l.b16 %v544
        %v620 = vunpack.c.l.b16 %v545
        %v621 = vunpack.c.l.b16 %v546
        %v622 = vunpack.c.l.b16 %v547
        %v623 = vunpack.c.l.b16 %v548
        %v624 = vunpack.c.l.b16 %v549
        %v625 = vunpack.c.l.b16 %v550
        %v626 = vunpack.c.l.b16 %v551
        %v627 = vunpack.c.l.b16 %v552
        %v628 = vunpack.c.l.b16 %v553
        %v629 = vunpack.c.l.b16 %v554
        %v630 = vunpack.c.l.b16 %v555
        %v631 = vunpack.c.l.b16 %v556
        %v632 = vunpack.c.l.b16 %v557
        %v633 = vunpack.c.l.b16 %v558
        %v634 = vunpack.c.l.b16 %v559
        %v635 = vunpack.c.l.b16 %v560
        %v636 = vunpack.c.l.b16 %v561
        %v637 = vunpack.c.l.b16 %v562
        %v638 = vunpack.c.l.b16 %v563
        %v639 = vunpack.c.l.b16 %v564
        %v640 = vunpack.c.l.b16 %v565
        %v641 = vunpack.c.l.b16 %v566
        %v642 = vpack.c.b16 %v611, %v610
        %v643 = vpack.c.b16 %v613, %v612
        %v644 = vpack.c.b16 %v615, %v614
        %v645 = vpack.c.b16 %v617, %v616
        %v646 = vpack.c.b16 %v619, %v618
        %v647 = vpack.c.b16 %v621, %v620
        %v648 = vpack.c.b16 %v623, %v622
        %v649 = vpack.c.b16 %v625, %v624
        %v650 = vpack.c.b16 %v627, %v626
        %v651 = vpack.c.b16 %v629, %v628
        %v652 = vpack.c.b16 %v631, %v630
        %v653 = vpack.c.b16 %v633, %v632
        %v654 = vpack.c.b16 %v635, %v634
        %v655 = vpack.c.b16 %v637, %v636
        %v656 = vpack.c.b16 %v639, %v638
        %v657 = vpack.c.b16 %v641, %v640
        %v662 = vunpack.c.l.b16 %v567
        %v663 = vunpack.c.l.b16 %v568
        %v664 = vunpack.c.l.b16 %v569
        %v665 = vunpack.c.l.b16 %v570
        %v666 = vpack.c.b16 %v663, %v662
        %v667 = vpack.c.b16 %v665, %v664
        %vm670 = vcmask 261120
        %v672 = vsel %vm670, %v642, 0
        %v675 = vsel %vm670, %v643, 0
        %v678 = vsel %vm670, %v644, 0
        %v681 = vsel %vm670, %v645, 0
        %v684 = vsel %vm670, %v646, 0
        %v687 = vsel %vm670, %v647, 0
        %v690 = vsel %vm670, %v648, 0
        %v693 = vsel %vm670, %v649, 0
        %v696 = vsel %vm670, %v650, 0
        %v699 = vsel %vm670, %v651, 0
        %v702 = vsel %vm670, %v652, 0
        %v705 = vsel %vm670, %v653, 0
        %v708 = vsel %vm670, %v654, 0
        %v711 = vsel %vm670, %v655, 0
        %v714 = vsel %vm670, %v656, 0
        %v717 = vsel %vm670, %v657, 0
        %719 = vmatprep.subr.bf16.mxu0 0
        %720 = vmatpush1.bf16.msra.mxu0 %v666
        %721 = vmatprep.subr.bf16.mxu0 0
        %722 = vmatpush1.bf16.msra.mxu0 %v667
        %723 = vmatprep.subr.bf16.mxu0 0
        %724 = vmatpush1.bf16.msra.mxu0 0
        %725 = vmatprep.subr.bf16.mxu0 0
        %726 = vmatpush1.bf16.msra.mxu0 0
        %727 = vmatprep.subr.bf16.mxu0 0
        %728 = vmatpush1.bf16.msra.mxu0 0
        %729 = vmatprep.subr.bf16.mxu0 0
        %730 = vmatpush1.bf16.msra.mxu0 0
        %731 = vmatprep.subr.bf16.mxu0 0
        %732 = vmatpush1.bf16.msra.mxu0 0
        %733 = vmatprep.subr.bf16.mxu0 0
        %734 = vmatpush1.bf16.msra.mxu0 0
        %735 = vmatprep.subr.bf16.mxu0 0
        %736 = vmatpush1.bf16.msra.mxu0 0
        %737 = vmatprep.subr.bf16.mxu0 0
        %738 = vmatpush1.bf16.msra.mxu0 0
        %739 = vmatprep.subr.bf16.mxu0 0
        %740 = vmatpush1.bf16.msra.mxu0 0
        %741 = vmatprep.subr.bf16.mxu0 0
        %742 = vmatpush1.bf16.msra.mxu0 0
        %743 = vmatprep.subr.bf16.mxu0 0
        %744 = vmatpush1.bf16.msra.mxu0 0
        %745 = vmatprep.subr.bf16.mxu0 0
        %746 = vmatpush1.bf16.msra.mxu0 0
        %747 = vmatprep.subr.bf16.mxu0 0
        %748 = vmatpush1.bf16.msra.mxu0 0
        %749 = vmatprep.subr.bf16.mxu0 0
        %750 = vmatpush1.bf16.msra.mxu0 0
        %751 = vmatprep.mubr.bf16.mxu0 0
        %752 = vmatmul.mubr.bf16.gmra.mrb[0].mxu0 %v672
        %v753 = vpop.f32.mrb[0].mxu0
        %v754 = vadd.f32 %v576, %v753
        %v755 = vpop.f32.mrb[0].mxu0
        %v756 = vpop.f32.mrb[0].mxu0
        %v757 = vadd.f32 %v576, %v756
        %v758 = vpop.f32.mrb[0].mxu0
        %759 = vmatprep.mubr.bf16.mxu0 0
        %760 = vmatmul.mubr.bf16.gmra.mrb[0].mxu0 %v675
        %v761 = vpop.f32.mrb[0].mxu0
        %v762 = vadd.f32 %v576, %v761
        %v763 = vpop.f32.mrb[0].mxu0
        %v764 = vpop.f32.mrb[0].mxu0
        %v765 = vadd.f32 %v576, %v764
        %v766 = vpop.f32.mrb[0].mxu0
        %767 = vmatprep.mubr.bf16.mxu0 0
        %768 = vmatmul.mubr.bf16.gmra.mrb[0].mxu0 %v678
        %v769 = vpop.f32.mrb[0].mxu0
        %v770 = vadd.f32 %v576, %v769
        %v771 = vpop.f32.mrb[0].mxu0
        %v772 = vpop.f32.mrb[0].mxu0
        %v773 = vadd.f32 %v576, %v772
        %v774 = vpop.f32.mrb[0].mxu0
        %775 = vmatprep.mubr.bf16.mxu0 0
        %776 = vmatmul.mubr.bf16.gmra.mrb[0].mxu0 %v681
        %v777 = vpop.f32.mrb[0].mxu0
        %v778 = vadd.f32 %v576, %v777
        %v779 = vpop.f32.mrb[0].mxu0
        %v780 = vpop.f32.mrb[0].mxu0
        %v781 = vadd.f32 %v576, %v780
        %v782 = vpop.f32.mrb[0].mxu0
        %783 = vmatprep.mubr.bf16.mxu0 0
        %784 = vmatmul.mubr.bf16.gmra.mrb[0].mxu0 %v684
        %v785 = vpop.f32.mrb[0].mxu0
        %v786 = vadd.f32 %v576, %v785
        %v787 = vpop.f32.mrb[0].mxu0
        %v788 = vpop.f32.mrb[0].mxu0
        %v789 = vadd.f32 %v576, %v788
        %v790 = vpop.f32.mrb[0].mxu0
        %791 = vmatprep.mubr.bf16.mxu0 0
        %792 = vmatmul.mubr.bf16.gmra.mrb[0].mxu0 %v687
        %v793 = vpop.f32.mrb[0].mxu0
        %v794 = vadd.f32 %v576, %v793
        %v795 = vpop.f32.mrb[0].mxu0
        %v796 = vpop.f32.mrb[0].mxu0
        %v797 = vadd.f32 %v576, %v796
        %v798 = vpop.f32.mrb[0].mxu0
        %799 = vmatprep.mubr.bf16.mxu0 0
        %800 = vmatmul.mubr.bf16.gmra.mrb[0].mxu0 %v690
        %v801 = vpop.f32.mrb[0].mxu0
        %v802 = vadd.f32 %v576, %v801
        %v803 = vpop.f32.mrb[0].mxu0
        %v804 = vpop.f32.mrb[0].mxu0
        %v805 = vadd.f32 %v576, %v804
        %v806 = vpop.f32.mrb[0].mxu0
        %807 = vmatprep.mubr.bf16.mxu0 0
        %808 = vmatmul.mubr.bf16.gmra.mrb[0].mxu0 %v693
        %v809 = vpop.f32.mrb[0].mxu0
        %v810 = vadd.f32 %v576, %v809
        %v811 = vpop.f32.mrb[0].mxu0
        %v812 = vpop.f32.mrb[0].mxu0
        %v813 = vadd.f32 %v576, %v812
        %v814 = vpop.f32.mrb[0].mxu0
        %815 = vmatprep.mubr.bf16.mxu0 0
        %816 = vmatmul.mubr.bf16.gmra.mrb[0].mxu0 %v696
        %v817 = vpop.f32.mrb[0].mxu0
        %v818 = vadd.f32 %v576, %v817
        %v819 = vpop.f32.mrb[0].mxu0
        %v820 = vpop.f32.mrb[0].mxu0
        %v821 = vadd.f32 %v576, %v820
        %v822 = vpop.f32.mrb[0].mxu0
        %823 = vmatprep.mubr.bf16.mxu0 0
        %824 = vmatmul.mubr.bf16.gmra.mrb[0].mxu0 %v699
        %v825 = vpop.f32.mrb[0].mxu0
        %v826 = vadd.f32 %v576, %v825
        %v827 = vpop.f32.mrb[0].mxu0
        %v828 = vpop.f32.mrb[0].mxu0
        %v829 = vadd.f32 %v576, %v828
        %v830 = vpop.f32.mrb[0].mxu0
        %831 = vmatprep.mubr.bf16.mxu0 0
        %832 = vmatmul.mubr.bf16.gmra.mrb[0].mxu0 %v702
        %v833 = vpop.f32.mrb[0].mxu0
        %v834 = vadd.f32 %v576, %v833
        %v835 = vpop.f32.mrb[0].mxu0
        %v836 = vpop.f32.mrb[0].mxu0
        %v837 = vadd.f32 %v576, %v836
        %v838 = vpop.f32.mrb[0].mxu0
        %839 = vmatprep.mubr.bf16.mxu0 0
        %840 = vmatmul.mubr.bf16.gmra.mrb[0].mxu0 %v705
        %v841 = vpop.f32.mrb[0].mxu0
        %v842 = vadd.f32 %v576, %v841
        %v843 = vpop.f32.mrb[0].mxu0
        %v844 = vpop.f32.mrb[0].mxu0
        %v845 = vadd.f32 %v576, %v844
        %v846 = vpop.f32.mrb[0].mxu0
        %847 = vmatprep.mubr.bf16.mxu0 0
        %848 = vmatmul.mubr.bf16.gmra.mrb[0].mxu0 %v708
        %v849 = vpop.f32.mrb[0].mxu0
        %v850 = vadd.f32 %v576, %v849
        %v851 = vpop.f32.mrb[0].mxu0
        %v852 = vpop.f32.mrb[0].mxu0
        %v853 = vadd.f32 %v576, %v852
        %v854 = vpop.f32.mrb[0].mxu0
        %855 = vmatprep.mubr.bf16.mxu0 0
        %856 = vmatmul.mubr.bf16.gmra.mrb[0].mxu0 %v711
        %v857 = vpop.f32.mrb[0].mxu0
        %v858 = vadd.f32 %v576, %v857
        %v859 = vpop.f32.mrb[0].mxu0
        %v860 = vpop.f32.mrb[0].mxu0
        %v861 = vadd.f32 %v576, %v860
        %v862 = vpop.f32.mrb[0].mxu0
        %863 = vmatprep.mubr.bf16.mxu0 0
        %864 = vmatmul.mubr.bf16.gmra.mrb[0].mxu0 %v714
        %v865 = vpop.f32.mrb[0].mxu0
        %v866 = vadd.f32 %v576, %v865
        %v867 = vpop.f32.mrb[0].mxu0
        %v868 = vpop.f32.mrb[0].mxu0
        %v869 = vadd.f32 %v576, %v868
        %v870 = vpop.f32.mrb[0].mxu0
        %871 = vmatprep.mubr.bf16.mxu0 0
        %872 = vmatmul.mubr.bf16.gmra.mrb[0].mxu0 %v717
        %v873 = vpop.f32.mrb[0].mxu0
        %v874 = vadd.f32 %v576, %v873
        %v875 = vpop.f32.mrb[0].mxu0
        %v876 = vpop.f32.mrb[0].mxu0
        %v877 = vadd.f32 %v576, %v876
        %v878 = vpop.f32.mrb[0].mxu0
        %879 = vdwg.mxu0
        %s880 = scalar_lea.vmem %s422, 16 [#allocation3]
        %v881 = vld [vmem:[%s880] sm:$0xf]
        %v882 = vld [vmem:[%s880 + $0x4] sm:$0xf]
        %v883 = vld [vmem:[%s880 + $0x8] sm:$0xf]
        %v884 = vld [vmem:[%s880 + $0xc] sm:$0xf]
        %s885 = scalar_lea.vmem %s429, 1 [#allocation4]
        %v886 = vld [vmem:[%s885] sm:$0x1]
        %v888 = vlaneseq
        %v889 = vshrl.u32 %v888, 7
        %v890 = vsub.s32 0, %v889
        %v891 = vrot.slane %v886, %v890
        %v897 = vunpack.c.l.b16 %v881
        %v898 = vunpack.c.l.b16 %v882
        %v899 = vunpack.c.l.b16 %v883
        %v900 = vunpack.c.l.b16 %v884
        %v901 = vpack.c.b16 %v898, %v897
        %v902 = vpack.c.b16 %v900, %v899
        %905 = vmatprep.subr.bf16.mxu0 0
        %906 = vmatpush1.bf16.msra.mxu0 %v901
        %907 = vmatprep.subr.bf16.mxu0 0
        %908 = vmatpush1.bf16.msra.mxu0 %v902
        %909 = vmatprep.subr.bf16.mxu0 0
        %910 = vmatpush1.bf16.msra.mxu0 0
        %911 = vmatprep.subr.bf16.mxu0 0
        %912 = vmatpush1.bf16.msra.mxu0 0
        %913 = vmatprep.subr.bf16.mxu0 0
        %914 = vmatpush1.bf16.msra.mxu0 0
        %915 = vmatprep.subr.bf16.mxu0 0
        %916 = vmatpush1.bf16.msra.mxu0 0
        %917 = vmatprep.subr.bf16.mxu0 0
        %918 = vmatpush1.bf16.msra.mxu0 0
        %919 = vmatprep.subr.bf16.mxu0 0
        %920 = vmatpush1.bf16.msra.mxu0 0
        %921 = vmatprep.subr.bf16.mxu0 0
        %922 = vmatpush1.bf16.msra.mxu0 0
        %923 = vmatprep.subr.bf16.mxu0 0
        %924 = vmatpush1.bf16.msra.mxu0 0
        %925 = vmatprep.subr.bf16.mxu0 0
        %926 = vmatpush1.bf16.msra.mxu0 0
        %927 = vmatprep.subr.bf16.mxu0 0
        %928 = vmatpush1.bf16.msra.mxu0 0
        %929 = vmatprep.subr.bf16.mxu0 0
        %930 = vmatpush1.bf16.msra.mxu0 0
        %931 = vmatprep.subr.bf16.mxu0 0
        %932 = vmatpush1.bf16.msra.mxu0 0
        %933 = vmatprep.subr.bf16.mxu0 0
        %934 = vmatpush1.bf16.msra.mxu0 0
        %935 = vmatprep.subr.bf16.mxu0 0
        %936 = vmatpush1.bf16.msra.mxu0 0
        %937 = vmatprep.mubr.bf16.mxu0 0
        %938 = vmatmul.mubr.bf16.gmra.mrb[0].mxu0 %v672
        %v939 = vpop.f32.mrb[0].mxu0
        %v940 = vadd.f32 %v891, %v939
        %v941 = vpop.f32.mrb[0].mxu0
        %v942 = vpop.f32.mrb[0].mxu0
        %v943 = vadd.f32 %v891, %v942
        %v944 = vpop.f32.mrb[0].mxu0
        %945 = vmatprep.mubr.bf16.mxu0 0
        %946 = vmatmul.mubr.bf16.gmra.mrb[0].mxu0 %v675
        %v947 = vpop.f32.mrb[0].mxu0
        %v948 = vadd.f32 %v891, %v947
        %v949 = vpop.f32.mrb[0].mxu0
        %v950 = vpop.f32.mrb[0].mxu0
        %v951 = vadd.f32 %v891, %v950
        %v952 = vpop.f32.mrb[0].mxu0
        %953 = vmatprep.mubr.bf16.mxu0 0
        %954 = vmatmul.mubr.bf16.gmra.mrb[0].mxu0 %v678
        %v955 = vpop.f32.mrb[0].mxu0
        %v956 = vadd.f32 %v891, %v955
        %v957 = vpop.f32.mrb[0].mxu0
        %v958 = vpop.f32.mrb[0].mxu0
        %v959 = vadd.f32 %v891, %v958
        %v960 = vpop.f32.mrb[0].mxu0
        %961 = vmatprep.mubr.bf16.mxu0 0
        %962 = vmatmul.mubr.bf16.gmra.mrb[0].mxu0 %v681
        %v963 = vpop.f32.mrb[0].mxu0
        %v964 = vadd.f32 %v891, %v963
        %v965 = vpop.f32.mrb[0].mxu0
        %v966 = vpop.f32.mrb[0].mxu0
        %v967 = vadd.f32 %v891, %v966
        %v968 = vpop.f32.mrb[0].mxu0
        %969 = vmatprep.mubr.bf16.mxu0 0
        %970 = vmatmul.mubr.bf16.gmra.mrb[0].mxu0 %v684
        %v971 = vpop.f32.mrb[0].mxu0
        %v972 = vadd.f32 %v891, %v971
        %v973 = vpop.f32.mrb[0].mxu0
        %v974 = vpop.f32.mrb[0].mxu0
        %v975 = vadd.f32 %v891, %v974
        %v976 = vpop.f32.mrb[0].mxu0
        %977 = vmatprep.mubr.bf16.mxu0 0
        %978 = vmatmul.mubr.bf16.gmra.mrb[0].mxu0 %v687
        %v979 = vpop.f32.mrb[0].mxu0
        %v980 = vadd.f32 %v891, %v979
        %v981 = vpop.f32.mrb[0].mxu0
        %v982 = vpop.f32.mrb[0].mxu0
        %v983 = vadd.f32 %v891, %v982
        %v984 = vpop.f32.mrb[0].mxu0
        %985 = vmatprep.mubr.bf16.mxu0 0
        %986 = vmatmul.mubr.bf16.gmra.mrb[0].mxu0 %v690
        %v987 = vpop.f32.mrb[0].mxu0
        %v988 = vadd.f32 %v891, %v987
        %v989 = vpop.f32.mrb[0].mxu0
        %v990 = vpop.f32.mrb[0].mxu0
        %v991 = vadd.f32 %v891, %v990
        %v992 = vpop.f32.mrb[0].mxu0
        %993 = vmatprep.mubr.bf16.mxu0 0
        %994 = vmatmul.mubr.bf16.gmra.mrb[0].mxu0 %v693
        %v995 = vpop.f32.mrb[0].mxu0
        %v996 = vadd.f32 %v891, %v995
        %v997 = vpop.f32.mrb[0].mxu0
        %v998 = vpop.f32.mrb[0].mxu0
        %v999 = vadd.f32 %v891, %v998
        %v1000 = vpop.f32.mrb[0].mxu0
        %1001 = vmatprep.mubr.bf16.mxu0 0
        %1002 = vmatmul.mubr.bf16.gmra.mrb[0].mxu0 %v696
        %v1003 = vpop.f32.mrb[0].mxu0
        %v1004 = vadd.f32 %v891, %v1003
        %v1005 = vpop.f32.mrb[0].mxu0
        %v1006 = vpop.f32.mrb[0].mxu0
        %v1007 = vadd.f32 %v891, %v1006
        %v1008 = vpop.f32.mrb[0].mxu0
        %1009 = vmatprep.mubr.bf16.mxu0 0
        %1010 = vmatmul.mubr.bf16.gmra.mrb[0].mxu0 %v699
        %v1011 = vpop.f32.mrb[0].mxu0
        %v1012 = vadd.f32 %v891, %v1011
        %v1013 = vpop.f32.mrb[0].mxu0
        %v1014 = vpop.f32.mrb[0].mxu0
        %v1015 = vadd.f32 %v891, %v1014
        %v1016 = vpop.f32.mrb[0].mxu0
        %1017 = vmatprep.mubr.bf16.mxu0 0
        %1018 = vmatmul.mubr.bf16.gmra.mrb[0].mxu0 %v702
        %v1019 = vpop.f32.mrb[0].mxu0
        %v1020 = vadd.f32 %v891, %v1019
        %v1021 = vpop.f32.mrb[0].mxu0
        %v1022 = vpop.f32.mrb[0].mxu0
        %v1023 = vadd.f32 %v891, %v1022
        %v1024 = vpop.f32.mrb[0].mxu0
        %1025 = vmatprep.mubr.bf16.mxu0 0
        %1026 = vmatmul.mubr.bf16.gmra.mrb[0].mxu0 %v705
        %v1027 = vpop.f32.mrb[0].mxu0
        %v1028 = vadd.f32 %v891, %v1027
        %v1029 = vpop.f32.mrb[0].mxu0
        %v1030 = vpop.f32.mrb[0].mxu0
        %v1031 = vadd.f32 %v891, %v1030
        %v1032 = vpop.f32.mrb[0].mxu0
        %1033 = vmatprep.mubr.bf16.mxu0 0
        %1034 = vmatmul.mubr.bf16.gmra.mrb[0].mxu0 %v708
        %v1035 = vpop.f32.mrb[0].mxu0
        %v1036 = vadd.f32 %v891, %v1035
        %v1037 = vpop.f32.mrb[0].mxu0
        %v1038 = vpop.f32.mrb[0].mxu0
        %v1039 = vadd.f32 %v891, %v1038
        %v1040 = vpop.f32.mrb[0].mxu0
        %1041 = vmatprep.mubr.bf16.mxu0 0
        %1042 = vmatmul.mubr.bf16.gmra.mrb[0].mxu0 %v711
        %v1043 = vpop.f32.mrb[0].mxu0
        %v1044 = vadd.f32 %v891, %v1043
        %v1045 = vpop.f32.mrb[0].mxu0
        %v1046 = vpop.f32.mrb[0].mxu0
        %v1047 = vadd.f32 %v891, %v1046
        %v1048 = vpop.f32.mrb[0].mxu0
        %1049 = vmatprep.mubr.bf16.mxu0 0
        %1050 = vmatmul.mubr.bf16.gmra.mrb[0].mxu0 %v714
        %v1051 = vpop.f32.mrb[0].mxu0
        %v1052 = vadd.f32 %v891, %v1051
        %v1053 = vpop.f32.mrb[0].mxu0
        %v1054 = vpop.f32.mrb[0].mxu0
        %v1055 = vadd.f32 %v891, %v1054
        %v1056 = vpop.f32.mrb[0].mxu0
        %1057 = vmatprep.mubr.bf16.mxu0 0
        %1058 = vmatmul.mubr.bf16.gmra.mrb[0].mxu0 %v717
        %v1059 = vpop.f32.mrb[0].mxu0
        %v1060 = vadd.f32 %v891, %v1059
        %v1061 = vpop.f32.mrb[0].mxu0
        %v1062 = vpop.f32.mrb[0].mxu0
        %v1063 = vadd.f32 %v891, %v1062
        %v1064 = vpop.f32.mrb[0].mxu0
        %1065 = vdwg.mxu0
        %s1066 = scalar_lea.vmem %s422, 32 [#allocation3]
        %v1067 = vld [vmem:[%s1066] sm:$0xf]
        %v1068 = vld [vmem:[%s1066 + $0x4] sm:$0xf]
        %v1069 = vld [vmem:[%s1066 + $0x8] sm:$0xf]
        %v1070 = vld [vmem:[%s1066 + $0xc] sm:$0xf]
        %s1071 = scalar_lea.vmem %s429, 2 [#allocation4]
        %v1072 = vld [vmem:[%s1071] sm:$0x1]
        %v1074 = vlaneseq
        %v1075 = vshrl.u32 %v1074, 7
        %v1076 = vsub.s32 0, %v1075
        %v1077 = vrot.slane %v1072, %v1076
        %v1083 = vunpack.c.l.b16 %v1067
        %v1084 = vunpack.c.l.b16 %v1068
        %v1085 = vunpack.c.l.b16 %v1069
        %v1086 = vunpack.c.l.b16 %v1070
        %v1087 = vpack.c.b16 %v1084, %v1083
        %v1088 = vpack.c.b16 %v1086, %v1085
        %1091 = vmatprep.subr.bf16.mxu0 0
        %1092 = vmatpush1.bf16.msra.mxu0 %v1087
        %1093 = vmatprep.subr.bf16.mxu0 0
        %1094 = vmatpush1.bf16.msra.mxu0 %v1088
        %1095 = vmatprep.subr.bf16.mxu0 0
        %1096 = vmatpush1.bf16.msra.mxu0 0
        %1097 = vmatprep.subr.bf16.mxu0 0
        %1098 = vmatpush1.bf16.msra.mxu0 0
        %1099 = vmatprep.subr.bf16.mxu0 0
        %1100 = vmatpush1.bf16.msra.mxu0 0
        %1101 = vmatprep.subr.bf16.mxu0 0
        %1102 = vmatpush1.bf16.msra.mxu0 0
        %1103 = vmatprep.subr.bf16.mxu0 0
        %1104 = vmatpush1.bf16.msra.mxu0 0
        %1105 = vmatprep.subr.bf16.mxu0 0
        %1106 = vmatpush1.bf16.msra.mxu0 0
        %1107 = vmatprep.subr.bf16.mxu0 0
        %1108 = vmatpush1.bf16.msra.mxu0 0
        %1109 = vmatprep.subr.bf16.mxu0 0
        %1110 = vmatpush1.bf16.msra.mxu0 0
        %1111 = vmatprep.subr.bf16.mxu0 0
        %1112 = vmatpush1.bf16.msra.mxu0 0
        %1113 = vmatprep.subr.bf16.mxu0 0
        %1114 = vmatpush1.bf16.msra.mxu0 0
        %1115 = vmatprep.subr.bf16.mxu0 0
        %1116 = vmatpush1.bf16.msra.mxu0 0
        %1117 = vmatprep.subr.bf16.mxu0 0
        %1118 = vmatpush1.bf16.msra.mxu0 0
        %1119 = vmatprep.subr.bf16.mxu0 0
        %1120 = vmatpush1.bf16.msra.mxu0 0
        %1121 = vmatprep.subr.bf16.mxu0 0
        %1122 = vmatpush1.bf16.msra.mxu0 0
        %1123 = vmatprep.mubr.bf16.mxu0 0
        %1124 = vmatmul.mubr.bf16.gmra.mrb[0].mxu0 %v672
        %v1125 = vpop.f32.mrb[0].mxu0
        %v1126 = vadd.f32 %v1077, %v1125
        %v1127 = vpop.f32.mrb[0].mxu0
        %v1128 = vpop.f32.mrb[0].mxu0
        %v1129 = vadd.f32 %v1077, %v1128
        %v1130 = vpop.f32.mrb[0].mxu0
        %1131 = vmatprep.mubr.bf16.mxu0 0
        %1132 = vmatmul.mubr.bf16.gmra.mrb[0].mxu0 %v675
        %v1133 = vpop.f32.mrb[0].mxu0
        %v1134 = vadd.f32 %v1077, %v1133
        %v1135 = vpop.f32.mrb[0].mxu0
        %v1136 = vpop.f32.mrb[0].mxu0
        %v1137 = vadd.f32 %v1077, %v1136
        %v1138 = vpop.f32.mrb[0].mxu0
        %1139 = vmatprep.mubr.bf16.mxu0 0
        %1140 = vmatmul.mubr.bf16.gmra.mrb[0].mxu0 %v678
        %v1141 = vpop.f32.mrb[0].mxu0
        %v1142 = vadd.f32 %v1077, %v1141
        %v1143 = vpop.f32.mrb[0].mxu0
        %v1144 = vpop.f32.mrb[0].mxu0
        %v1145 = vadd.f32 %v1077, %v1144
        %v1146 = vpop.f32.mrb[0].mxu0
        %1147 = vmatprep.mubr.bf16.mxu0 0
        %1148 = vmatmul.mubr.bf16.gmra.mrb[0].mxu0 %v681
        %v1149 = vpop.f32.mrb[0].mxu0
        %v1150 = vadd.f32 %v1077, %v1149
        %v1151 = vpop.f32.mrb[0].mxu0
        %v1152 = vpop.f32.mrb[0].mxu0
        %v1153 = vadd.f32 %v1077, %v1152
        %v1154 = vpop.f32.mrb[0].mxu0
        %1155 = vmatprep.mubr.bf16.mxu0 0
        %1156 = vmatmul.mubr.bf16.gmra.mrb[0].mxu0 %v684
        %v1157 = vpop.f32.mrb[0].mxu0
        %v1158 = vadd.f32 %v1077, %v1157
        %v1159 = vpop.f32.mrb[0].mxu0
        %v1160 = vpop.f32.mrb[0].mxu0
        %v1161 = vadd.f32 %v1077, %v1160
        %v1162 = vpop.f32.mrb[0].mxu0
        %1163 = vmatprep.mubr.bf16.mxu0 0
        %1164 = vmatmul.mubr.bf16.gmra.mrb[0].mxu0 %v687
        %v1165 = vpop.f32.mrb[0].mxu0
        %v1166 = vadd.f32 %v1077, %v1165
        %v1167 = vpop.f32.mrb[0].mxu0
        %v1168 = vpop.f32.mrb[0].mxu0
        %v1169 = vadd.f32 %v1077, %v1168
        %v1170 = vpop.f32.mrb[0].mxu0
        %1171 = vmatprep.mubr.bf16.mxu0 0
        %1172 = vmatmul.mubr.bf16.gmra.mrb[0].mxu0 %v690
        %v1173 = vpop.f32.mrb[0].mxu0
        %v1174 = vadd.f32 %v1077, %v1173
        %v1175 = vpop.f32.mrb[0].mxu0
        %v1176 = vpop.f32.mrb[0].mxu0
        %v1177 = vadd.f32 %v1077, %v1176
        %v1178 = vpop.f32.mrb[0].mxu0
        %1179 = vmatprep.mubr.bf16.mxu0 0
        %1180 = vmatmul.mubr.bf16.gmra.mrb[0].mxu0 %v693
        %v1181 = vpop.f32.mrb[0].mxu0
        %v1182 = vadd.f32 %v1077, %v1181
        %v1183 = vpop.f32.mrb[0].mxu0
        %v1184 = vpop.f32.mrb[0].mxu0
        %v1185 = vadd.f32 %v1077, %v1184
        %v1186 = vpop.f32.mrb[0].mxu0
        %1187 = vmatprep.mubr.bf16.mxu0 0
        %1188 = vmatmul.mubr.bf16.gmra.mrb[0].mxu0 %v696
        %v1189 = vpop.f32.mrb[0].mxu0
        %v1190 = vadd.f32 %v1077, %v1189
        %v1191 = vpop.f32.mrb[0].mxu0
        %v1192 = vpop.f32.mrb[0].mxu0
        %v1193 = vadd.f32 %v1077, %v1192
        %v1194 = vpop.f32.mrb[0].mxu0
        %1195 = vmatprep.mubr.bf16.mxu0 0
        %1196 = vmatmul.mubr.bf16.gmra.mrb[0].mxu0 %v699
        %v1197 = vpop.f32.mrb[0].mxu0
        %v1198 = vadd.f32 %v1077, %v1197
        %v1199 = vpop.f32.mrb[0].mxu0
        %v1200 = vpop.f32.mrb[0].mxu0
        %v1201 = vadd.f32 %v1077, %v1200
        %v1202 = vpop.f32.mrb[0].mxu0
        %1203 = vmatprep.mubr.bf16.mxu0 0
        %1204 = vmatmul.mubr.bf16.gmra.mrb[0].mxu0 %v702
        %v1205 = vpop.f32.mrb[0].mxu0
        %v1206 = vadd.f32 %v1077, %v1205
        %v1207 = vpop.f32.mrb[0].mxu0
        %v1208 = vpop.f32.mrb[0].mxu0
        %v1209 = vadd.f32 %v1077, %v1208
        %v1210 = vpop.f32.mrb[0].mxu0
        %1211 = vmatprep.mubr.bf16.mxu0 0
        %1212 = vmatmul.mubr.bf16.gmra.mrb[0].mxu0 %v705
        %v1213 = vpop.f32.mrb[0].mxu0
        %v1214 = vadd.f32 %v1077, %v1213
        %v1215 = vpop.f32.mrb[0].mxu0
        %v1216 = vpop.f32.mrb[0].mxu0
        %v1217 = vadd.f32 %v1077, %v1216
        %v1218 = vpop.f32.mrb[0].mxu0
        %1219 = vmatprep.mubr.bf16.mxu0 0
        %1220 = vmatmul.mubr.bf16.gmra.mrb[0].mxu0 %v708
        %v1221 = vpop.f32.mrb[0].mxu0
        %v1222 = vadd.f32 %v1077, %v1221
        %v1223 = vpop.f32.mrb[0].mxu0
        %v1224 = vpop.f32.mrb[0].mxu0
        %v1225 = vadd.f32 %v1077, %v1224
        %v1226 = vpop.f32.mrb[0].mxu0
        %1227 = vmatprep.mubr.bf16.mxu0 0
        %1228 = vmatmul.mubr.bf16.gmra.mrb[0].mxu0 %v711
        %v1229 = vpop.f32.mrb[0].mxu0
        %v1230 = vadd.f32 %v1077, %v1229
        %v1231 = vpop.f32.mrb[0].mxu0
        %v1232 = vpop.f32.mrb[0].mxu0
        %v1233 = vadd.f32 %v1077, %v1232
        %v1234 = vpop.f32.mrb[0].mxu0
        %1235 = vmatprep.mubr.bf16.mxu0 0
        %1236 = vmatmul.mubr.bf16.gmra.mrb[0].mxu0 %v714
        %v1237 = vpop.f32.mrb[0].mxu0
        %v1238 = vadd.f32 %v1077, %v1237
        %v1239 = vpop.f32.mrb[0].mxu0
        %v1240 = vpop.f32.mrb[0].mxu0
        %v1241 = vadd.f32 %v1077, %v1240
        %v1242 = vpop.f32.mrb[0].mxu0
        %1243 = vmatprep.mubr.bf16.mxu0 0
        %1244 = vmatmul.mubr.bf16.gmra.mrb[0].mxu0 %v717
        %v1245 = vpop.f32.mrb[0].mxu0
        %v1246 = vadd.f32 %v1077, %v1245
        %v1247 = vpop.f32.mrb[0].mxu0
        %v1248 = vpop.f32.mrb[0].mxu0
        %v1249 = vadd.f32 %v1077, %v1248
        %v1250 = vpop.f32.mrb[0].mxu0
        %1251 = vdwg.mxu0
        %v1252 = vpack.c.bf16 %v757, %v754
        %v1253 = vpack.c.bf16 %v765, %v762
        %v1254 = vpack.c.bf16 %v773, %v770
        %v1255 = vpack.c.bf16 %v781, %v778
        %v1256 = vpack.c.bf16 %v789, %v786
        %v1257 = vpack.c.bf16 %v797, %v794
        %v1258 = vpack.c.bf16 %v805, %v802
        %v1259 = vpack.c.bf16 %v813, %v810
        %v1260 = vpack.c.bf16 %v821, %v818
        %v1261 = vpack.c.bf16 %v829, %v826
        %v1262 = vpack.c.bf16 %v837, %v834
        %v1263 = vpack.c.bf16 %v845, %v842
        %v1264 = vpack.c.bf16 %v853, %v850
        %v1265 = vpack.c.bf16 %v861, %v858
        %v1266 = vpack.c.bf16 %v869, %v866
        %v1267 = vpack.c.bf16 %v877, %v874
        %v1268 = vpack.c.bf16 %v943, %v940
        %v1269 = vpack.c.bf16 %v951, %v948
        %v1270 = vpack.c.bf16 %v959, %v956
        %v1271 = vpack.c.bf16 %v967, %v964
        %v1272 = vpack.c.bf16 %v975, %v972
        %v1273 = vpack.c.bf16 %v983, %v980
        %v1274 = vpack.c.bf16 %v991, %v988
        %v1275 = vpack.c.bf16 %v999, %v996
        %v1276 = vpack.c.bf16 %v1007, %v1004
        %v1277 = vpack.c.bf16 %v1015, %v1012
        %v1278 = vpack.c.bf16 %v1023, %v1020
        %v1279 = vpack.c.bf16 %v1031, %v1028
        %v1280 = vpack.c.bf16 %v1039, %v1036
        %v1281 = vpack.c.bf16 %v1047, %v1044
        %v1282 = vpack.c.bf16 %v1055, %v1052
        %v1283 = vpack.c.bf16 %v1063, %v1060
        %v1284 = vpack.c.bf16 %v1129, %v1126
        %v1285 = vpack.c.bf16 %v1137, %v1134
        %v1286 = vpack.c.bf16 %v1145, %v1142
        %v1287 = vpack.c.bf16 %v1153, %v1150
        %v1288 = vpack.c.bf16 %v1161, %v1158
        %v1289 = vpack.c.bf16 %v1169, %v1166
        %v1290 = vpack.c.bf16 %v1177, %v1174
        %v1291 = vpack.c.bf16 %v1185, %v1182
        %v1292 = vpack.c.bf16 %v1193, %v1190
        %v1293 = vpack.c.bf16 %v1201, %v1198
        %v1294 = vpack.c.bf16 %v1209, %v1206
        %v1295 = vpack.c.bf16 %v1217, %v1214
        %v1296 = vpack.c.bf16 %v1225, %v1222
        %v1297 = vpack.c.bf16 %v1233, %v1230
        %v1298 = vpack.c.bf16 %v1241, %v1238
        %v1299 = vpack.c.bf16 %v1249, %v1246
        %v1300 = vld [vmem:[%s486] sm:$0xff]
        %v1301 = vld [vmem:[%s486 + $0x8] sm:$0xff]
        %vm1302 = vcmask 64512
        %v1304 = vsel %vm1302, %v1252, 0
        %v1307 = vsel %vm1302, %v1268, 0
        %1309 = vmatprep.subr.bf16.mxu0 0
        %1310 = vmatpush1.bf16.xpose.msra.mxu0 %v1307
        %1311 = vmatprep.subr.bf16.mxu0 0
        %1312 = vmatpush1.bf16.xpose.msra.mxu0 0
        %1313 = vmatprep.subr.bf16.mxu0 0
        %1314 = vmatpush1.bf16.xpose.msra.mxu0 0
        %1315 = vmatprep.subr.bf16.mxu0 0
        %1316 = vmatpush1.bf16.xpose.msra.mxu0 0
        %1317 = vmatprep.subr.bf16.mxu0 0
        %1318 = vmatpush1.bf16.xpose.msra.mxu0 0
        %1319 = vmatprep.subr.bf16.mxu0 0
        %1320 = vmatpush1.bf16.xpose.msra.mxu0 0
        %1321 = vmatprep.subr.bf16.mxu0 0
        %1322 = vmatpush1.bf16.xpose.msra.mxu0 0
        %1323 = vmatprep.subr.bf16.mxu0 0
        %1324 = vmatpush1.bf16.xpose.msra.mxu0 0
        %1325 = vmatprep.subr.bf16.mxu0 0
        %1326 = vmatpush1.bf16.xpose.msra.mxu0 0
        %1327 = vmatprep.subr.bf16.mxu0 0
        %1328 = vmatpush1.bf16.xpose.msra.mxu0 0
        %1329 = vmatprep.subr.bf16.mxu0 0
        %1330 = vmatpush1.bf16.xpose.msra.mxu0 0
        %1331 = vmatprep.subr.bf16.mxu0 0
        %1332 = vmatpush1.bf16.xpose.msra.mxu0 0
        %1333 = vmatprep.subr.bf16.mxu0 0
        %1334 = vmatpush1.bf16.xpose.msra.mxu0 0
        %1335 = vmatprep.subr.bf16.mxu0 0
        %1336 = vmatpush1.bf16.xpose.msra.mxu0 0
        %1337 = vmatprep.subr.bf16.mxu0 0
        %1338 = vmatpush1.bf16.xpose.msra.mxu0 0
        %1339 = vmatprep.subr.bf16.mxu0 0
        %1340 = vmatpush1.bf16.xpose.msra.mxu0 0
        %1341 = vmatprep.mubr.bf16.mxu0 0
        %1342 = vmatmul.mubr.bf16.gmra.mrb[0].mxu0 %v1304
        %v1343 = vpop.f32.mrb[0].mxu0
        %v1344 = vadd.f32 %v1300, %v1343
        %v1345 = vpop.f32.mrb[0].mxu0
        %v1346 = vpop.f32.mrb[0].mxu0
        %v1347 = vadd.f32 %v1301, %v1346
        %v1348 = vpop.f32.mrb[0].mxu0
        %1349 = vdwg.mxu0
        %v1351 = vsel %vm1302, %v1253, 0
        %v1354 = vsel %vm1302, %v1269, 0
        %1356 = vmatprep.subr.bf16.mxu0 0
        %1357 = vmatpush1.bf16.xpose.msra.mxu0 %v1354
        %1358 = vmatprep.subr.bf16.mxu0 0
        %1359 = vmatpush1.bf16.xpose.msra.mxu0 0
        %1360 = vmatprep.subr.bf16.mxu0 0
        %1361 = vmatpush1.bf16.xpose.msra.mxu0 0
        %1362 = vmatprep.subr.bf16.mxu0 0
        %1363 = vmatpush1.bf16.xpose.msra.mxu0 0
        %1364 = vmatprep.subr.bf16.mxu0 0
        %1365 = vmatpush1.bf16.xpose.msra.mxu0 0
        %1366 = vmatprep.subr.bf16.mxu0 0
        %1367 = vmatpush1.bf16.xpose.msra.mxu0 0
        %1368 = vmatprep.subr.bf16.mxu0 0
        %1369 = vmatpush1.bf16.xpose.msra.mxu0 0
        %1370 = vmatprep.subr.bf16.mxu0 0
        %1371 = vmatpush1.bf16.xpose.msra.mxu0 0
        %1372 = vmatprep.subr.bf16.mxu0 0
        %1373 = vmatpush1.bf16.xpose.msra.mxu0 0
        %1374 = vmatprep.subr.bf16.mxu0 0
        %1375 = vmatpush1.bf16.xpose.msra.mxu0 0
        %1376 = vmatprep.subr.bf16.mxu0 0
        %1377 = vmatpush1.bf16.xpose.msra.mxu0 0
        %1378 = vmatprep.subr.bf16.mxu0 0
        %1379 = vmatpush1.bf16.xpose.msra.mxu0 0
        %1380 = vmatprep.subr.bf16.mxu0 0
        %1381 = vmatpush1.bf16.xpose.msra.mxu0 0
        %1382 = vmatprep.subr.bf16.mxu0 0
        %1383 = vmatpush1.bf16.xpose.msra.mxu0 0
        %1384 = vmatprep.subr.bf16.mxu0 0
        %1385 = vmatpush1.bf16.xpose.msra.mxu0 0
        %1386 = vmatprep.subr.bf16.mxu0 0
        %1387 = vmatpush1.bf16.xpose.msra.mxu0 0
        %1388 = vmatprep.mubr.bf16.mxu0 0
        %1389 = vmatmul.mubr.bf16.gmra.mrb[0].mxu0 %v1351
        %v1390 = vpop.f32.mrb[0].mxu0
        %v1391 = vadd.f32 %v1300, %v1390
        %v1392 = vpop.f32.mrb[0].mxu0
        %v1393 = vpop.f32.mrb[0].mxu0
        %v1394 = vadd.f32 %v1301, %v1393
        %v1395 = vpop.f32.mrb[0].mxu0
        %1396 = vdwg.mxu0
        %v1398 = vsel %vm1302, %v1254, 0
        %v1401 = vsel %vm1302, %v1270, 0
        %1403 = vmatprep.subr.bf16.mxu0 0
        %1404 = vmatpush1.bf16.xpose.msra.mxu0 %v1401
        %1405 = vmatprep.subr.bf16.mxu0 0
        %1406 = vmatpush1.bf16.xpose.msra.mxu0 0
        %1407 = vmatprep.subr.bf16.mxu0 0
        %1408 = vmatpush1.bf16.xpose.msra.mxu0 0
        %1409 = vmatprep.subr.bf16.mxu0 0
        %1410 = vmatpush1.bf16.xpose.msra.mxu0 0
        %1411 = vmatprep.subr.bf16.mxu0 0
        %1412 = vmatpush1.bf16.xpose.msra.mxu0 0
        %1413 = vmatprep.subr.bf16.mxu0 0
        %1414 = vmatpush1.bf16.xpose.msra.mxu0 0
        %1415 = vmatprep.subr.bf16.mxu0 0
        %1416 = vmatpush1.bf16.xpose.msra.mxu0 0
        %1417 = vmatprep.subr.bf16.mxu0 0
        %1418 = vmatpush1.bf16.xpose.msra.mxu0 0
        %1419 = vmatprep.subr.bf16.mxu0 0
        %1420 = vmatpush1.bf16.xpose.msra.mxu0 0
        %1421 = vmatprep.subr.bf16.mxu0 0
        %1422 = vmatpush1.bf16.xpose.msra.mxu0 0
        %1423 = vmatprep.subr.bf16.mxu0 0
        %1424 = vmatpush1.bf16.xpose.msra.mxu0 0
        %1425 = vmatprep.subr.bf16.mxu0 0
        %1426 = vmatpush1.bf16.xpose.msra.mxu0 0
        %1427 = vmatprep.subr.bf16.mxu0 0
        %1428 = vmatpush1.bf16.xpose.msra.mxu0 0
        %1429 = vmatprep.subr.bf16.mxu0 0
        %1430 = vmatpush1.bf16.xpose.msra.mxu0 0
        %1431 = vmatprep.subr.bf16.mxu0 0
        %1432 = vmatpush1.bf16.xpose.msra.mxu0 0
        %1433 = vmatprep.subr.bf16.mxu0 0
        %1434 = vmatpush1.bf16.xpose.msra.mxu0 0
        %1435 = vmatprep.mubr.bf16.mxu0 0
        %1436 = vmatmul.mubr.bf16.gmra.mrb[0].mxu0 %v1398
        %v1437 = vpop.f32.mrb[0].mxu0
        %v1438 = vadd.f32 %v1300, %v1437
        %v1439 = vpop.f32.mrb[0].mxu0
        %v1440 = vpop.f32.mrb[0].mxu0
        %v1441 = vadd.f32 %v1301, %v1440
        %v1442 = vpop.f32.mrb[0].mxu0
        %1443 = vdwg.mxu0
        %v1445 = vsel %vm1302, %v1255, 0
        %v1448 = vsel %vm1302, %v1271, 0
        %1450 = vmatprep.subr.bf16.mxu0 0
        %1451 = vmatpush1.bf16.xpose.msra.mxu0 %v1448
        %1452 = vmatprep.subr.bf16.mxu0 0
        %1453 = vmatpush1.bf16.xpose.msra.mxu0 0
        %1454 = vmatprep.subr.bf16.mxu0 0
        %1455 = vmatpush1.bf16.xpose.msra.mxu0 0
        %1456 = vmatprep.subr.bf16.mxu0 0
        %1457 = vmatpush1.bf16.xpose.msra.mxu0 0
        %1458 = vmatprep.subr.bf16.mxu0 0
        %1459 = vmatpush1.bf16.xpose.msra.mxu0 0
        %1460 = vmatprep.subr.bf16.mxu0 0
        %1461 = vmatpush1.bf16.xpose.msra.mxu0 0
        %1462 = vmatprep.subr.bf16.mxu0 0
        %1463 = vmatpush1.bf16.xpose.msra.mxu0 0
        %1464 = vmatprep.subr.bf16.mxu0 0
        %1465 = vmatpush1.bf16.xpose.msra.mxu0 0
        %1466 = vmatprep.subr.bf16.mxu0 0
        %1467 = vmatpush1.bf16.xpose.msra.mxu0 0
        %1468 = vmatprep.subr.bf16.mxu0 0
        %1469 = vmatpush1.bf16.xpose.msra.mxu0 0
        %1470 = vmatprep.subr.bf16.mxu0 0
        %1471 = vmatpush1.bf16.xpose.msra.mxu0 0
        %1472 = vmatprep.subr.bf16.mxu0 0
        %1473 = vmatpush1.bf16.xpose.msra.mxu0 0
        %1474 = vmatprep.subr.bf16.mxu0 0
        %1475 = vmatpush1.bf16.xpose.msra.mxu0 0
        %1476 = vmatprep.subr.bf16.mxu0 0
        %1477 = vmatpush1.bf16.xpose.msra.mxu0 0
        %1478 = vmatprep.subr.bf16.mxu0 0
        %1479 = vmatpush1.bf16.xpose.msra.mxu0 0
        %1480 = vmatprep.subr.bf16.mxu0 0
        %1481 = vmatpush1.bf16.xpose.msra.mxu0 0
        %1482 = vmatprep.mubr.bf16.mxu0 0
        %1483 = vmatmul.mubr.bf16.gmra.mrb[0].mxu0 %v1445
        %v1484 = vpop.f32.mrb[0].mxu0
        %v1485 = vadd.f32 %v1300, %v1484
        %v1486 = vpop.f32.mrb[0].mxu0
        %v1487 = vpop.f32.mrb[0].mxu0
        %v1488 = vadd.f32 %v1301, %v1487
        %v1489 = vpop.f32.mrb[0].mxu0
        %1490 = vdwg.mxu0
        %v1492 = vsel %vm1302, %v1256, 0
        %v1495 = vsel %vm1302, %v1272, 0
        %1497 = vmatprep.subr.bf16.mxu0 0
        %1498 = vmatpush1.bf16.xpose.msra.mxu0 %v1495
        %1499 = vmatprep.subr.bf16.mxu0 0
        %1500 = vmatpush1.bf16.xpose.msra.mxu0 0
        %1501 = vmatprep.subr.bf16.mxu0 0
        %1502 = vmatpush1.bf16.xpose.msra.mxu0 0
        %1503 = vmatprep.subr.bf16.mxu0 0
        %1504 = vmatpush1.bf16.xpose.msra.mxu0 0
        %1505 = vmatprep.subr.bf16.mxu0 0
        %1506 = vmatpush1.bf16.xpose.msra.mxu0 0
        %1507 = vmatprep.subr.bf16.mxu0 0
        %1508 = vmatpush1.bf16.xpose.msra.mxu0 0
        %1509 = vmatprep.subr.bf16.mxu0 0
        %1510 = vmatpush1.bf16.xpose.msra.mxu0 0
        %1511 = vmatprep.subr.bf16.mxu0 0
        %1512 = vmatpush1.bf16.xpose.msra.mxu0 0
        %1513 = vmatprep.subr.bf16.mxu0 0
        %1514 = vmatpush1.bf16.xpose.msra.mxu0 0
        %1515 = vmatprep.subr.bf16.mxu0 0
        %1516 = vmatpush1.bf16.xpose.msra.mxu0 0
        %1517 = vmatprep.subr.bf16.mxu0 0
        %1518 = vmatpush1.bf16.xpose.msra.mxu0 0
        %1519 = vmatprep.subr.bf16.mxu0 0
        %1520 = vmatpush1.bf16.xpose.msra.mxu0 0
        %1521 = vmatprep.subr.bf16.mxu0 0
        %1522 = vmatpush1.bf16.xpose.msra.mxu0 0
        %1523 = vmatprep.subr.bf16.mxu0 0
        %1524 = vmatpush1.bf16.xpose.msra.mxu0 0
        %1525 = vmatprep.subr.bf16.mxu0 0
        %1526 = vmatpush1.bf16.xpose.msra.mxu0 0
        %1527 = vmatprep.subr.bf16.mxu0 0
        %1528 = vmatpush1.bf16.xpose.msra.mxu0 0
        %1529 = vmatprep.mubr.bf16.mxu0 0
        %1530 = vmatmul.mubr.bf16.gmra.mrb[0].mxu0 %v1492
        %v1531 = vpop.f32.mrb[0].mxu0
        %v1532 = vadd.f32 %v1300, %v1531
        %v1533 = vpop.f32.mrb[0].mxu0
        %v1534 = vpop.f32.mrb[0].mxu0
        %v1535 = vadd.f32 %v1301, %v1534
        %v1536 = vpop.f32.mrb[0].mxu0
        %1537 = vdwg.mxu0
        %v1539 = vsel %vm1302, %v1257, 0
        %v1542 = vsel %vm1302, %v1273, 0
        %1544 = vmatprep.subr.bf16.mxu0 0
        %1545 = vmatpush1.bf16.xpose.msra.mxu0 %v1542
        %1546 = vmatprep.subr.bf16.mxu0 0
        %1547 = vmatpush1.bf16.xpose.msra.mxu0 0
        %1548 = vmatprep.subr.bf16.mxu0 0
        %1549 = vmatpush1.bf16.xpose.msra.mxu0 0
        %1550 = vmatprep.subr.bf16.mxu0 0
        %1551 = vmatpush1.bf16.xpose.msra.mxu0 0
        %1552 = vmatprep.subr.bf16.mxu0 0
        %1553 = vmatpush1.bf16.xpose.msra.mxu0 0
        %1554 = vmatprep.subr.bf16.mxu0 0
        %1555 = vmatpush1.bf16.xpose.msra.mxu0 0
        %1556 = vmatprep.subr.bf16.mxu0 0
        %1557 = vmatpush1.bf16.xpose.msra.mxu0 0
        %1558 = vmatprep.subr.bf16.mxu0 0
        %1559 = vmatpush1.bf16.xpose.msra.mxu0 0
        %1560 = vmatprep.subr.bf16.mxu0 0
        %1561 = vmatpush1.bf16.xpose.msra.mxu0 0
        %1562 = vmatprep.subr.bf16.mxu0 0
        %1563 = vmatpush1.bf16.xpose.msra.mxu0 0
        %1564 = vmatprep.subr.bf16.mxu0 0
        %1565 = vmatpush1.bf16.xpose.msra.mxu0 0
        %1566 = vmatprep.subr.bf16.mxu0 0
        %1567 = vmatpush1.bf16.xpose.msra.mxu0 0
        %1568 = vmatprep.subr.bf16.mxu0 0
        %1569 = vmatpush1.bf16.xpose.msra.mxu0 0
        %1570 = vmatprep.subr.bf16.mxu0 0
        %1571 = vmatpush1.bf16.xpose.msra.mxu0 0
        %1572 = vmatprep.subr.bf16.mxu0 0
        %1573 = vmatpush1.bf16.xpose.msra.mxu0 0
        %1574 = vmatprep.subr.bf16.mxu0 0
        %1575 = vmatpush1.bf16.xpose.msra.mxu0 0
        %1576 = vmatprep.mubr.bf16.mxu0 0
        %1577 = vmatmul.mubr.bf16.gmra.mrb[0].mxu0 %v1539
        %v1578 = vpop.f32.mrb[0].mxu0
        %v1579 = vadd.f32 %v1300, %v1578
        %v1580 = vpop.f32.mrb[0].mxu0
        %v1581 = vpop.f32.mrb[0].mxu0
        %v1582 = vadd.f32 %v1301, %v1581
        %v1583 = vpop.f32.mrb[0].mxu0
        %1584 = vdwg.mxu0
        %v1586 = vsel %vm1302, %v1258, 0
        %v1589 = vsel %vm1302, %v1274, 0
        %1591 = vmatprep.subr.bf16.mxu0 0
        %1592 = vmatpush1.bf16.xpose.msra.mxu0 %v1589
        %1593 = vmatprep.subr.bf16.mxu0 0
        %1594 = vmatpush1.bf16.xpose.msra.mxu0 0
        %1595 = vmatprep.subr.bf16.mxu0 0
        %1596 = vmatpush1.bf16.xpose.msra.mxu0 0
        %1597 = vmatprep.subr.bf16.mxu0 0
        %1598 = vmatpush1.bf16.xpose.msra.mxu0 0
        %1599 = vmatprep.subr.bf16.mxu0 0
        %1600 = vmatpush1.bf16.xpose.msra.mxu0 0
        %1601 = vmatprep.subr.bf16.mxu0 0
        %1602 = vmatpush1.bf16.xpose.msra.mxu0 0
        %1603 = vmatprep.subr.bf16.mxu0 0
        %1604 = vmatpush1.bf16.xpose.msra.mxu0 0
        %1605 = vmatprep.subr.bf16.mxu0 0
        %1606 = vmatpush1.bf16.xpose.msra.mxu0 0
        %1607 = vmatprep.subr.bf16.mxu0 0
        %1608 = vmatpush1.bf16.xpose.msra.mxu0 0
        %1609 = vmatprep.subr.bf16.mxu0 0
        %1610 = vmatpush1.bf16.xpose.msra.mxu0 0
        %1611 = vmatprep.subr.bf16.mxu0 0
        %1612 = vmatpush1.bf16.xpose.msra.mxu0 0
        %1613 = vmatprep.subr.bf16.mxu0 0
        %1614 = vmatpush1.bf16.xpose.msra.mxu0 0
        %1615 = vmatprep.subr.bf16.mxu0 0
        %1616 = vmatpush1.bf16.xpose.msra.mxu0 0
        %1617 = vmatprep.subr.bf16.mxu0 0
        %1618 = vmatpush1.bf16.xpose.msra.mxu0 0
        %1619 = vmatprep.subr.bf16.mxu0 0
        %1620 = vmatpush1.bf16.xpose.msra.mxu0 0
        %1621 = vmatprep.subr.bf16.mxu0 0
        %1622 = vmatpush1.bf16.xpose.msra.mxu0 0
        %1623 = vmatprep.mubr.bf16.mxu0 0
        %1624 = vmatmul.mubr.bf16.gmra.mrb[0].mxu0 %v1586
        %v1625 = vpop.f32.mrb[0].mxu0
        %v1626 = vadd.f32 %v1300, %v1625
        %v1627 = vpop.f32.mrb[0].mxu0
        %v1628 = vpop.f32.mrb[0].mxu0
        %v1629 = vadd.f32 %v1301, %v1628
        %v1630 = vpop.f32.mrb[0].mxu0
        %1631 = vdwg.mxu0
        %v1633 = vsel %vm1302, %v1259, 0
        %v1636 = vsel %vm1302, %v1275, 0
        %1638 = vmatprep.subr.bf16.mxu0 0
        %1639 = vmatpush1.bf16.xpose.msra.mxu0 %v1636
        %1640 = vmatprep.subr.bf16.mxu0 0
        %1641 = vmatpush1.bf16.xpose.msra.mxu0 0
        %1642 = vmatprep.subr.bf16.mxu0 0
        %1643 = vmatpush1.bf16.xpose.msra.mxu0 0
        %1644 = vmatprep.subr.bf16.mxu0 0
        %1645 = vmatpush1.bf16.xpose.msra.mxu0 0
        %1646 = vmatprep.subr.bf16.mxu0 0
        %1647 = vmatpush1.bf16.xpose.msra.mxu0 0
        %1648 = vmatprep.subr.bf16.mxu0 0
        %1649 = vmatpush1.bf16.xpose.msra.mxu0 0
        %1650 = vmatprep.subr.bf16.mxu0 0
        %1651 = vmatpush1.bf16.xpose.msra.mxu0 0
        %1652 = vmatprep.subr.bf16.mxu0 0
        %1653 = vmatpush1.bf16.xpose.msra.mxu0 0
        %1654 = vmatprep.subr.bf16.mxu0 0
        %1655 = vmatpush1.bf16.xpose.msra.mxu0 0
        %1656 = vmatprep.subr.bf16.mxu0 0
        %1657 = vmatpush1.bf16.xpose.msra.mxu0 0
        %1658 = vmatprep.subr.bf16.mxu0 0
        %1659 = vmatpush1.bf16.xpose.msra.mxu0 0
        %1660 = vmatprep.subr.bf16.mxu0 0
        %1661 = vmatpush1.bf16.xpose.msra.mxu0 0
        %1662 = vmatprep.subr.bf16.mxu0 0
        %1663 = vmatpush1.bf16.xpose.msra.mxu0 0
        %1664 = vmatprep.subr.bf16.mxu0 0
        %1665 = vmatpush1.bf16.xpose.msra.mxu0 0
        %1666 = vmatprep.subr.bf16.mxu0 0
        %1667 = vmatpush1.bf16.xpose.msra.mxu0 0
        %1668 = vmatprep.subr.bf16.mxu0 0
        %1669 = vmatpush1.bf16.xpose.msra.mxu0 0
        %1670 = vmatprep.mubr.bf16.mxu0 0
        %1671 = vmatmul.mubr.bf16.gmra.mrb[0].mxu0 %v1633
        %v1672 = vpop.f32.mrb[0].mxu0
        %v1673 = vadd.f32 %v1300, %v1672
        %v1674 = vpop.f32.mrb[0].mxu0
        %v1675 = vpop.f32.mrb[0].mxu0
        %v1676 = vadd.f32 %v1301, %v1675
        %v1677 = vpop.f32.mrb[0].mxu0
        %1678 = vdwg.mxu0
        %v1680 = vsel %vm1302, %v1260, 0
        %v1683 = vsel %vm1302, %v1276, 0
        %1685 = vmatprep.subr.bf16.mxu0 0
        %1686 = vmatpush1.bf16.xpose.msra.mxu0 %v1683
        %1687 = vmatprep.subr.bf16.mxu0 0
        %1688 = vmatpush1.bf16.xpose.msra.mxu0 0
        %1689 = vmatprep.subr.bf16.mxu0 0
        %1690 = vmatpush1.bf16.xpose.msra.mxu0 0
        %1691 = vmatprep.subr.bf16.mxu0 0
        %1692 = vmatpush1.bf16.xpose.msra.mxu0 0
        %1693 = vmatprep.subr.bf16.mxu0 0
        %1694 = vmatpush1.bf16.xpose.msra.mxu0 0
        %1695 = vmatprep.subr.bf16.mxu0 0
        %1696 = vmatpush1.bf16.xpose.msra.mxu0 0
        %1697 = vmatprep.subr.bf16.mxu0 0
        %1698 = vmatpush1.bf16.xpose.msra.mxu0 0
        %1699 = vmatprep.subr.bf16.mxu0 0
        %1700 = vmatpush1.bf16.xpose.msra.mxu0 0
        %1701 = vmatprep.subr.bf16.mxu0 0
        %1702 = vmatpush1.bf16.xpose.msra.mxu0 0
        %1703 = vmatprep.subr.bf16.mxu0 0
        %1704 = vmatpush1.bf16.xpose.msra.mxu0 0
        %1705 = vmatprep.subr.bf16.mxu0 0
        %1706 = vmatpush1.bf16.xpose.msra.mxu0 0
        %1707 = vmatprep.subr.bf16.mxu0 0
        %1708 = vmatpush1.bf16.xpose.msra.mxu0 0
        %1709 = vmatprep.subr.bf16.mxu0 0
        %1710 = vmatpush1.bf16.xpose.msra.mxu0 0
        %1711 = vmatprep.subr.bf16.mxu0 0
        %1712 = vmatpush1.bf16.xpose.msra.mxu0 0
        %1713 = vmatprep.subr.bf16.mxu0 0
        %1714 = vmatpush1.bf16.xpose.msra.mxu0 0
        %1715 = vmatprep.subr.bf16.mxu0 0
        %1716 = vmatpush1.bf16.xpose.msra.mxu0 0
        %1717 = vmatprep.mubr.bf16.mxu0 0
        %1718 = vmatmul.mubr.bf16.gmra.mrb[0].mxu0 %v1680
        %v1719 = vpop.f32.mrb[0].mxu0
        %v1720 = vadd.f32 %v1300, %v1719
        %v1721 = vpop.f32.mrb[0].mxu0
        %v1722 = vpop.f32.mrb[0].mxu0
        %v1723 = vadd.f32 %v1301, %v1722
        %v1724 = vpop.f32.mrb[0].mxu0
        %1725 = vdwg.mxu0
        %v1727 = vsel %vm1302, %v1261, 0
        %v1730 = vsel %vm1302, %v1277, 0
        %1732 = vmatprep.subr.bf16.mxu0 0
        %1733 = vmatpush1.bf16.xpose.msra.mxu0 %v1730
        %1734 = vmatprep.subr.bf16.mxu0 0
        %1735 = vmatpush1.bf16.xpose.msra.mxu0 0
        %1736 = vmatprep.subr.bf16.mxu0 0
        %1737 = vmatpush1.bf16.xpose.msra.mxu0 0
        %1738 = vmatprep.subr.bf16.mxu0 0
        %1739 = vmatpush1.bf16.xpose.msra.mxu0 0
        %1740 = vmatprep.subr.bf16.mxu0 0
        %1741 = vmatpush1.bf16.xpose.msra.mxu0 0
        %1742 = vmatprep.subr.bf16.mxu0 0
        %1743 = vmatpush1.bf16.xpose.msra.mxu0 0
        %1744 = vmatprep.subr.bf16.mxu0 0
        %1745 = vmatpush1.bf16.xpose.msra.mxu0 0
        %1746 = vmatprep.subr.bf16.mxu0 0
        %1747 = vmatpush1.bf16.xpose.msra.mxu0 0
        %1748 = vmatprep.subr.bf16.mxu0 0
        %1749 = vmatpush1.bf16.xpose.msra.mxu0 0
        %1750 = vmatprep.subr.bf16.mxu0 0
        %1751 = vmatpush1.bf16.xpose.msra.mxu0 0
        %1752 = vmatprep.subr.bf16.mxu0 0
        %1753 = vmatpush1.bf16.xpose.msra.mxu0 0
        %1754 = vmatprep.subr.bf16.mxu0 0
        %1755 = vmatpush1.bf16.xpose.msra.mxu0 0
        %1756 = vmatprep.subr.bf16.mxu0 0
        %1757 = vmatpush1.bf16.xpose.msra.mxu0 0
        %1758 = vmatprep.subr.bf16.mxu0 0
        %1759 = vmatpush1.bf16.xpose.msra.mxu0 0
        %1760 = vmatprep.subr.bf16.mxu0 0
        %1761 = vmatpush1.bf16.xpose.msra.mxu0 0
        %1762 = vmatprep.subr.bf16.mxu0 0
        %1763 = vmatpush1.bf16.xpose.msra.mxu0 0
        %1764 = vmatprep.mubr.bf16.mxu0 0
        %1765 = vmatmul.mubr.bf16.gmra.mrb[0].mxu0 %v1727
        %v1766 = vpop.f32.mrb[0].mxu0
        %v1767 = vadd.f32 %v1300, %v1766
        %v1768 = vpop.f32.mrb[0].mxu0
        %v1769 = vpop.f32.mrb[0].mxu0
        %v1770 = vadd.f32 %v1301, %v1769
        %v1771 = vpop.f32.mrb[0].mxu0
        %1772 = vdwg.mxu0
        %v1774 = vsel %vm1302, %v1262, 0
        %v1777 = vsel %vm1302, %v1278, 0
        %1779 = vmatprep.subr.bf16.mxu0 0
        %1780 = vmatpush1.bf16.xpose.msra.mxu0 %v1777
        %1781 = vmatprep.subr.bf16.mxu0 0
        %1782 = vmatpush1.bf16.xpose.msra.mxu0 0
        %1783 = vmatprep.subr.bf16.mxu0 0
        %1784 = vmatpush1.bf16.xpose.msra.mxu0 0
        %1785 = vmatprep.subr.bf16.mxu0 0
        %1786 = vmatpush1.bf16.xpose.msra.mxu0 0
        %1787 = vmatprep.subr.bf16.mxu0 0
        %1788 = vmatpush1.bf16.xpose.msra.mxu0 0
        %1789 = vmatprep.subr.bf16.mxu0 0
        %1790 = vmatpush1.bf16.xpose.msra.mxu0 0
        %1791 = vmatprep.subr.bf16.mxu0 0
        %1792 = vmatpush1.bf16.xpose.msra.mxu0 0
        %1793 = vmatprep.subr.bf16.mxu0 0
        %1794 = vmatpush1.bf16.xpose.msra.mxu0 0
        %1795 = vmatprep.subr.bf16.mxu0 0
        %1796 = vmatpush1.bf16.xpose.msra.mxu0 0
        %1797 = vmatprep.subr.bf16.mxu0 0
        %1798 = vmatpush1.bf16.xpose.msra.mxu0 0
        %1799 = vmatprep.subr.bf16.mxu0 0
        %1800 = vmatpush1.bf16.xpose.msra.mxu0 0
        %1801 = vmatprep.subr.bf16.mxu0 0
        %1802 = vmatpush1.bf16.xpose.msra.mxu0 0
        %1803 = vmatprep.subr.bf16.mxu0 0
        %1804 = vmatpush1.bf16.xpose.msra.mxu0 0
        %1805 = vmatprep.subr.bf16.mxu0 0
        %1806 = vmatpush1.bf16.xpose.msra.mxu0 0
        %1807 = vmatprep.subr.bf16.mxu0 0
        %1808 = vmatpush1.bf16.xpose.msra.mxu0 0
        %1809 = vmatprep.subr.bf16.mxu0 0
        %1810 = vmatpush1.bf16.xpose.msra.mxu0 0
        %1811 = vmatprep.mubr.bf16.mxu0 0
        %1812 = vmatmul.mubr.bf16.gmra.mrb[0].mxu0 %v1774
        %v1813 = vpop.f32.mrb[0].mxu0
        %v1814 = vadd.f32 %v1300, %v1813
        %v1815 = vpop.f32.mrb[0].mxu0
        %v1816 = vpop.f32.mrb[0].mxu0
        %v1817 = vadd.f32 %v1301, %v1816
        %v1818 = vpop.f32.mrb[0].mxu0
        %1819 = vdwg.mxu0
        %v1821 = vsel %vm1302, %v1263, 0
        %v1824 = vsel %vm1302, %v1279, 0
        %1826 = vmatprep.subr.bf16.mxu0 0
        %1827 = vmatpush1.bf16.xpose.msra.mxu0 %v1824
        %1828 = vmatprep.subr.bf16.mxu0 0
        %1829 = vmatpush1.bf16.xpose.msra.mxu0 0
        %1830 = vmatprep.subr.bf16.mxu0 0
        %1831 = vmatpush1.bf16.xpose.msra.mxu0 0
        %1832 = vmatprep.subr.bf16.mxu0 0
        %1833 = vmatpush1.bf16.xpose.msra.mxu0 0
        %1834 = vmatprep.subr.bf16.mxu0 0
        %1835 = vmatpush1.bf16.xpose.msra.mxu0 0
        %1836 = vmatprep.subr.bf16.mxu0 0
        %1837 = vmatpush1.bf16.xpose.msra.mxu0 0
        %1838 = vmatprep.subr.bf16.mxu0 0
        %1839 = vmatpush1.bf16.xpose.msra.mxu0 0
        %1840 = vmatprep.subr.bf16.mxu0 0
        %1841 = vmatpush1.bf16.xpose.msra.mxu0 0
        %1842 = vmatprep.subr.bf16.mxu0 0
        %1843 = vmatpush1.bf16.xpose.msra.mxu0 0
        %1844 = vmatprep.subr.bf16.mxu0 0
        %1845 = vmatpush1.bf16.xpose.msra.mxu0 0
        %1846 = vmatprep.subr.bf16.mxu0 0
        %1847 = vmatpush1.bf16.xpose.msra.mxu0 0
        %1848 = vmatprep.subr.bf16.mxu0 0
        %1849 = vmatpush1.bf16.xpose.msra.mxu0 0
        %1850 = vmatprep.subr.bf16.mxu0 0
        %1851 = vmatpush1.bf16.xpose.msra.mxu0 0
        %1852 = vmatprep.subr.bf16.mxu0 0
        %1853 = vmatpush1.bf16.xpose.msra.mxu0 0
        %1854 = vmatprep.subr.bf16.mxu0 0
        %1855 = vmatpush1.bf16.xpose.msra.mxu0 0
        %1856 = vmatprep.subr.bf16.mxu0 0
        %1857 = vmatpush1.bf16.xpose.msra.mxu0 0
        %1858 = vmatprep.mubr.bf16.mxu0 0
        %1859 = vmatmul.mubr.bf16.gmra.mrb[0].mxu0 %v1821
        %v1860 = vpop.f32.mrb[0].mxu0
        %v1861 = vadd.f32 %v1300, %v1860
        %v1862 = vpop.f32.mrb[0].mxu0
        %v1863 = vpop.f32.mrb[0].mxu0
        %v1864 = vadd.f32 %v1301, %v1863
        %v1865 = vpop.f32.mrb[0].mxu0
        %1866 = vdwg.mxu0
        %v1868 = vsel %vm1302, %v1264, 0
        %v1871 = vsel %vm1302, %v1280, 0
        %1873 = vmatprep.subr.bf16.mxu0 0
        %1874 = vmatpush1.bf16.xpose.msra.mxu0 %v1871
        %1875 = vmatprep.subr.bf16.mxu0 0
        %1876 = vmatpush1.bf16.xpose.msra.mxu0 0
        %1877 = vmatprep.subr.bf16.mxu0 0
        %1878 = vmatpush1.bf16.xpose.msra.mxu0 0
        %1879 = vmatprep.subr.bf16.mxu0 0
        %1880 = vmatpush1.bf16.xpose.msra.mxu0 0
        %1881 = vmatprep.subr.bf16.mxu0 0
        %1882 = vmatpush1.bf16.xpose.msra.mxu0 0
        %1883 = vmatprep.subr.bf16.mxu0 0
        %1884 = vmatpush1.bf16.xpose.msra.mxu0 0
        %1885 = vmatprep.subr.bf16.mxu0 0
        %1886 = vmatpush1.bf16.xpose.msra.mxu0 0
        %1887 = vmatprep.subr.bf16.mxu0 0
        %1888 = vmatpush1.bf16.xpose.msra.mxu0 0
        %1889 = vmatprep.subr.bf16.mxu0 0
        %1890 = vmatpush1.bf16.xpose.msra.mxu0 0
        %1891 = vmatprep.subr.bf16.mxu0 0
        %1892 = vmatpush1.bf16.xpose.msra.mxu0 0
        %1893 = vmatprep.subr.bf16.mxu0 0
        %1894 = vmatpush1.bf16.xpose.msra.mxu0 0
        %1895 = vmatprep.subr.bf16.mxu0 0
        %1896 = vmatpush1.bf16.xpose.msra.mxu0 0
        %1897 = vmatprep.subr.bf16.mxu0 0
        %1898 = vmatpush1.bf16.xpose.msra.mxu0 0
        %1899 = vmatprep.subr.bf16.mxu0 0
        %1900 = vmatpush1.bf16.xpose.msra.mxu0 0
        %1901 = vmatprep.subr.bf16.mxu0 0
        %1902 = vmatpush1.bf16.xpose.msra.mxu0 0
        %1903 = vmatprep.subr.bf16.mxu0 0
        %1904 = vmatpush1.bf16.xpose.msra.mxu0 0
        %1905 = vmatprep.mubr.bf16.mxu0 0
        %1906 = vmatmul.mubr.bf16.gmra.mrb[0].mxu0 %v1868
        %v1907 = vpop.f32.mrb[0].mxu0
        %v1908 = vadd.f32 %v1300, %v1907
        %v1909 = vpop.f32.mrb[0].mxu0
        %v1910 = vpop.f32.mrb[0].mxu0
        %v1911 = vadd.f32 %v1301, %v1910
        %v1912 = vpop.f32.mrb[0].mxu0
        %1913 = vdwg.mxu0
        %v1915 = vsel %vm1302, %v1265, 0
        %v1918 = vsel %vm1302, %v1281, 0
        %1920 = vmatprep.subr.bf16.mxu0 0
        %1921 = vmatpush1.bf16.xpose.msra.mxu0 %v1918
        %1922 = vmatprep.subr.bf16.mxu0 0
        %1923 = vmatpush1.bf16.xpose.msra.mxu0 0
        %1924 = vmatprep.subr.bf16.mxu0 0
        %1925 = vmatpush1.bf16.xpose.msra.mxu0 0
        %1926 = vmatprep.subr.bf16.mxu0 0
        %1927 = vmatpush1.bf16.xpose.msra.mxu0 0
        %1928 = vmatprep.subr.bf16.mxu0 0
        %1929 = vmatpush1.bf16.xpose.msra.mxu0 0
        %1930 = vmatprep.subr.bf16.mxu0 0
        %1931 = vmatpush1.bf16.xpose.msra.mxu0 0
        %1932 = vmatprep.subr.bf16.mxu0 0
        %1933 = vmatpush1.bf16.xpose.msra.mxu0 0
        %1934 = vmatprep.subr.bf16.mxu0 0
        %1935 = vmatpush1.bf16.xpose.msra.mxu0 0
        %1936 = vmatprep.subr.bf16.mxu0 0
        %1937 = vmatpush1.bf16.xpose.msra.mxu0 0
        %1938 = vmatprep.subr.bf16.mxu0 0
        %1939 = vmatpush1.bf16.xpose.msra.mxu0 0
        %1940 = vmatprep.subr.bf16.mxu0 0
        %1941 = vmatpush1.bf16.xpose.msra.mxu0 0
        %1942 = vmatprep.subr.bf16.mxu0 0
        %1943 = vmatpush1.bf16.xpose.msra.mxu0 0
        %1944 = vmatprep.subr.bf16.mxu0 0
        %1945 = vmatpush1.bf16.xpose.msra.mxu0 0
        %1946 = vmatprep.subr.bf16.mxu0 0
        %1947 = vmatpush1.bf16.xpose.msra.mxu0 0
        %1948 = vmatprep.subr.bf16.mxu0 0
        %1949 = vmatpush1.bf16.xpose.msra.mxu0 0
        %1950 = vmatprep.subr.bf16.mxu0 0
        %1951 = vmatpush1.bf16.xpose.msra.mxu0 0
        %1952 = vmatprep.mubr.bf16.mxu0 0
        %1953 = vmatmul.mubr.bf16.gmra.mrb[0].mxu0 %v1915
        %v1954 = vpop.f32.mrb[0].mxu0
        %v1955 = vadd.f32 %v1300, %v1954
        %v1956 = vpop.f32.mrb[0].mxu0
        %v1957 = vpop.f32.mrb[0].mxu0
        %v1958 = vadd.f32 %v1301, %v1957
        %v1959 = vpop.f32.mrb[0].mxu0
        %1960 = vdwg.mxu0
        %v1962 = vsel %vm1302, %v1266, 0
        %v1965 = vsel %vm1302, %v1282, 0
        %1967 = vmatprep.subr.bf16.mxu0 0
        %1968 = vmatpush1.bf16.xpose.msra.mxu0 %v1965
        %1969 = vmatprep.subr.bf16.mxu0 0
        %1970 = vmatpush1.bf16.xpose.msra.mxu0 0
        %1971 = vmatprep.subr.bf16.mxu0 0
        %1972 = vmatpush1.bf16.xpose.msra.mxu0 0
        %1973 = vmatprep.subr.bf16.mxu0 0
        %1974 = vmatpush1.bf16.xpose.msra.mxu0 0
        %1975 = vmatprep.subr.bf16.mxu0 0
        %1976 = vmatpush1.bf16.xpose.msra.mxu0 0
        %1977 = vmatprep.subr.bf16.mxu0 0
        %1978 = vmatpush1.bf16.xpose.msra.mxu0 0
        %1979 = vmatprep.subr.bf16.mxu0 0
        %1980 = vmatpush1.bf16.xpose.msra.mxu0 0
        %1981 = vmatprep.subr.bf16.mxu0 0
        %1982 = vmatpush1.bf16.xpose.msra.mxu0 0
        %1983 = vmatprep.subr.bf16.mxu0 0
        %1984 = vmatpush1.bf16.xpose.msra.mxu0 0
        %1985 = vmatprep.subr.bf16.mxu0 0
        %1986 = vmatpush1.bf16.xpose.msra.mxu0 0
        %1987 = vmatprep.subr.bf16.mxu0 0
        %1988 = vmatpush1.bf16.xpose.msra.mxu0 0
        %1989 = vmatprep.subr.bf16.mxu0 0
        %1990 = vmatpush1.bf16.xpose.msra.mxu0 0
        %1991 = vmatprep.subr.bf16.mxu0 0
        %1992 = vmatpush1.bf16.xpose.msra.mxu0 0
        %1993 = vmatprep.subr.bf16.mxu0 0
        %1994 = vmatpush1.bf16.xpose.msra.mxu0 0
        %1995 = vmatprep.subr.bf16.mxu0 0
        %1996 = vmatpush1.bf16.xpose.msra.mxu0 0
        %1997 = vmatprep.subr.bf16.mxu0 0
        %1998 = vmatpush1.bf16.xpose.msra.mxu0 0
        %1999 = vmatprep.mubr.bf16.mxu0 0
        %2000 = vmatmul.mubr.bf16.gmra.mrb[0].mxu0 %v1962
        %v2001 = vpop.f32.mrb[0].mxu0
        %v2002 = vadd.f32 %v1300, %v2001
        %v2003 = vpop.f32.mrb[0].mxu0
        %v2004 = vpop.f32.mrb[0].mxu0
        %v2005 = vadd.f32 %v1301, %v2004
        %v2006 = vpop.f32.mrb[0].mxu0
        %2007 = vdwg.mxu0
        %v2009 = vsel %vm1302, %v1267, 0
        %v2012 = vsel %vm1302, %v1283, 0
        %2014 = vmatprep.subr.bf16.mxu0 0
        %2015 = vmatpush1.bf16.xpose.msra.mxu0 %v2012
        %2016 = vmatprep.subr.bf16.mxu0 0
        %2017 = vmatpush1.bf16.xpose.msra.mxu0 0
        %2018 = vmatprep.subr.bf16.mxu0 0
        %2019 = vmatpush1.bf16.xpose.msra.mxu0 0
        %2020 = vmatprep.subr.bf16.mxu0 0
        %2021 = vmatpush1.bf16.xpose.msra.mxu0 0
        %2022 = vmatprep.subr.bf16.mxu0 0
        %2023 = vmatpush1.bf16.xpose.msra.mxu0 0
        %2024 = vmatprep.subr.bf16.mxu0 0
        %2025 = vmatpush1.bf16.xpose.msra.mxu0 0
        %2026 = vmatprep.subr.bf16.mxu0 0
        %2027 = vmatpush1.bf16.xpose.msra.mxu0 0
        %2028 = vmatprep.subr.bf16.mxu0 0
        %2029 = vmatpush1.bf16.xpose.msra.mxu0 0
        %2030 = vmatprep.subr.bf16.mxu0 0
        %2031 = vmatpush1.bf16.xpose.msra.mxu0 0
        %2032 = vmatprep.subr.bf16.mxu0 0
        %2033 = vmatpush1.bf16.xpose.msra.mxu0 0
        %2034 = vmatprep.subr.bf16.mxu0 0
        %2035 = vmatpush1.bf16.xpose.msra.mxu0 0
        %2036 = vmatprep.subr.bf16.mxu0 0
        %2037 = vmatpush1.bf16.xpose.msra.mxu0 0
        %2038 = vmatprep.subr.bf16.mxu0 0
        %2039 = vmatpush1.bf16.xpose.msra.mxu0 0
        %2040 = vmatprep.subr.bf16.mxu0 0
        %2041 = vmatpush1.bf16.xpose.msra.mxu0 0
        %2042 = vmatprep.subr.bf16.mxu0 0
        %2043 = vmatpush1.bf16.xpose.msra.mxu0 0
        %2044 = vmatprep.subr.bf16.mxu0 0
        %2045 = vmatpush1.bf16.xpose.msra.mxu0 0
        %2046 = vmatprep.mubr.bf16.mxu0 0
        %2047 = vmatmul.mubr.bf16.gmra.mrb[0].mxu0 %v2009
        %v2048 = vpop.f32.mrb[0].mxu0
        %v2049 = vadd.f32 %v1300, %v2048
        %v2050 = vpop.f32.mrb[0].mxu0
        %v2051 = vpop.f32.mrb[0].mxu0
        %v2052 = vadd.f32 %v1301, %v2051
        %v2053 = vpop.f32.mrb[0].mxu0
        %2054 = vdwg.mxu0
        %v2055 = vld [vmem:[%s4] sm:$0xff]
        %v2056 = vld [vmem:[%s4 + $0x8] sm:$0xff]
        %v2057 = vld [vmem:[%s4 + $0x10] sm:$0xff]
        %v2058 = vld [vmem:[%s4 + $0x18] sm:$0xff]
        %v2059 = vld [vmem:[%s4 + $0x20] sm:$0xff]
        %v2060 = vld [vmem:[%s4 + $0x28] sm:$0xff]
        %v2061 = vld [vmem:[%s4 + $0x30] sm:$0xff]
        %v2062 = vld [vmem:[%s4 + $0x38] sm:$0xff]
        %v2063 = vld [vmem:[%s4 + $0x40] sm:$0xff]
        %v2064 = vld [vmem:[%s4 + $0x48] sm:$0xff]
        %v2065 = vld [vmem:[%s4 + $0x50] sm:$0xff]
        %v2066 = vld [vmem:[%s4 + $0x58] sm:$0xff]
        %v2067 = vld [vmem:[%s4 + $0x60] sm:$0xff]
        %v2068 = vld [vmem:[%s4 + $0x68] sm:$0xff]
        %v2069 = vld [vmem:[%s4 + $0x70] sm:$0xff]
        %v2070 = vld [vmem:[%s4 + $0x78] sm:$0xff]
        %v2071 = vld [vmem:[%s4 + $0x80] sm:$0xff]
        %v2072 = vld [vmem:[%s4 + $0x88] sm:$0xff]
        %v2073 = vld [vmem:[%s4 + $0x90] sm:$0xff]
        %v2074 = vld [vmem:[%s4 + $0x98] sm:$0xff]
        %v2075 = vld [vmem:[%s4 + $0xa0] sm:$0xff]
        %v2076 = vld [vmem:[%s4 + $0xa8] sm:$0xff]
        %v2077 = vld [vmem:[%s4 + $0xb0] sm:$0xff]
        %v2078 = vld [vmem:[%s4 + $0xb8] sm:$0xff]
        %v2079 = vld [vmem:[%s4 + $0xc0] sm:$0xff]
        %v2080 = vld [vmem:[%s4 + $0xc8] sm:$0xff]
        %v2081 = vld [vmem:[%s4 + $0xd0] sm:$0xff]
        %v2082 = vld [vmem:[%s4 + $0xd8] sm:$0xff]
        %v2083 = vld [vmem:[%s4 + $0xe0] sm:$0xff]
        %v2084 = vld [vmem:[%s4 + $0xe8] sm:$0xff]
        %v2085 = vld [vmem:[%s4 + $0xf0] sm:$0xff]
        %v2086 = vld [vmem:[%s4 + $0xf8] sm:$0xff]
        %v2087 = vadd.f32 %v1344, %v2055
        %v2088 = vadd.f32 %v1347, %v2056
        %v2089 = vadd.f32 %v1391, %v2057
        %v2090 = vadd.f32 %v1394, %v2058
        %v2091 = vadd.f32 %v1438, %v2059
        %v2092 = vadd.f32 %v1441, %v2060
        %v2093 = vadd.f32 %v1485, %v2061
        %v2094 = vadd.f32 %v1488, %v2062
        %v2095 = vadd.f32 %v1532, %v2063
        %v2096 = vadd.f32 %v1535, %v2064
        %v2097 = vadd.f32 %v1579, %v2065
        %v2098 = vadd.f32 %v1582, %v2066
        %v2099 = vadd.f32 %v1626, %v2067
        %v2100 = vadd.f32 %v1629, %v2068
        %v2101 = vadd.f32 %v1673, %v2069
        %v2102 = vadd.f32 %v1676, %v2070
        %v2103 = vadd.f32 %v1720, %v2071
        %v2104 = vadd.f32 %v1723, %v2072
        %v2105 = vadd.f32 %v1767, %v2073
        %v2106 = vadd.f32 %v1770, %v2074
        %v2107 = vadd.f32 %v1814, %v2075
        %v2108 = vadd.f32 %v1817, %v2076
        %v2109 = vadd.f32 %v1861, %v2077
        %v2110 = vadd.f32 %v1864, %v2078
        %v2111 = vadd.f32 %v1908, %v2079
        %v2112 = vadd.f32 %v1911, %v2080
        %v2113 = vadd.f32 %v1955, %v2081
        %v2114 = vadd.f32 %v1958, %v2082
        %v2115 = vadd.f32 %v2002, %v2083
        %v2116 = vadd.f32 %v2005, %v2084
        %v2117 = vadd.f32 %v2049, %v2085
        %v2118 = vadd.f32 %v2052, %v2086
        %vm2119 = vcmask 130048
        %v2120 = vsel %vm2119, %v2087, -inf
        %2121 = vmax.xlane.f32.xlu0 %v2120
        %v2122 = vpop.xlane.xlu0 %2121
        %v2123 = vsel %vm2119, %v2088, -inf
        %2124 = vmax.xlane.f32.xlu0 %v2123
        %v2125 = vpop.xlane.xlu0 %2124
        %v2126 = vsel %vm2119, %v2089, -inf
        %2127 = vmax.xlane.f32.xlu0 %v2126
        %v2128 = vpop.xlane.xlu0 %2127
        %v2129 = vsel %vm2119, %v2090, -inf
        %2130 = vmax.xlane.f32.xlu0 %v2129
        %v2131 = vpop.xlane.xlu0 %2130
        %v2132 = vsel %vm2119, %v2091, -inf
        %2133 = vmax.xlane.f32.xlu0 %v2132
        %v2134 = vpop.xlane.xlu0 %2133
        %v2135 = vsel %vm2119, %v2092, -inf
        %2136 = vmax.xlane.f32.xlu0 %v2135
        %v2137 = vpop.xlane.xlu0 %2136
        %v2138 = vsel %vm2119, %v2093, -inf
        %2139 = vmax.xlane.f32.xlu0 %v2138
        %v2140 = vpop.xlane.xlu0 %2139
        %v2141 = vsel %vm2119, %v2094, -inf
        %2142 = vmax.xlane.f32.xlu0 %v2141
        %v2143 = vpop.xlane.xlu0 %2142
        %v2144 = vsel %vm2119, %v2095, -inf
        %2145 = vmax.xlane.f32.xlu0 %v2144
        %v2146 = vpop.xlane.xlu0 %2145
        %v2147 = vsel %vm2119, %v2096, -inf
        %2148 = vmax.xlane.f32.xlu0 %v2147
        %v2149 = vpop.xlane.xlu0 %2148
        %v2150 = vsel %vm2119, %v2097, -inf
        %2151 = vmax.xlane.f32.xlu0 %v2150
        %v2152 = vpop.xlane.xlu0 %2151
        %v2153 = vsel %vm2119, %v2098, -inf
        %2154 = vmax.xlane.f32.xlu0 %v2153
        %v2155 = vpop.xlane.xlu0 %2154
        %v2156 = vsel %vm2119, %v2099, -inf
        %2157 = vmax.xlane.f32.xlu0 %v2156
        %v2158 = vpop.xlane.xlu0 %2157
        %v2159 = vsel %vm2119, %v2100, -inf
        %2160 = vmax.xlane.f32.xlu0 %v2159
        %v2161 = vpop.xlane.xlu0 %2160
        %v2162 = vsel %vm2119, %v2101, -inf
        %2163 = vmax.xlane.f32.xlu0 %v2162
        %v2164 = vpop.xlane.xlu0 %2163
        %v2165 = vsel %vm2119, %v2102, -inf
        %2166 = vmax.xlane.f32.xlu0 %v2165
        %v2167 = vpop.xlane.xlu0 %2166
        %v2168 = vsel %vm2119, %v2103, -inf
        %2169 = vmax.xlane.f32.xlu0 %v2168
        %v2170 = vpop.xlane.xlu0 %2169
        %v2171 = vsel %vm2119, %v2104, -inf
        %2172 = vmax.xlane.f32.xlu0 %v2171
        %v2173 = vpop.xlane.xlu0 %2172
        %v2174 = vsel %vm2119, %v2105, -inf
        %2175 = vmax.xlane.f32.xlu0 %v2174
        %v2176 = vpop.xlane.xlu0 %2175
        %v2177 = vsel %vm2119, %v2106, -inf
        %2178 = vmax.xlane.f32.xlu0 %v2177
        %v2179 = vpop.xlane.xlu0 %2178
        %v2180 = vsel %vm2119, %v2107, -inf
        %2181 = vmax.xlane.f32.xlu0 %v2180
        %v2182 = vpop.xlane.xlu0 %2181
        %v2183 = vsel %vm2119, %v2108, -inf
        %2184 = vmax.xlane.f32.xlu0 %v2183
        %v2185 = vpop.xlane.xlu0 %2184
        %v2186 = vsel %vm2119, %v2109, -inf
        %2187 = vmax.xlane.f32.xlu0 %v2186
        %v2188 = vpop.xlane.xlu0 %2187
        %v2189 = vsel %vm2119, %v2110, -inf
        %2190 = vmax.xlane.f32.xlu0 %v2189
        %v2191 = vpop.xlane.xlu0 %2190
        %v2192 = vsel %vm2119, %v2111, -inf
        %2193 = vmax.xlane.f32.xlu0 %v2192
        %v2194 = vpop.xlane.xlu0 %2193
        %v2195 = vsel %vm2119, %v2112, -inf
        %2196 = vmax.xlane.f32.xlu0 %v2195
        %v2197 = vpop.xlane.xlu0 %2196
        %v2198 = vsel %vm2119, %v2113, -inf
        %2199 = vmax.xlane.f32.xlu0 %v2198
        %v2200 = vpop.xlane.xlu0 %2199
        %v2201 = vsel %vm2119, %v2114, -inf
        %2202 = vmax.xlane.f32.xlu0 %v2201
        %v2203 = vpop.xlane.xlu0 %2202
        %v2204 = vsel %vm2119, %v2115, -inf
        %2205 = vmax.xlane.f32.xlu0 %v2204
        %v2206 = vpop.xlane.xlu0 %2205
        %v2207 = vsel %vm2119, %v2116, -inf
        %2208 = vmax.xlane.f32.xlu0 %v2207
        %v2209 = vpop.xlane.xlu0 %2208
        %v2210 = vsel %vm2119, %v2117, -inf
        %2211 = vmax.xlane.f32.xlu0 %v2210
        %v2212 = vpop.xlane.xlu0 %2211
        %v2213 = vsel %vm2119, %v2118, -inf
        %2214 = vmax.xlane.f32.xlu0 %v2213
        %v2215 = vpop.xlane.xlu0 %2214
        %v2216 = vsub.f32 %v2087, %v2122
        %v2217 = vsub.f32 %v2088, %v2125
        %v2218 = vsub.f32 %v2089, %v2128
        %v2219 = vsub.f32 %v2090, %v2131
        %v2220 = vsub.f32 %v2091, %v2134
        %v2221 = vsub.f32 %v2092, %v2137
        %v2222 = vsub.f32 %v2093, %v2140
        %v2223 = vsub.f32 %v2094, %v2143
        %v2224 = vsub.f32 %v2095, %v2146
        %v2225 = vsub.f32 %v2096, %v2149
        %v2226 = vsub.f32 %v2097, %v2152
        %v2227 = vsub.f32 %v2098, %v2155
        %v2228 = vsub.f32 %v2099, %v2158
        %v2229 = vsub.f32 %v2100, %v2161
        %v2230 = vsub.f32 %v2101, %v2164
        %v2231 = vsub.f32 %v2102, %v2167
        %v2232 = vsub.f32 %v2103, %v2170
        %v2233 = vsub.f32 %v2104, %v2173
        %v2234 = vsub.f32 %v2105, %v2176
        %v2235 = vsub.f32 %v2106, %v2179
        %v2236 = vsub.f32 %v2107, %v2182
        %v2237 = vsub.f32 %v2108, %v2185
        %v2238 = vsub.f32 %v2109, %v2188
        %v2239 = vsub.f32 %v2110, %v2191
        %v2240 = vsub.f32 %v2111, %v2194
        %v2241 = vsub.f32 %v2112, %v2197
        %v2242 = vsub.f32 %v2113, %v2200
        %v2243 = vsub.f32 %v2114, %v2203
        %v2244 = vsub.f32 %v2115, %v2206
        %v2245 = vsub.f32 %v2116, %v2209
        %v2246 = vsub.f32 %v2117, %v2212
        %v2247 = vsub.f32 %v2118, %v2215
        %v2248 = vmul.f32 %v2216, 1.442695
        %v2249 = vpow.pop %v2248
        %v2250 = vmul.f32 %v2217, 1.442695
        %v2251 = vpow.pop %v2250
        %v2252 = vmul.f32 %v2218, 1.442695
        %v2253 = vpow.pop %v2252
        %v2254 = vmul.f32 %v2219, 1.442695
        %v2255 = vpow.pop %v2254
        %v2256 = vmul.f32 %v2220, 1.442695
        %v2257 = vpow.pop %v2256
        %v2258 = vmul.f32 %v2221, 1.442695
        %v2259 = vpow.pop %v2258
        %v2260 = vmul.f32 %v2222, 1.442695
        %v2261 = vpow.pop %v2260
        %v2262 = vmul.f32 %v2223, 1.442695
        %v2263 = vpow.pop %v2262
        %v2264 = vmul.f32 %v2224, 1.442695
        %v2265 = vpow.pop %v2264
        %v2266 = vmul.f32 %v2225, 1.442695
        %v2267 = vpow.pop %v2266
        %v2268 = vmul.f32 %v2226, 1.442695
        %v2269 = vpow.pop %v2268
        %v2270 = vmul.f32 %v2227, 1.442695
        %v2271 = vpow.pop %v2270
        %v2272 = vmul.f32 %v2228, 1.442695
        %v2273 = vpow.pop %v2272
        %v2274 = vmul.f32 %v2229, 1.442695
        %v2275 = vpow.pop %v2274
        %v2276 = vmul.f32 %v2230, 1.442695
        %v2277 = vpow.pop %v2276
        %v2278 = vmul.f32 %v2231, 1.442695
        %v2279 = vpow.pop %v2278
        %v2280 = vmul.f32 %v2232, 1.442695
        %v2281 = vpow.pop %v2280
        %v2282 = vmul.f32 %v2233, 1.442695
        %v2283 = vpow.pop %v2282
        %v2284 = vmul.f32 %v2234, 1.442695
        %v2285 = vpow.pop %v2284
        %v2286 = vmul.f32 %v2235, 1.442695
        %v2287 = vpow.pop %v2286
        %v2288 = vmul.f32 %v2236, 1.442695
        %v2289 = vpow.pop %v2288
        %v2290 = vmul.f32 %v2237, 1.442695
        %v2291 = vpow.pop %v2290
        %v2292 = vmul.f32 %v2238, 1.442695
        %v2293 = vpow.pop %v2292
        %v2294 = vmul.f32 %v2239, 1.442695
        %v2295 = vpow.pop %v2294
        %v2296 = vmul.f32 %v2240, 1.442695
        %v2297 = vpow.pop %v2296
        %v2298 = vmul.f32 %v2241, 1.442695
        %v2299 = vpow.pop %v2298
        %v2300 = vmul.f32 %v2242, 1.442695
        %v2301 = vpow.pop %v2300
        %v2302 = vmul.f32 %v2243, 1.442695
        %v2303 = vpow.pop %v2302
        %v2304 = vmul.f32 %v2244, 1.442695
        %v2305 = vpow.pop %v2304
        %v2306 = vmul.f32 %v2245, 1.442695
        %v2307 = vpow.pop %v2306
        %v2308 = vmul.f32 %v2246, 1.442695
        %v2309 = vpow.pop %v2308
        %v2310 = vmul.f32 %v2247, 1.442695
        %v2311 = vpow.pop %v2310
        %v2312 = vsel %vm2119, %v2249, 0.0
        %2313 = vadd.xlane.f32.xlu0 %v2312
        %v2314 = vpop.xlane.xlu0 %2313
        %v2315 = vsel %vm2119, %v2251, 0.0
        %2316 = vadd.xlane.f32.xlu0 %v2315
        %v2317 = vpop.xlane.xlu0 %2316
        %v2318 = vsel %vm2119, %v2253, 0.0
        %2319 = vadd.xlane.f32.xlu0 %v2318
        %v2320 = vpop.xlane.xlu0 %2319
        %v2321 = vsel %vm2119, %v2255, 0.0
        %2322 = vadd.xlane.f32.xlu0 %v2321
        %v2323 = vpop.xlane.xlu0 %2322
        %v2324 = vsel %vm2119, %v2257, 0.0
        %2325 = vadd.xlane.f32.xlu0 %v2324
        %v2326 = vpop.xlane.xlu0 %2325
        %v2327 = vsel %vm2119, %v2259, 0.0
        %2328 = vadd.xlane.f32.xlu0 %v2327
        %v2329 = vpop.xlane.xlu0 %2328
        %v2330 = vsel %vm2119, %v2261, 0.0
        %2331 = vadd.xlane.f32.xlu0 %v2330
        %v2332 = vpop.xlane.xlu0 %2331
        %v2333 = vsel %vm2119, %v2263, 0.0
        %2334 = vadd.xlane.f32.xlu0 %v2333
        %v2335 = vpop.xlane.xlu0 %2334
        %v2336 = vsel %vm2119, %v2265, 0.0
        %2337 = vadd.xlane.f32.xlu0 %v2336
        %v2338 = vpop.xlane.xlu0 %2337
        %v2339 = vsel %vm2119, %v2267, 0.0
        %2340 = vadd.xlane.f32.xlu0 %v2339
        %v2341 = vpop.xlane.xlu0 %2340
        %v2342 = vsel %vm2119, %v2269, 0.0
        %2343 = vadd.xlane.f32.xlu0 %v2342
        %v2344 = vpop.xlane.xlu0 %2343
        %v2345 = vsel %vm2119, %v2271, 0.0
        %2346 = vadd.xlane.f32.xlu0 %v2345
        %v2347 = vpop.xlane.xlu0 %2346
        %v2348 = vsel %vm2119, %v2273, 0.0
        %2349 = vadd.xlane.f32.xlu0 %v2348
        %v2350 = vpop.xlane.xlu0 %2349
        %v2351 = vsel %vm2119, %v2275, 0.0
        %2352 = vadd.xlane.f32.xlu0 %v2351
        %v2353 = vpop.xlane.xlu0 %2352
        %v2354 = vsel %vm2119, %v2277, 0.0
        %2355 = vadd.xlane.f32.xlu0 %v2354
        %v2356 = vpop.xlane.xlu0 %2355
        %v2357 = vsel %vm2119, %v2279, 0.0
        %2358 = vadd.xlane.f32.xlu0 %v2357
        %v2359 = vpop.xlane.xlu0 %2358
        %v2360 = vsel %vm2119, %v2281, 0.0
        %2361 = vadd.xlane.f32.xlu0 %v2360
        %v2362 = vpop.xlane.xlu0 %2361
        %v2363 = vsel %vm2119, %v2283, 0.0
        %2364 = vadd.xlane.f32.xlu0 %v2363
        %v2365 = vpop.xlane.xlu0 %2364
        %v2366 = vsel %vm2119, %v2285, 0.0
        %2367 = vadd.xlane.f32.xlu0 %v2366
        %v2368 = vpop.xlane.xlu0 %2367
        %v2369 = vsel %vm2119, %v2287, 0.0
        %2370 = vadd.xlane.f32.xlu0 %v2369
        %v2371 = vpop.xlane.xlu0 %2370
        %v2372 = vsel %vm2119, %v2289, 0.0
        %2373 = vadd.xlane.f32.xlu0 %v2372
        %v2374 = vpop.xlane.xlu0 %2373
        %v2375 = vsel %vm2119, %v2291, 0.0
        %2376 = vadd.xlane.f32.xlu0 %v2375
        %v2377 = vpop.xlane.xlu0 %2376
        %v2378 = vsel %vm2119, %v2293, 0.0
        %2379 = vadd.xlane.f32.xlu0 %v2378
        %v2380 = vpop.xlane.xlu0 %2379
        %v2381 = vsel %vm2119, %v2295, 0.0
        %2382 = vadd.xlane.f32.xlu0 %v2381
        %v2383 = vpop.xlane.xlu0 %2382
        %v2384 = vsel %vm2119, %v2297, 0.0
        %2385 = vadd.xlane.f32.xlu0 %v2384
        %v2386 = vpop.xlane.xlu0 %2385
        %v2387 = vsel %vm2119, %v2299, 0.0
        %2388 = vadd.xlane.f32.xlu0 %v2387
        %v2389 = vpop.xlane.xlu0 %2388
        %v2390 = vsel %vm2119, %v2301, 0.0
        %2391 = vadd.xlane.f32.xlu0 %v2390
        %v2392 = vpop.xlane.xlu0 %2391
        %v2393 = vsel %vm2119, %v2303, 0.0
        %2394 = vadd.xlane.f32.xlu0 %v2393
        %v2395 = vpop.xlane.xlu0 %2394
        %v2396 = vsel %vm2119, %v2305, 0.0
        %2397 = vadd.xlane.f32.xlu0 %v2396
        %v2398 = vpop.xlane.xlu0 %2397
        %v2399 = vsel %vm2119, %v2307, 0.0
        %2400 = vadd.xlane.f32.xlu0 %v2399
        %v2401 = vpop.xlane.xlu0 %2400
        %v2402 = vsel %vm2119, %v2309, 0.0
        %2403 = vadd.xlane.f32.xlu0 %v2402
        %v2404 = vpop.xlane.xlu0 %2403
        %v2405 = vsel %vm2119, %v2311, 0.0
        %2406 = vadd.xlane.f32.xlu0 %v2405
        %v2407 = vpop.xlane.xlu0 %2406
        %v2408 = vrcp.pop %v2314
        %v2409 = vrcp.pop %v2317
        %v2410 = vrcp.pop %v2320
        %v2411 = vrcp.pop %v2323
        %v2412 = vrcp.pop %v2326
        %v2413 = vrcp.pop %v2329
        %v2414 = vrcp.pop %v2332
        %v2415 = vrcp.pop %v2335
        %v2416 = vrcp.pop %v2338
        %v2417 = vrcp.pop %v2341
        %v2418 = vrcp.pop %v2344
        %v2419 = vrcp.pop %v2347
        %v2420 = vrcp.pop %v2350
        %v2421 = vrcp.pop %v2353
        %v2422 = vrcp.pop %v2356
        %v2423 = vrcp.pop %v2359
        %v2424 = vrcp.pop %v2362
        %v2425 = vrcp.pop %v2365
        %v2426 = vrcp.pop %v2368
        %v2427 = vrcp.pop %v2371
        %v2428 = vrcp.pop %v2374
        %v2429 = vrcp.pop %v2377
        %v2430 = vrcp.pop %v2380
        %v2431 = vrcp.pop %v2383
        %v2432 = vrcp.pop %v2386
        %v2433 = vrcp.pop %v2389
        %v2434 = vrcp.pop %v2392
        %v2435 = vrcp.pop %v2395
        %v2436 = vrcp.pop %v2398
        %v2437 = vrcp.pop %v2401
        %v2438 = vrcp.pop %v2404
        %v2439 = vrcp.pop %v2407
        %v2440 = vmul.f32 %v2249, %v2408
        %v2441 = vmul.f32 %v2251, %v2409
        %v2442 = vmul.f32 %v2253, %v2410
        %v2443 = vmul.f32 %v2255, %v2411
        %v2444 = vmul.f32 %v2257, %v2412
        %v2445 = vmul.f32 %v2259, %v2413
        %v2446 = vmul.f32 %v2261, %v2414
        %v2447 = vmul.f32 %v2263, %v2415
        %v2448 = vmul.f32 %v2265, %v2416
        %v2449 = vmul.f32 %v2267, %v2417
        %v2450 = vmul.f32 %v2269, %v2418
        %v2451 = vmul.f32 %v2271, %v2419
        %v2452 = vmul.f32 %v2273, %v2420
        %v2453 = vmul.f32 %v2275, %v2421
        %v2454 = vmul.f32 %v2277, %v2422
        %v2455 = vmul.f32 %v2279, %v2423
        %v2456 = vmul.f32 %v2281, %v2424
        %v2457 = vmul.f32 %v2283, %v2425
        %v2458 = vmul.f32 %v2285, %v2426
        %v2459 = vmul.f32 %v2287, %v2427
        %v2460 = vmul.f32 %v2289, %v2428
        %v2461 = vmul.f32 %v2291, %v2429
        %v2462 = vmul.f32 %v2293, %v2430
        %v2463 = vmul.f32 %v2295, %v2431
        %v2464 = vmul.f32 %v2297, %v2432
        %v2465 = vmul.f32 %v2299, %v2433
        %v2466 = vmul.f32 %v2301, %v2434
        %v2467 = vmul.f32 %v2303, %v2435
        %v2468 = vmul.f32 %v2305, %v2436
        %v2469 = vmul.f32 %v2307, %v2437
        %v2470 = vmul.f32 %v2309, %v2438
        %v2471 = vmul.f32 %v2311, %v2439
        %v2472 = vpack.c.bf16 %v2441, %v2440
        %v2473 = vpack.c.bf16 %v2443, %v2442
        %v2474 = vpack.c.bf16 %v2445, %v2444
        %v2475 = vpack.c.bf16 %v2447, %v2446
        %v2476 = vpack.c.bf16 %v2449, %v2448
        %v2477 = vpack.c.bf16 %v2451, %v2450
        %v2478 = vpack.c.bf16 %v2453, %v2452
        %v2479 = vpack.c.bf16 %v2455, %v2454
        %v2480 = vpack.c.bf16 %v2457, %v2456
        %v2481 = vpack.c.bf16 %v2459, %v2458
        %v2482 = vpack.c.bf16 %v2461, %v2460
        %v2483 = vpack.c.bf16 %v2463, %v2462
        %v2484 = vpack.c.bf16 %v2465, %v2464
        %v2485 = vpack.c.bf16 %v2467, %v2466
        %v2486 = vpack.c.bf16 %v2469, %v2468
        %v2487 = vpack.c.bf16 %v2471, %v2470
        %v2489 = vsel %vm2119, %v2472, 0
        %2491 = vmatprep.subr.bf16.mxu0 0
        %2492 = vmatpush1.bf16.msra.mxu0 %v1284
        %2493 = vmatprep.subr.bf16.mxu0 0
        %2494 = vmatpush1.bf16.msra.mxu0 0
        %2495 = vmatprep.subr.bf16.mxu0 0
        %2496 = vmatpush1.bf16.msra.mxu0 0
        %2497 = vmatprep.subr.bf16.mxu0 0
        %2498 = vmatpush1.bf16.msra.mxu0 0
        %2499 = vmatprep.subr.bf16.mxu0 0
        %2500 = vmatpush1.bf16.msra.mxu0 0
        %2501 = vmatprep.subr.bf16.mxu0 0
        %2502 = vmatpush1.bf16.msra.mxu0 0
        %2503 = vmatprep.subr.bf16.mxu0 0
        %2504 = vmatpush1.bf16.msra.mxu0 0
        %2505 = vmatprep.subr.bf16.mxu0 0
        %2506 = vmatpush1.bf16.msra.mxu0 0
        %2507 = vmatprep.subr.bf16.mxu0 0
        %2508 = vmatpush1.bf16.msra.mxu0 0
        %2509 = vmatprep.subr.bf16.mxu0 0
        %2510 = vmatpush1.bf16.msra.mxu0 0
        %2511 = vmatprep.subr.bf16.mxu0 0
        %2512 = vmatpush1.bf16.msra.mxu0 0
        %2513 = vmatprep.subr.bf16.mxu0 0
        %2514 = vmatpush1.bf16.msra.mxu0 0
        %2515 = vmatprep.subr.bf16.mxu0 0
        %2516 = vmatpush1.bf16.msra.mxu0 0
        %2517 = vmatprep.subr.bf16.mxu0 0
        %2518 = vmatpush1.bf16.msra.mxu0 0
        %2519 = vmatprep.subr.bf16.mxu0 0
        %2520 = vmatpush1.bf16.msra.mxu0 0
        %2521 = vmatprep.subr.bf16.mxu0 0
        %2522 = vmatpush1.bf16.msra.mxu0 0
        %2523 = vmatprep.mubr.bf16.mxu0 0
        %2524 = vmatmul.mubr.bf16.gmra.mrb[0].mxu0 %v2489
        %v2525 = vpop.f32.mrb[0].mxu0
        %v2526 = vadd.f32 0.0, %v2525
        %v2527 = vpop.f32.mrb[0].mxu0
        %v2528 = vpop.f32.mrb[0].mxu0
        %v2529 = vadd.f32 0.0, %v2528
        %v2530 = vpop.f32.mrb[0].mxu0
        %2531 = vdwg.mxu0
        %v2533 = vsel %vm2119, %v2473, 0
        %2535 = vmatprep.subr.bf16.mxu0 0
        %2536 = vmatpush1.bf16.msra.mxu0 %v1285
        %2537 = vmatprep.subr.bf16.mxu0 0
        %2538 = vmatpush1.bf16.msra.mxu0 0
        %2539 = vmatprep.subr.bf16.mxu0 0
        %2540 = vmatpush1.bf16.msra.mxu0 0
        %2541 = vmatprep.subr.bf16.mxu0 0
        %2542 = vmatpush1.bf16.msra.mxu0 0
        %2543 = vmatprep.subr.bf16.mxu0 0
        %2544 = vmatpush1.bf16.msra.mxu0 0
        %2545 = vmatprep.subr.bf16.mxu0 0
        %2546 = vmatpush1.bf16.msra.mxu0 0
        %2547 = vmatprep.subr.bf16.mxu0 0
        %2548 = vmatpush1.bf16.msra.mxu0 0
        %2549 = vmatprep.subr.bf16.mxu0 0
        %2550 = vmatpush1.bf16.msra.mxu0 0
        %2551 = vmatprep.subr.bf16.mxu0 0
        %2552 = vmatpush1.bf16.msra.mxu0 0
        %2553 = vmatprep.subr.bf16.mxu0 0
        %2554 = vmatpush1.bf16.msra.mxu0 0
        %2555 = vmatprep.subr.bf16.mxu0 0
        %2556 = vmatpush1.bf16.msra.mxu0 0
        %2557 = vmatprep.subr.bf16.mxu0 0
        %2558 = vmatpush1.bf16.msra.mxu0 0
        %2559 = vmatprep.subr.bf16.mxu0 0
        %2560 = vmatpush1.bf16.msra.mxu0 0
        %2561 = vmatprep.subr.bf16.mxu0 0
        %2562 = vmatpush1.bf16.msra.mxu0 0
        %2563 = vmatprep.subr.bf16.mxu0 0
        %2564 = vmatpush1.bf16.msra.mxu0 0
        %2565 = vmatprep.subr.bf16.mxu0 0
        %2566 = vmatpush1.bf16.msra.mxu0 0
        %2567 = vmatprep.mubr.bf16.mxu0 0
        %2568 = vmatmul.mubr.bf16.gmra.mrb[0].mxu0 %v2533
        %v2569 = vpop.f32.mrb[0].mxu0
        %v2570 = vadd.f32 0.0, %v2569
        %v2571 = vpop.f32.mrb[0].mxu0
        %v2572 = vpop.f32.mrb[0].mxu0
        %v2573 = vadd.f32 0.0, %v2572
        %v2574 = vpop.f32.mrb[0].mxu0
        %2575 = vdwg.mxu0
        %v2577 = vsel %vm2119, %v2474, 0
        %2579 = vmatprep.subr.bf16.mxu0 0
        %2580 = vmatpush1.bf16.msra.mxu0 %v1286
        %2581 = vmatprep.subr.bf16.mxu0 0
        %2582 = vmatpush1.bf16.msra.mxu0 0
        %2583 = vmatprep.subr.bf16.mxu0 0
        %2584 = vmatpush1.bf16.msra.mxu0 0
        %2585 = vmatprep.subr.bf16.mxu0 0
        %2586 = vmatpush1.bf16.msra.mxu0 0
        %2587 = vmatprep.subr.bf16.mxu0 0
        %2588 = vmatpush1.bf16.msra.mxu0 0
        %2589 = vmatprep.subr.bf16.mxu0 0
        %2590 = vmatpush1.bf16.msra.mxu0 0
        %2591 = vmatprep.subr.bf16.mxu0 0
        %2592 = vmatpush1.bf16.msra.mxu0 0
        %2593 = vmatprep.subr.bf16.mxu0 0
        %2594 = vmatpush1.bf16.msra.mxu0 0
        %2595 = vmatprep.subr.bf16.mxu0 0
        %2596 = vmatpush1.bf16.msra.mxu0 0
        %2597 = vmatprep.subr.bf16.mxu0 0
        %2598 = vmatpush1.bf16.msra.mxu0 0
        %2599 = vmatprep.subr.bf16.mxu0 0
        %2600 = vmatpush1.bf16.msra.mxu0 0
        %2601 = vmatprep.subr.bf16.mxu0 0
        %2602 = vmatpush1.bf16.msra.mxu0 0
        %2603 = vmatprep.subr.bf16.mxu0 0
        %2604 = vmatpush1.bf16.msra.mxu0 0
        %2605 = vmatprep.subr.bf16.mxu0 0
        %2606 = vmatpush1.bf16.msra.mxu0 0
        %2607 = vmatprep.subr.bf16.mxu0 0
        %2608 = vmatpush1.bf16.msra.mxu0 0
        %2609 = vmatprep.subr.bf16.mxu0 0
        %2610 = vmatpush1.bf16.msra.mxu0 0
        %2611 = vmatprep.mubr.bf16.mxu0 0
        %2612 = vmatmul.mubr.bf16.gmra.mrb[0].mxu0 %v2577
        %v2613 = vpop.f32.mrb[0].mxu0
        %v2614 = vadd.f32 0.0, %v2613
        %v2615 = vpop.f32.mrb[0].mxu0
        %v2616 = vpop.f32.mrb[0].mxu0
        %v2617 = vadd.f32 0.0, %v2616
        %v2618 = vpop.f32.mrb[0].mxu0
        %2619 = vdwg.mxu0
        %v2621 = vsel %vm2119, %v2475, 0
        %2623 = vmatprep.subr.bf16.mxu0 0
        %2624 = vmatpush1.bf16.msra.mxu0 %v1287
        %2625 = vmatprep.subr.bf16.mxu0 0
        %2626 = vmatpush1.bf16.msra.mxu0 0
        %2627 = vmatprep.subr.bf16.mxu0 0
        %2628 = vmatpush1.bf16.msra.mxu0 0
        %2629 = vmatprep.subr.bf16.mxu0 0
        %2630 = vmatpush1.bf16.msra.mxu0 0
        %2631 = vmatprep.subr.bf16.mxu0 0
        %2632 = vmatpush1.bf16.msra.mxu0 0
        %2633 = vmatprep.subr.bf16.mxu0 0
        %2634 = vmatpush1.bf16.msra.mxu0 0
        %2635 = vmatprep.subr.bf16.mxu0 0
        %2636 = vmatpush1.bf16.msra.mxu0 0
        %2637 = vmatprep.subr.bf16.mxu0 0
        %2638 = vmatpush1.bf16.msra.mxu0 0
        %2639 = vmatprep.subr.bf16.mxu0 0
        %2640 = vmatpush1.bf16.msra.mxu0 0
        %2641 = vmatprep.subr.bf16.mxu0 0
        %2642 = vmatpush1.bf16.msra.mxu0 0
        %2643 = vmatprep.subr.bf16.mxu0 0
        %2644 = vmatpush1.bf16.msra.mxu0 0
        %2645 = vmatprep.subr.bf16.mxu0 0
        %2646 = vmatpush1.bf16.msra.mxu0 0
        %2647 = vmatprep.subr.bf16.mxu0 0
        %2648 = vmatpush1.bf16.msra.mxu0 0
        %2649 = vmatprep.subr.bf16.mxu0 0
        %2650 = vmatpush1.bf16.msra.mxu0 0
        %2651 = vmatprep.subr.bf16.mxu0 0
        %2652 = vmatpush1.bf16.msra.mxu0 0
        %2653 = vmatprep.subr.bf16.mxu0 0
        %2654 = vmatpush1.bf16.msra.mxu0 0
        %2655 = vmatprep.mubr.bf16.mxu0 0
        %2656 = vmatmul.mubr.bf16.gmra.mrb[0].mxu0 %v2621
        %v2657 = vpop.f32.mrb[0].mxu0
        %v2658 = vadd.f32 0.0, %v2657
        %v2659 = vpop.f32.mrb[0].mxu0
        %v2660 = vpop.f32.mrb[0].mxu0
        %v2661 = vadd.f32 0.0, %v2660
        %v2662 = vpop.f32.mrb[0].mxu0
        %2663 = vdwg.mxu0
        %v2665 = vsel %vm2119, %v2476, 0
        %2667 = vmatprep.subr.bf16.mxu0 0
        %2668 = vmatpush1.bf16.msra.mxu0 %v1288
        %2669 = vmatprep.subr.bf16.mxu0 0
        %2670 = vmatpush1.bf16.msra.mxu0 0
        %2671 = vmatprep.subr.bf16.mxu0 0
        %2672 = vmatpush1.bf16.msra.mxu0 0
        %2673 = vmatprep.subr.bf16.mxu0 0
        %2674 = vmatpush1.bf16.msra.mxu0 0
        %2675 = vmatprep.subr.bf16.mxu0 0
        %2676 = vmatpush1.bf16.msra.mxu0 0
        %2677 = vmatprep.subr.bf16.mxu0 0
        %2678 = vmatpush1.bf16.msra.mxu0 0
        %2679 = vmatprep.subr.bf16.mxu0 0
        %2680 = vmatpush1.bf16.msra.mxu0 0
        %2681 = vmatprep.subr.bf16.mxu0 0
        %2682 = vmatpush1.bf16.msra.mxu0 0
        %2683 = vmatprep.subr.bf16.mxu0 0
        %2684 = vmatpush1.bf16.msra.mxu0 0
        %2685 = vmatprep.subr.bf16.mxu0 0
        %2686 = vmatpush1.bf16.msra.mxu0 0
        %2687 = vmatprep.subr.bf16.mxu0 0
        %2688 = vmatpush1.bf16.msra.mxu0 0
        %2689 = vmatprep.subr.bf16.mxu0 0
        %2690 = vmatpush1.bf16.msra.mxu0 0
        %2691 = vmatprep.subr.bf16.mxu0 0
        %2692 = vmatpush1.bf16.msra.mxu0 0
        %2693 = vmatprep.subr.bf16.mxu0 0
        %2694 = vmatpush1.bf16.msra.mxu0 0
        %2695 = vmatprep.subr.bf16.mxu0 0
        %2696 = vmatpush1.bf16.msra.mxu0 0
        %2697 = vmatprep.subr.bf16.mxu0 0
        %2698 = vmatpush1.bf16.msra.mxu0 0
        %2699 = vmatprep.mubr.bf16.mxu0 0
        %2700 = vmatmul.mubr.bf16.gmra.mrb[0].mxu0 %v2665
        %v2701 = vpop.f32.mrb[0].mxu0
        %v2702 = vadd.f32 0.0, %v2701
        %v2703 = vpop.f32.mrb[0].mxu0
        %v2704 = vpop.f32.mrb[0].mxu0
        %v2705 = vadd.f32 0.0, %v2704
        %v2706 = vpop.f32.mrb[0].mxu0
        %2707 = vdwg.mxu0
        %v2709 = vsel %vm2119, %v2477, 0
        %2711 = vmatprep.subr.bf16.mxu0 0
        %2712 = vmatpush1.bf16.msra.mxu0 %v1289
        %2713 = vmatprep.subr.bf16.mxu0 0
        %2714 = vmatpush1.bf16.msra.mxu0 0
        %2715 = vmatprep.subr.bf16.mxu0 0
        %2716 = vmatpush1.bf16.msra.mxu0 0
        %2717 = vmatprep.subr.bf16.mxu0 0
        %2718 = vmatpush1.bf16.msra.mxu0 0
        %2719 = vmatprep.subr.bf16.mxu0 0
        %2720 = vmatpush1.bf16.msra.mxu0 0
        %2721 = vmatprep.subr.bf16.mxu0 0
        %2722 = vmatpush1.bf16.msra.mxu0 0
        %2723 = vmatprep.subr.bf16.mxu0 0
        %2724 = vmatpush1.bf16.msra.mxu0 0
        %2725 = vmatprep.subr.bf16.mxu0 0
        %2726 = vmatpush1.bf16.msra.mxu0 0
        %2727 = vmatprep.subr.bf16.mxu0 0
        %2728 = vmatpush1.bf16.msra.mxu0 0
        %2729 = vmatprep.subr.bf16.mxu0 0
        %2730 = vmatpush1.bf16.msra.mxu0 0
        %2731 = vmatprep.subr.bf16.mxu0 0
        %2732 = vmatpush1.bf16.msra.mxu0 0
        %2733 = vmatprep.subr.bf16.mxu0 0
        %2734 = vmatpush1.bf16.msra.mxu0 0
        %2735 = vmatprep.subr.bf16.mxu0 0
        %2736 = vmatpush1.bf16.msra.mxu0 0
        %2737 = vmatprep.subr.bf16.mxu0 0
        %2738 = vmatpush1.bf16.msra.mxu0 0
        %2739 = vmatprep.subr.bf16.mxu0 0
        %2740 = vmatpush1.bf16.msra.mxu0 0
        %2741 = vmatprep.subr.bf16.mxu0 0
        %2742 = vmatpush1.bf16.msra.mxu0 0
        %2743 = vmatprep.mubr.bf16.mxu0 0
        %2744 = vmatmul.mubr.bf16.gmra.mrb[0].mxu0 %v2709
        %v2745 = vpop.f32.mrb[0].mxu0
        %v2746 = vadd.f32 0.0, %v2745
        %v2747 = vpop.f32.mrb[0].mxu0
        %v2748 = vpop.f32.mrb[0].mxu0
        %v2749 = vadd.f32 0.0, %v2748
        %v2750 = vpop.f32.mrb[0].mxu0
        %2751 = vdwg.mxu0
        %v2753 = vsel %vm2119, %v2478, 0
        %2755 = vmatprep.subr.bf16.mxu0 0
        %2756 = vmatpush1.bf16.msra.mxu0 %v1290
        %2757 = vmatprep.subr.bf16.mxu0 0
        %2758 = vmatpush1.bf16.msra.mxu0 0
        %2759 = vmatprep.subr.bf16.mxu0 0
        %2760 = vmatpush1.bf16.msra.mxu0 0
        %2761 = vmatprep.subr.bf16.mxu0 0
        %2762 = vmatpush1.bf16.msra.mxu0 0
        %2763 = vmatprep.subr.bf16.mxu0 0
        %2764 = vmatpush1.bf16.msra.mxu0 0
        %2765 = vmatprep.subr.bf16.mxu0 0
        %2766 = vmatpush1.bf16.msra.mxu0 0
        %2767 = vmatprep.subr.bf16.mxu0 0
        %2768 = vmatpush1.bf16.msra.mxu0 0
        %2769 = vmatprep.subr.bf16.mxu0 0
        %2770 = vmatpush1.bf16.msra.mxu0 0
        %2771 = vmatprep.subr.bf16.mxu0 0
        %2772 = vmatpush1.bf16.msra.mxu0 0
        %2773 = vmatprep.subr.bf16.mxu0 0
        %2774 = vmatpush1.bf16.msra.mxu0 0
        %2775 = vmatprep.subr.bf16.mxu0 0
        %2776 = vmatpush1.bf16.msra.mxu0 0
        %2777 = vmatprep.subr.bf16.mxu0 0
        %2778 = vmatpush1.bf16.msra.mxu0 0
        %2779 = vmatprep.subr.bf16.mxu0 0
        %2780 = vmatpush1.bf16.msra.mxu0 0
        %2781 = vmatprep.subr.bf16.mxu0 0
        %2782 = vmatpush1.bf16.msra.mxu0 0
        %2783 = vmatprep.subr.bf16.mxu0 0
        %2784 = vmatpush1.bf16.msra.mxu0 0
        %2785 = vmatprep.subr.bf16.mxu0 0
        %2786 = vmatpush1.bf16.msra.mxu0 0
        %2787 = vmatprep.mubr.bf16.mxu0 0
        %2788 = vmatmul.mubr.bf16.gmra.mrb[0].mxu0 %v2753
        %v2789 = vpop.f32.mrb[0].mxu0
        %v2790 = vadd.f32 0.0, %v2789
        %v2791 = vpop.f32.mrb[0].mxu0
        %v2792 = vpop.f32.mrb[0].mxu0
        %v2793 = vadd.f32 0.0, %v2792
        %v2794 = vpop.f32.mrb[0].mxu0
        %2795 = vdwg.mxu0
        %v2797 = vsel %vm2119, %v2479, 0
        %2799 = vmatprep.subr.bf16.mxu0 0
        %2800 = vmatpush1.bf16.msra.mxu0 %v1291
        %2801 = vmatprep.subr.bf16.mxu0 0
        %2802 = vmatpush1.bf16.msra.mxu0 0
        %2803 = vmatprep.subr.bf16.mxu0 0
        %2804 = vmatpush1.bf16.msra.mxu0 0
        %2805 = vmatprep.subr.bf16.mxu0 0
        %2806 = vmatpush1.bf16.msra.mxu0 0
        %2807 = vmatprep.subr.bf16.mxu0 0
        %2808 = vmatpush1.bf16.msra.mxu0 0
        %2809 = vmatprep.subr.bf16.mxu0 0
        %2810 = vmatpush1.bf16.msra.mxu0 0
        %2811 = vmatprep.subr.bf16.mxu0 0
        %2812 = vmatpush1.bf16.msra.mxu0 0
        %2813 = vmatprep.subr.bf16.mxu0 0
        %2814 = vmatpush1.bf16.msra.mxu0 0
        %2815 = vmatprep.subr.bf16.mxu0 0
        %2816 = vmatpush1.bf16.msra.mxu0 0
        %2817 = vmatprep.subr.bf16.mxu0 0
        %2818 = vmatpush1.bf16.msra.mxu0 0
        %2819 = vmatprep.subr.bf16.mxu0 0
        %2820 = vmatpush1.bf16.msra.mxu0 0
        %2821 = vmatprep.subr.bf16.mxu0 0
        %2822 = vmatpush1.bf16.msra.mxu0 0
        %2823 = vmatprep.subr.bf16.mxu0 0
        %2824 = vmatpush1.bf16.msra.mxu0 0
        %2825 = vmatprep.subr.bf16.mxu0 0
        %2826 = vmatpush1.bf16.msra.mxu0 0
        %2827 = vmatprep.subr.bf16.mxu0 0
        %2828 = vmatpush1.bf16.msra.mxu0 0
        %2829 = vmatprep.subr.bf16.mxu0 0
        %2830 = vmatpush1.bf16.msra.mxu0 0
        %2831 = vmatprep.mubr.bf16.mxu0 0
        %2832 = vmatmul.mubr.bf16.gmra.mrb[0].mxu0 %v2797
        %v2833 = vpop.f32.mrb[0].mxu0
        %v2834 = vadd.f32 0.0, %v2833
        %v2835 = vpop.f32.mrb[0].mxu0
        %v2836 = vpop.f32.mrb[0].mxu0
        %v2837 = vadd.f32 0.0, %v2836
        %v2838 = vpop.f32.mrb[0].mxu0
        %2839 = vdwg.mxu0
        %v2841 = vsel %vm2119, %v2480, 0
        %2843 = vmatprep.subr.bf16.mxu0 0
        %2844 = vmatpush1.bf16.msra.mxu0 %v1292
        %2845 = vmatprep.subr.bf16.mxu0 0
        %2846 = vmatpush1.bf16.msra.mxu0 0
        %2847 = vmatprep.subr.bf16.mxu0 0
        %2848 = vmatpush1.bf16.msra.mxu0 0
        %2849 = vmatprep.subr.bf16.mxu0 0
        %2850 = vmatpush1.bf16.msra.mxu0 0
        %2851 = vmatprep.subr.bf16.mxu0 0
        %2852 = vmatpush1.bf16.msra.mxu0 0
        %2853 = vmatprep.subr.bf16.mxu0 0
        %2854 = vmatpush1.bf16.msra.mxu0 0
        %2855 = vmatprep.subr.bf16.mxu0 0
        %2856 = vmatpush1.bf16.msra.mxu0 0
        %2857 = vmatprep.subr.bf16.mxu0 0
        %2858 = vmatpush1.bf16.msra.mxu0 0
        %2859 = vmatprep.subr.bf16.mxu0 0
        %2860 = vmatpush1.bf16.msra.mxu0 0
        %2861 = vmatprep.subr.bf16.mxu0 0
        %2862 = vmatpush1.bf16.msra.mxu0 0
        %2863 = vmatprep.subr.bf16.mxu0 0
        %2864 = vmatpush1.bf16.msra.mxu0 0
        %2865 = vmatprep.subr.bf16.mxu0 0
        %2866 = vmatpush1.bf16.msra.mxu0 0
        %2867 = vmatprep.subr.bf16.mxu0 0
        %2868 = vmatpush1.bf16.msra.mxu0 0
        %2869 = vmatprep.subr.bf16.mxu0 0
        %2870 = vmatpush1.bf16.msra.mxu0 0
        %2871 = vmatprep.subr.bf16.mxu0 0
        %2872 = vmatpush1.bf16.msra.mxu0 0
        %2873 = vmatprep.subr.bf16.mxu0 0
        %2874 = vmatpush1.bf16.msra.mxu0 0
        %2875 = vmatprep.mubr.bf16.mxu0 0
        %2876 = vmatmul.mubr.bf16.gmra.mrb[0].mxu0 %v2841
        %v2877 = vpop.f32.mrb[0].mxu0
        %v2878 = vadd.f32 0.0, %v2877
        %v2879 = vpop.f32.mrb[0].mxu0
        %v2880 = vpop.f32.mrb[0].mxu0
        %v2881 = vadd.f32 0.0, %v2880
        %v2882 = vpop.f32.mrb[0].mxu0
        %2883 = vdwg.mxu0
        %v2885 = vsel %vm2119, %v2481, 0
        %2887 = vmatprep.subr.bf16.mxu0 0
        %2888 = vmatpush1.bf16.msra.mxu0 %v1293
        %2889 = vmatprep.subr.bf16.mxu0 0
        %2890 = vmatpush1.bf16.msra.mxu0 0
        %2891 = vmatprep.subr.bf16.mxu0 0
        %2892 = vmatpush1.bf16.msra.mxu0 0
        %2893 = vmatprep.subr.bf16.mxu0 0
        %2894 = vmatpush1.bf16.msra.mxu0 0
        %2895 = vmatprep.subr.bf16.mxu0 0
        %2896 = vmatpush1.bf16.msra.mxu0 0
        %2897 = vmatprep.subr.bf16.mxu0 0
        %2898 = vmatpush1.bf16.msra.mxu0 0
        %2899 = vmatprep.subr.bf16.mxu0 0
        %2900 = vmatpush1.bf16.msra.mxu0 0
        %2901 = vmatprep.subr.bf16.mxu0 0
        %2902 = vmatpush1.bf16.msra.mxu0 0
        %2903 = vmatprep.subr.bf16.mxu0 0
        %2904 = vmatpush1.bf16.msra.mxu0 0
        %2905 = vmatprep.subr.bf16.mxu0 0
        %2906 = vmatpush1.bf16.msra.mxu0 0
        %2907 = vmatprep.subr.bf16.mxu0 0
        %2908 = vmatpush1.bf16.msra.mxu0 0
        %2909 = vmatprep.subr.bf16.mxu0 0
        %2910 = vmatpush1.bf16.msra.mxu0 0
        %2911 = vmatprep.subr.bf16.mxu0 0
        %2912 = vmatpush1.bf16.msra.mxu0 0
        %2913 = vmatprep.subr.bf16.mxu0 0
        %2914 = vmatpush1.bf16.msra.mxu0 0
        %2915 = vmatprep.subr.bf16.mxu0 0
        %2916 = vmatpush1.bf16.msra.mxu0 0
        %2917 = vmatprep.subr.bf16.mxu0 0
        %2918 = vmatpush1.bf16.msra.mxu0 0
        %2919 = vmatprep.mubr.bf16.mxu0 0
        %2920 = vmatmul.mubr.bf16.gmra.mrb[0].mxu0 %v2885
        %v2921 = vpop.f32.mrb[0].mxu0
        %v2922 = vadd.f32 0.0, %v2921
        %v2923 = vpop.f32.mrb[0].mxu0
        %v2924 = vpop.f32.mrb[0].mxu0
        %v2925 = vadd.f32 0.0, %v2924
        %v2926 = vpop.f32.mrb[0].mxu0
        %2927 = vdwg.mxu0
        %v2929 = vsel %vm2119, %v2482, 0
        %2931 = vmatprep.subr.bf16.mxu0 0
        %2932 = vmatpush1.bf16.msra.mxu0 %v1294
        %2933 = vmatprep.subr.bf16.mxu0 0
        %2934 = vmatpush1.bf16.msra.mxu0 0
        %2935 = vmatprep.subr.bf16.mxu0 0
        %2936 = vmatpush1.bf16.msra.mxu0 0
        %2937 = vmatprep.subr.bf16.mxu0 0
        %2938 = vmatpush1.bf16.msra.mxu0 0
        %2939 = vmatprep.subr.bf16.mxu0 0
        %2940 = vmatpush1.bf16.msra.mxu0 0
        %2941 = vmatprep.subr.bf16.mxu0 0
        %2942 = vmatpush1.bf16.msra.mxu0 0
        %2943 = vmatprep.subr.bf16.mxu0 0
        %2944 = vmatpush1.bf16.msra.mxu0 0
        %2945 = vmatprep.subr.bf16.mxu0 0
        %2946 = vmatpush1.bf16.msra.mxu0 0
        %2947 = vmatprep.subr.bf16.mxu0 0
        %2948 = vmatpush1.bf16.msra.mxu0 0
        %2949 = vmatprep.subr.bf16.mxu0 0
        %2950 = vmatpush1.bf16.msra.mxu0 0
        %2951 = vmatprep.subr.bf16.mxu0 0
        %2952 = vmatpush1.bf16.msra.mxu0 0
        %2953 = vmatprep.subr.bf16.mxu0 0
        %2954 = vmatpush1.bf16.msra.mxu0 0
        %2955 = vmatprep.subr.bf16.mxu0 0
        %2956 = vmatpush1.bf16.msra.mxu0 0
        %2957 = vmatprep.subr.bf16.mxu0 0
        %2958 = vmatpush1.bf16.msra.mxu0 0
        %2959 = vmatprep.subr.bf16.mxu0 0
        %2960 = vmatpush1.bf16.msra.mxu0 0
        %2961 = vmatprep.subr.bf16.mxu0 0
        %2962 = vmatpush1.bf16.msra.mxu0 0
        %2963 = vmatprep.mubr.bf16.mxu0 0
        %2964 = vmatmul.mubr.bf16.gmra.mrb[0].mxu0 %v2929
        %v2965 = vpop.f32.mrb[0].mxu0
        %v2966 = vadd.f32 0.0, %v2965
        %v2967 = vpop.f32.mrb[0].mxu0
        %v2968 = vpop.f32.mrb[0].mxu0
        %v2969 = vadd.f32 0.0, %v2968
        %v2970 = vpop.f32.mrb[0].mxu0
        %2971 = vdwg.mxu0
        %v2973 = vsel %vm2119, %v2483, 0
        %2975 = vmatprep.subr.bf16.mxu0 0
        %2976 = vmatpush1.bf16.msra.mxu0 %v1295
        %2977 = vmatprep.subr.bf16.mxu0 0
        %2978 = vmatpush1.bf16.msra.mxu0 0
        %2979 = vmatprep.subr.bf16.mxu0 0
        %2980 = vmatpush1.bf16.msra.mxu0 0
        %2981 = vmatprep.subr.bf16.mxu0 0
        %2982 = vmatpush1.bf16.msra.mxu0 0
        %2983 = vmatprep.subr.bf16.mxu0 0
        %2984 = vmatpush1.bf16.msra.mxu0 0
        %2985 = vmatprep.subr.bf16.mxu0 0
        %2986 = vmatpush1.bf16.msra.mxu0 0
        %2987 = vmatprep.subr.bf16.mxu0 0
        %2988 = vmatpush1.bf16.msra.mxu0 0
        %2989 = vmatprep.subr.bf16.mxu0 0
        %2990 = vmatpush1.bf16.msra.mxu0 0
        %2991 = vmatprep.subr.bf16.mxu0 0
        %2992 = vmatpush1.bf16.msra.mxu0 0
        %2993 = vmatprep.subr.bf16.mxu0 0
        %2994 = vmatpush1.bf16.msra.mxu0 0
        %2995 = vmatprep.subr.bf16.mxu0 0
        %2996 = vmatpush1.bf16.msra.mxu0 0
        %2997 = vmatprep.subr.bf16.mxu0 0
        %2998 = vmatpush1.bf16.msra.mxu0 0
        %2999 = vmatprep.subr.bf16.mxu0 0
        %3000 = vmatpush1.bf16.msra.mxu0 0
        %3001 = vmatprep.subr.bf16.mxu0 0
        %3002 = vmatpush1.bf16.msra.mxu0 0
        %3003 = vmatprep.subr.bf16.mxu0 0
        %3004 = vmatpush1.bf16.msra.mxu0 0
        %3005 = vmatprep.subr.bf16.mxu0 0
        %3006 = vmatpush1.bf16.msra.mxu0 0
        %3007 = vmatprep.mubr.bf16.mxu0 0
        %3008 = vmatmul.mubr.bf16.gmra.mrb[0].mxu0 %v2973
        %v3009 = vpop.f32.mrb[0].mxu0
        %v3010 = vadd.f32 0.0, %v3009
        %v3011 = vpop.f32.mrb[0].mxu0
        %v3012 = vpop.f32.mrb[0].mxu0
        %v3013 = vadd.f32 0.0, %v3012
        %v3014 = vpop.f32.mrb[0].mxu0
        %3015 = vdwg.mxu0
        %v3017 = vsel %vm2119, %v2484, 0
        %3019 = vmatprep.subr.bf16.mxu0 0
        %3020 = vmatpush1.bf16.msra.mxu0 %v1296
        %3021 = vmatprep.subr.bf16.mxu0 0
        %3022 = vmatpush1.bf16.msra.mxu0 0
        %3023 = vmatprep.subr.bf16.mxu0 0
        %3024 = vmatpush1.bf16.msra.mxu0 0
        %3025 = vmatprep.subr.bf16.mxu0 0
        %3026 = vmatpush1.bf16.msra.mxu0 0
        %3027 = vmatprep.subr.bf16.mxu0 0
        %3028 = vmatpush1.bf16.msra.mxu0 0
        %3029 = vmatprep.subr.bf16.mxu0 0
        %3030 = vmatpush1.bf16.msra.mxu0 0
        %3031 = vmatprep.subr.bf16.mxu0 0
        %3032 = vmatpush1.bf16.msra.mxu0 0
        %3033 = vmatprep.subr.bf16.mxu0 0
        %3034 = vmatpush1.bf16.msra.mxu0 0
        %3035 = vmatprep.subr.bf16.mxu0 0
        %3036 = vmatpush1.bf16.msra.mxu0 0
        %3037 = vmatprep.subr.bf16.mxu0 0
        %3038 = vmatpush1.bf16.msra.mxu0 0
        %3039 = vmatprep.subr.bf16.mxu0 0
        %3040 = vmatpush1.bf16.msra.mxu0 0
        %3041 = vmatprep.subr.bf16.mxu0 0
        %3042 = vmatpush1.bf16.msra.mxu0 0
        %3043 = vmatprep.subr.bf16.mxu0 0
        %3044 = vmatpush1.bf16.msra.mxu0 0
        %3045 = vmatprep.subr.bf16.mxu0 0
        %3046 = vmatpush1.bf16.msra.mxu0 0
        %3047 = vmatprep.subr.bf16.mxu0 0
        %3048 = vmatpush1.bf16.msra.mxu0 0
        %3049 = vmatprep.subr.bf16.mxu0 0
        %3050 = vmatpush1.bf16.msra.mxu0 0
        %3051 = vmatprep.mubr.bf16.mxu0 0
        %3052 = vmatmul.mubr.bf16.gmra.mrb[0].mxu0 %v3017
        %v3053 = vpop.f32.mrb[0].mxu0
        %v3054 = vadd.f32 0.0, %v3053
        %v3055 = vpop.f32.mrb[0].mxu0
        %v3056 = vpop.f32.mrb[0].mxu0
        %v3057 = vadd.f32 0.0, %v3056
        %v3058 = vpop.f32.mrb[0].mxu0
        %3059 = vdwg.mxu0
        %v3061 = vsel %vm2119, %v2485, 0
        %3063 = vmatprep.subr.bf16.mxu0 0
        %3064 = vmatpush1.bf16.msra.mxu0 %v1297
        %3065 = vmatprep.subr.bf16.mxu0 0
        %3066 = vmatpush1.bf16.msra.mxu0 0
        %3067 = vmatprep.subr.bf16.mxu0 0
        %3068 = vmatpush1.bf16.msra.mxu0 0
        %3069 = vmatprep.subr.bf16.mxu0 0
        %3070 = vmatpush1.bf16.msra.mxu0 0
        %3071 = vmatprep.subr.bf16.mxu0 0
        %3072 = vmatpush1.bf16.msra.mxu0 0
        %3073 = vmatprep.subr.bf16.mxu0 0
        %3074 = vmatpush1.bf16.msra.mxu0 0
        %3075 = vmatprep.subr.bf16.mxu0 0
        %3076 = vmatpush1.bf16.msra.mxu0 0
        %3077 = vmatprep.subr.bf16.mxu0 0
        %3078 = vmatpush1.bf16.msra.mxu0 0
        %3079 = vmatprep.subr.bf16.mxu0 0
        %3080 = vmatpush1.bf16.msra.mxu0 0
        %3081 = vmatprep.subr.bf16.mxu0 0
        %3082 = vmatpush1.bf16.msra.mxu0 0
        %3083 = vmatprep.subr.bf16.mxu0 0
        %3084 = vmatpush1.bf16.msra.mxu0 0
        %3085 = vmatprep.subr.bf16.mxu0 0
        %3086 = vmatpush1.bf16.msra.mxu0 0
        %3087 = vmatprep.subr.bf16.mxu0 0
        %3088 = vmatpush1.bf16.msra.mxu0 0
        %3089 = vmatprep.subr.bf16.mxu0 0
        %3090 = vmatpush1.bf16.msra.mxu0 0
        %3091 = vmatprep.subr.bf16.mxu0 0
        %3092 = vmatpush1.bf16.msra.mxu0 0
        %3093 = vmatprep.subr.bf16.mxu0 0
        %3094 = vmatpush1.bf16.msra.mxu0 0
        %3095 = vmatprep.mubr.bf16.mxu0 0
        %3096 = vmatmul.mubr.bf16.gmra.mrb[0].mxu0 %v3061
        %v3097 = vpop.f32.mrb[0].mxu0
        %v3098 = vadd.f32 0.0, %v3097
        %v3099 = vpop.f32.mrb[0].mxu0
        %v3100 = vpop.f32.mrb[0].mxu0
        %v3101 = vadd.f32 0.0, %v3100
        %v3102 = vpop.f32.mrb[0].mxu0
        %3103 = vdwg.mxu0
        %v3105 = vsel %vm2119, %v2486, 0
        %3107 = vmatprep.subr.bf16.mxu0 0
        %3108 = vmatpush1.bf16.msra.mxu0 %v1298
        %3109 = vmatprep.subr.bf16.mxu0 0
        %3110 = vmatpush1.bf16.msra.mxu0 0
        %3111 = vmatprep.subr.bf16.mxu0 0
        %3112 = vmatpush1.bf16.msra.mxu0 0
        %3113 = vmatprep.subr.bf16.mxu0 0
        %3114 = vmatpush1.bf16.msra.mxu0 0
        %3115 = vmatprep.subr.bf16.mxu0 0
        %3116 = vmatpush1.bf16.msra.mxu0 0
        %3117 = vmatprep.subr.bf16.mxu0 0
        %3118 = vmatpush1.bf16.msra.mxu0 0
        %3119 = vmatprep.subr.bf16.mxu0 0
        %3120 = vmatpush1.bf16.msra.mxu0 0
        %3121 = vmatprep.subr.bf16.mxu0 0
        %3122 = vmatpush1.bf16.msra.mxu0 0
        %3123 = vmatprep.subr.bf16.mxu0 0
        %3124 = vmatpush1.bf16.msra.mxu0 0
        %3125 = vmatprep.subr.bf16.mxu0 0
        %3126 = vmatpush1.bf16.msra.mxu0 0
        %3127 = vmatprep.subr.bf16.mxu0 0
        %3128 = vmatpush1.bf16.msra.mxu0 0
        %3129 = vmatprep.subr.bf16.mxu0 0
        %3130 = vmatpush1.bf16.msra.mxu0 0
        %3131 = vmatprep.subr.bf16.mxu0 0
        %3132 = vmatpush1.bf16.msra.mxu0 0
        %3133 = vmatprep.subr.bf16.mxu0 0
        %3134 = vmatpush1.bf16.msra.mxu0 0
        %3135 = vmatprep.subr.bf16.mxu0 0
        %3136 = vmatpush1.bf16.msra.mxu0 0
        %3137 = vmatprep.subr.bf16.mxu0 0
        %3138 = vmatpush1.bf16.msra.mxu0 0
        %3139 = vmatprep.mubr.bf16.mxu0 0
        %3140 = vmatmul.mubr.bf16.gmra.mrb[0].mxu0 %v3105
        %v3141 = vpop.f32.mrb[0].mxu0
        %v3142 = vadd.f32 0.0, %v3141
        %v3143 = vpop.f32.mrb[0].mxu0
        %v3144 = vpop.f32.mrb[0].mxu0
        %v3145 = vadd.f32 0.0, %v3144
        %v3146 = vpop.f32.mrb[0].mxu0
        %3147 = vdwg.mxu0
        %v3149 = vsel %vm2119, %v2487, 0
        %3151 = vmatprep.subr.bf16.mxu0 0
        %3152 = vmatpush1.bf16.msra.mxu0 %v1299
        %3153 = vmatprep.subr.bf16.mxu0 0
        %3154 = vmatpush1.bf16.msra.mxu0 0
        %3155 = vmatprep.subr.bf16.mxu0 0
        %3156 = vmatpush1.bf16.msra.mxu0 0
        %3157 = vmatprep.subr.bf16.mxu0 0
        %3158 = vmatpush1.bf16.msra.mxu0 0
        %3159 = vmatprep.subr.bf16.mxu0 0
        %3160 = vmatpush1.bf16.msra.mxu0 0
        %3161 = vmatprep.subr.bf16.mxu0 0
        %3162 = vmatpush1.bf16.msra.mxu0 0
        %3163 = vmatprep.subr.bf16.mxu0 0
        %3164 = vmatpush1.bf16.msra.mxu0 0
        %3165 = vmatprep.subr.bf16.mxu0 0
        %3166 = vmatpush1.bf16.msra.mxu0 0
        %3167 = vmatprep.subr.bf16.mxu0 0
        %3168 = vmatpush1.bf16.msra.mxu0 0
        %3169 = vmatprep.subr.bf16.mxu0 0
        %3170 = vmatpush1.bf16.msra.mxu0 0
        %3171 = vmatprep.subr.bf16.mxu0 0
        %3172 = vmatpush1.bf16.msra.mxu0 0
        %3173 = vmatprep.subr.bf16.mxu0 0
        %3174 = vmatpush1.bf16.msra.mxu0 0
        %3175 = vmatprep.subr.bf16.mxu0 0
        %3176 = vmatpush1.bf16.msra.mxu0 0
        %3177 = vmatprep.subr.bf16.mxu0 0
        %3178 = vmatpush1.bf16.msra.mxu0 0
        %3179 = vmatprep.subr.bf16.mxu0 0
        %3180 = vmatpush1.bf16.msra.mxu0 0
        %3181 = vmatprep.subr.bf16.mxu0 0
        %3182 = vmatpush1.bf16.msra.mxu0 0
        %3183 = vmatprep.mubr.bf16.mxu0 0
        %3184 = vmatmul.mubr.bf16.gmra.mrb[0].mxu0 %v3149
        %v3185 = vpop.f32.mrb[0].mxu0
        %v3186 = vadd.f32 0.0, %v3185
        %v3187 = vpop.f32.mrb[0].mxu0
        %v3188 = vpop.f32.mrb[0].mxu0
        %v3189 = vadd.f32 0.0, %v3188
        %v3190 = vpop.f32.mrb[0].mxu0
        %3191 = vdwg.mxu0
        %v3192 = vpack.c.bf16 %v2529, %v2526
        %v3193 = vpack.c.bf16 %v2573, %v2570
        %v3194 = vpack.c.bf16 %v2617, %v2614
        %v3195 = vpack.c.bf16 %v2661, %v2658
        %v3196 = vpack.c.bf16 %v2705, %v2702
        %v3197 = vpack.c.bf16 %v2749, %v2746
        %v3198 = vpack.c.bf16 %v2793, %v2790
        %v3199 = vpack.c.bf16 %v2837, %v2834
        %v3200 = vpack.c.bf16 %v2881, %v2878
        %v3201 = vpack.c.bf16 %v2925, %v2922
        %v3202 = vpack.c.bf16 %v2969, %v2966
        %v3203 = vpack.c.bf16 %v3013, %v3010
        %v3204 = vpack.c.bf16 %v3057, %v3054
        %v3205 = vpack.c.bf16 %v3101, %v3098
        %v3206 = vpack.c.bf16 %v3145, %v3142
        %v3207 = vpack.c.bf16 %v3189, %v3186
        %v3208 = vld [vmem:[#allocation2] sm:$0xff]
        %v3209 = vld [vmem:[#allocation2 + $0x8] sm:$0xff]
        %v3210 = vld [vmem:[#allocation2 + $0x10] sm:$0xff]
        %v3211 = vld [vmem:[#allocation2 + $0x18] sm:$0xff]
        %v3212 = vld [vmem:[#allocation2 + $0x20] sm:$0xff]
        %v3213 = vld [vmem:[#allocation2 + $0x28] sm:$0xff]
        %v3214 = vld [vmem:[#allocation2 + $0x30] sm:$0xff]
        %v3215 = vld [vmem:[#allocation2 + $0x38] sm:$0xff]
        %v3216 = vld [vmem:[#allocation2 + $0x40] sm:$0xff]
        %v3217 = vld [vmem:[#allocation2 + $0x48] sm:$0xff]
        %v3218 = vld [vmem:[#allocation2 + $0x50] sm:$0xff]
        %v3219 = vld [vmem:[#allocation2 + $0x58] sm:$0xff]
        %v3220 = vld [vmem:[#allocation2 + $0x60] sm:$0xff]
        %v3221 = vld [vmem:[#allocation2 + $0x68] sm:$0xff]
        %v3222 = vld [vmem:[#allocation2 + $0x70] sm:$0xff]
        %v3223 = vld [vmem:[#allocation2 + $0x78] sm:$0xff]
        %v3224 = vld [vmem:[#allocation2 + $0x80] sm:$0xff]
        %v3225 = vld [vmem:[#allocation2 + $0x88] sm:$0xff]
        %v3226 = vld [vmem:[#allocation2 + $0x90] sm:$0xff]
        %v3227 = vld [vmem:[#allocation2 + $0x98] sm:$0xff]
        %v3228 = vld [vmem:[#allocation2 + $0xa0] sm:$0xff]
        %v3229 = vld [vmem:[#allocation2 + $0xa8] sm:$0xff]
        %v3230 = vld [vmem:[#allocation2 + $0xb0] sm:$0xff]
        %v3231 = vld [vmem:[#allocation2 + $0xb8] sm:$0xff]
        %v3232 = vld [vmem:[#allocation2 + $0xc0] sm:$0xff]
        %v3233 = vld [vmem:[#allocation2 + $0xc8] sm:$0xff]
        %v3234 = vld [vmem:[#allocation2 + $0xd0] sm:$0xff]
        %v3235 = vld [vmem:[#allocation2 + $0xd8] sm:$0xff]
        %v3236 = vld [vmem:[#allocation2 + $0xe0] sm:$0xff]
        %v3237 = vld [vmem:[#allocation2 + $0xe8] sm:$0xff]
        %v3238 = vld [vmem:[#allocation2 + $0xf0] sm:$0xff]
        %v3239 = vld [vmem:[#allocation2 + $0xf8] sm:$0xff]
        %v3240 = vld [vmem:[%s490] sm:$0xf]
        %v3242 = vsel %vm1302, %v3192, 0
        %v3245 = vsel %vm1302, %v3193, 0
        %v3248 = vsel %vm1302, %v3194, 0
        %v3251 = vsel %vm1302, %v3195, 0
        %v3254 = vsel %vm1302, %v3196, 0
        %v3257 = vsel %vm1302, %v3197, 0
        %v3260 = vsel %vm1302, %v3198, 0
        %v3263 = vsel %vm1302, %v3199, 0
        %v3266 = vsel %vm1302, %v3200, 0
        %v3269 = vsel %vm1302, %v3201, 0
        %v3272 = vsel %vm1302, %v3202, 0
        %v3275 = vsel %vm1302, %v3203, 0
        %v3278 = vsel %vm1302, %v3204, 0
        %v3281 = vsel %vm1302, %v3205, 0
        %v3284 = vsel %vm1302, %v3206, 0
        %v3287 = vsel %vm1302, %v3207, 0
        %vm3289 = vcmask 1043456
        %v3291 = vsel %vm3289, %v3240, 0
        %3293 = vmatprep.subr.bf16.mxu0 0
        %3294 = vmatpush1.bf16.msra.mxu0 %v3291
        %3295 = vmatprep.subr.bf16.mxu0 0
        %3296 = vmatpush1.bf16.msra.mxu0 0
        %3297 = vmatprep.subr.bf16.mxu0 0
        %3298 = vmatpush1.bf16.msra.mxu0 0
        %3299 = vmatprep.subr.bf16.mxu0 0
        %3300 = vmatpush1.bf16.msra.mxu0 0
        %3301 = vmatprep.subr.bf16.mxu0 0
        %3302 = vmatpush1.bf16.msra.mxu0 0
        %3303 = vmatprep.subr.bf16.mxu0 0
        %3304 = vmatpush1.bf16.msra.mxu0 0
        %3305 = vmatprep.subr.bf16.mxu0 0
        %3306 = vmatpush1.bf16.msra.mxu0 0
        %3307 = vmatprep.subr.bf16.mxu0 0
        %3308 = vmatpush1.bf16.msra.mxu0 0
        %3309 = vmatprep.subr.bf16.mxu0 0
        %3310 = vmatpush1.bf16.msra.mxu0 0
        %3311 = vmatprep.subr.bf16.mxu0 0
        %3312 = vmatpush1.bf16.msra.mxu0 0
        %3313 = vmatprep.subr.bf16.mxu0 0
        %3314 = vmatpush1.bf16.msra.mxu0 0
        %3315 = vmatprep.subr.bf16.mxu0 0
        %3316 = vmatpush1.bf16.msra.mxu0 0
        %3317 = vmatprep.subr.bf16.mxu0 0
        %3318 = vmatpush1.bf16.msra.mxu0 0
        %3319 = vmatprep.subr.bf16.mxu0 0
        %3320 = vmatpush1.bf16.msra.mxu0 0
        %3321 = vmatprep.subr.bf16.mxu0 0
        %3322 = vmatpush1.bf16.msra.mxu0 0
        %3323 = vmatprep.subr.bf16.mxu0 0
        %3324 = vmatpush1.bf16.msra.mxu0 0
        %3325 = vmatprep.mubr.bf16.mxu0 0
        %3326 = vmatmul.mubr.bf16.gmra.mrb[0].mxu0 %v3242
        %v3327 = vpop.f32.mrb[0].mxu0
        %v3328 = vadd.f32 0.0, %v3327
        %v3329 = vpop.f32.mrb[0].mxu0
        %v3330 = vpop.f32.mrb[0].mxu0
        %v3331 = vadd.f32 0.0, %v3330
        %v3332 = vpop.f32.mrb[0].mxu0
        %3333 = vmatprep.mubr.bf16.mxu0 0
        %3334 = vmatmul.mubr.bf16.gmra.mrb[0].mxu0 %v3245
        %v3335 = vpop.f32.mrb[0].mxu0
        %v3336 = vadd.f32 0.0, %v3335
        %v3337 = vpop.f32.mrb[0].mxu0
        %v3338 = vpop.f32.mrb[0].mxu0
        %v3339 = vadd.f32 0.0, %v3338
        %v3340 = vpop.f32.mrb[0].mxu0
        %3341 = vmatprep.mubr.bf16.mxu0 0
        %3342 = vmatmul.mubr.bf16.gmra.mrb[0].mxu0 %v3248
        %v3343 = vpop.f32.mrb[0].mxu0
        %v3344 = vadd.f32 0.0, %v3343
        %v3345 = vpop.f32.mrb[0].mxu0
        %v3346 = vpop.f32.mrb[0].mxu0
        %v3347 = vadd.f32 0.0, %v3346
        %v3348 = vpop.f32.mrb[0].mxu0
        %3349 = vmatprep.mubr.bf16.mxu0 0
        %3350 = vmatmul.mubr.bf16.gmra.mrb[0].mxu0 %v3251
        %v3351 = vpop.f32.mrb[0].mxu0
        %v3352 = vadd.f32 0.0, %v3351
        %v3353 = vpop.f32.mrb[0].mxu0
        %v3354 = vpop.f32.mrb[0].mxu0
        %v3355 = vadd.f32 0.0, %v3354
        %v3356 = vpop.f32.mrb[0].mxu0
        %3357 = vmatprep.mubr.bf16.mxu0 0
        %3358 = vmatmul.mubr.bf16.gmra.mrb[0].mxu0 %v3254
        %v3359 = vpop.f32.mrb[0].mxu0
        %v3360 = vadd.f32 0.0, %v3359
        %v3361 = vpop.f32.mrb[0].mxu0
        %v3362 = vpop.f32.mrb[0].mxu0
        %v3363 = vadd.f32 0.0, %v3362
        %v3364 = vpop.f32.mrb[0].mxu0
        %3365 = vmatprep.mubr.bf16.mxu0 0
        %3366 = vmatmul.mubr.bf16.gmra.mrb[0].mxu0 %v3257
        %v3367 = vpop.f32.mrb[0].mxu0
        %v3368 = vadd.f32 0.0, %v3367
        %v3369 = vpop.f32.mrb[0].mxu0
        %v3370 = vpop.f32.mrb[0].mxu0
        %v3371 = vadd.f32 0.0, %v3370
        %v3372 = vpop.f32.mrb[0].mxu0
        %3373 = vmatprep.mubr.bf16.mxu0 0
        %3374 = vmatmul.mubr.bf16.gmra.mrb[0].mxu0 %v3260
        %v3375 = vpop.f32.mrb[0].mxu0
        %v3376 = vadd.f32 0.0, %v3375
        %v3377 = vpop.f32.mrb[0].mxu0
        %v3378 = vpop.f32.mrb[0].mxu0
        %v3379 = vadd.f32 0.0, %v3378
        %v3380 = vpop.f32.mrb[0].mxu0
        %3381 = vmatprep.mubr.bf16.mxu0 0
        %3382 = vmatmul.mubr.bf16.gmra.mrb[0].mxu0 %v3263
        %v3383 = vpop.f32.mrb[0].mxu0
        %v3384 = vadd.f32 0.0, %v3383
        %v3385 = vpop.f32.mrb[0].mxu0
        %v3386 = vpop.f32.mrb[0].mxu0
        %v3387 = vadd.f32 0.0, %v3386
        %v3388 = vpop.f32.mrb[0].mxu0
        %3389 = vmatprep.mubr.bf16.mxu0 0
        %3390 = vmatmul.mubr.bf16.gmra.mrb[0].mxu0 %v3266
        %v3391 = vpop.f32.mrb[0].mxu0
        %v3392 = vadd.f32 0.0, %v3391
        %v3393 = vpop.f32.mrb[0].mxu0
        %v3394 = vpop.f32.mrb[0].mxu0
        %v3395 = vadd.f32 0.0, %v3394
        %v3396 = vpop.f32.mrb[0].mxu0
        %3397 = vmatprep.mubr.bf16.mxu0 0
        %3398 = vmatmul.mubr.bf16.gmra.mrb[0].mxu0 %v3269
        %v3399 = vpop.f32.mrb[0].mxu0
        %v3400 = vadd.f32 0.0, %v3399
        %v3401 = vpop.f32.mrb[0].mxu0
        %v3402 = vpop.f32.mrb[0].mxu0
        %v3403 = vadd.f32 0.0, %v3402
        %v3404 = vpop.f32.mrb[0].mxu0
        %3405 = vmatprep.mubr.bf16.mxu0 0
        %3406 = vmatmul.mubr.bf16.gmra.mrb[0].mxu0 %v3272
        %v3407 = vpop.f32.mrb[0].mxu0
        %v3408 = vadd.f32 0.0, %v3407
        %v3409 = vpop.f32.mrb[0].mxu0
        %v3410 = vpop.f32.mrb[0].mxu0
        %v3411 = vadd.f32 0.0, %v3410
        %v3412 = vpop.f32.mrb[0].mxu0
        %3413 = vmatprep.mubr.bf16.mxu0 0
        %3414 = vmatmul.mubr.bf16.gmra.mrb[0].mxu0 %v3275
        %v3415 = vpop.f32.mrb[0].mxu0
        %v3416 = vadd.f32 0.0, %v3415
        %v3417 = vpop.f32.mrb[0].mxu0
        %v3418 = vpop.f32.mrb[0].mxu0
        %v3419 = vadd.f32 0.0, %v3418
        %v3420 = vpop.f32.mrb[0].mxu0
        %3421 = vmatprep.mubr.bf16.mxu0 0
        %3422 = vmatmul.mubr.bf16.gmra.mrb[0].mxu0 %v3278
        %v3423 = vpop.f32.mrb[0].mxu0
        %v3424 = vadd.f32 0.0, %v3423
        %v3425 = vpop.f32.mrb[0].mxu0
        %v3426 = vpop.f32.mrb[0].mxu0
        %v3427 = vadd.f32 0.0, %v3426
        %v3428 = vpop.f32.mrb[0].mxu0
        %3429 = vmatprep.mubr.bf16.mxu0 0
        %3430 = vmatmul.mubr.bf16.gmra.mrb[0].mxu0 %v3281
        %v3431 = vpop.f32.mrb[0].mxu0
        %v3432 = vadd.f32 0.0, %v3431
        %v3433 = vpop.f32.mrb[0].mxu0
        %v3434 = vpop.f32.mrb[0].mxu0
        %v3435 = vadd.f32 0.0, %v3434
        %v3436 = vpop.f32.mrb[0].mxu0
        %3437 = vmatprep.mubr.bf16.mxu0 0
        %3438 = vmatmul.mubr.bf16.gmra.mrb[0].mxu0 %v3284
        %v3439 = vpop.f32.mrb[0].mxu0
        %v3440 = vadd.f32 0.0, %v3439
        %v3441 = vpop.f32.mrb[0].mxu0
        %v3442 = vpop.f32.mrb[0].mxu0
        %v3443 = vadd.f32 0.0, %v3442
        %v3444 = vpop.f32.mrb[0].mxu0
        %3445 = vmatprep.mubr.bf16.mxu0 0
        %3446 = vmatmul.mubr.bf16.gmra.mrb[0].mxu0 %v3287
        %v3447 = vpop.f32.mrb[0].mxu0
        %v3448 = vadd.f32 0.0, %v3447
        %v3449 = vpop.f32.mrb[0].mxu0
        %v3450 = vpop.f32.mrb[0].mxu0
        %v3451 = vadd.f32 0.0, %v3450
        %v3452 = vpop.f32.mrb[0].mxu0
        %3453 = vdwg.mxu0
        %v3454 = vadd.f32 %v3208, %v3328
        %v3455 = vadd.f32 %v3209, %v3331
        %v3456 = vadd.f32 %v3210, %v3336
        %v3457 = vadd.f32 %v3211, %v3339
        %v3458 = vadd.f32 %v3212, %v3344
        %v3459 = vadd.f32 %v3213, %v3347
        %v3460 = vadd.f32 %v3214, %v3352
        %v3461 = vadd.f32 %v3215, %v3355
        %v3462 = vadd.f32 %v3216, %v3360
        %v3463 = vadd.f32 %v3217, %v3363
        %v3464 = vadd.f32 %v3218, %v3368
        %v3465 = vadd.f32 %v3219, %v3371
        %v3466 = vadd.f32 %v3220, %v3376
        %v3467 = vadd.f32 %v3221, %v3379
        %v3468 = vadd.f32 %v3222, %v3384
        %v3469 = vadd.f32 %v3223, %v3387
        %v3470 = vadd.f32 %v3224, %v3392
        %v3471 = vadd.f32 %v3225, %v3395
        %v3472 = vadd.f32 %v3226, %v3400
        %v3473 = vadd.f32 %v3227, %v3403
        %v3474 = vadd.f32 %v3228, %v3408
        %v3475 = vadd.f32 %v3229, %v3411
        %v3476 = vadd.f32 %v3230, %v3416
        %v3477 = vadd.f32 %v3231, %v3419
        %v3478 = vadd.f32 %v3232, %v3424
        %v3479 = vadd.f32 %v3233, %v3427
        %v3480 = vadd.f32 %v3234, %v3432
        %v3481 = vadd.f32 %v3235, %v3435
        %v3482 = vadd.f32 %v3236, %v3440
        %v3483 = vadd.f32 %v3237, %v3443
        %v3484 = vadd.f32 %v3238, %v3448
        %v3485 = vadd.f32 %v3239, %v3451
        %3486 = vst.msk [vmem:[#allocation2] sm:$0xff] %vm670, %v3454
        %3487 = vst.msk [vmem:[#allocation2 + $0x8] sm:$0xff] %vm670, %v3455
        %3488 = vst.msk [vmem:[#allocation2 + $0x10] sm:$0xff] %vm670, %v3456
        %3489 = vst.msk [vmem:[#allocation2 + $0x18] sm:$0xff] %vm670, %v3457
        %3490 = vst.msk [vmem:[#allocation2 + $0x20] sm:$0xff] %vm670, %v3458
        %3491 = vst.msk [vmem:[#allocation2 + $0x28] sm:$0xff] %vm670, %v3459
        %3492 = vst.msk [vmem:[#allocation2 + $0x30] sm:$0xff] %vm670, %v3460
        %3493 = vst.msk [vmem:[#allocation2 + $0x38] sm:$0xff] %vm670, %v3461
        %3494 = vst.msk [vmem:[#allocation2 + $0x40] sm:$0xff] %vm670, %v3462
        %3495 = vst.msk [vmem:[#allocation2 + $0x48] sm:$0xff] %vm670, %v3463
        %3496 = vst.msk [vmem:[#allocation2 + $0x50] sm:$0xff] %vm670, %v3464
        %3497 = vst.msk [vmem:[#allocation2 + $0x58] sm:$0xff] %vm670, %v3465
        %3498 = vst.msk [vmem:[#allocation2 + $0x60] sm:$0xff] %vm670, %v3466
        %3499 = vst.msk [vmem:[#allocation2 + $0x68] sm:$0xff] %vm670, %v3467
        %3500 = vst.msk [vmem:[#allocation2 + $0x70] sm:$0xff] %vm670, %v3468
        %3501 = vst.msk [vmem:[#allocation2 + $0x78] sm:$0xff] %vm670, %v3469
        %3502 = vst.msk [vmem:[#allocation2 + $0x80] sm:$0xff] %vm670, %v3470
        %3503 = vst.msk [vmem:[#allocation2 + $0x88] sm:$0xff] %vm670, %v3471
        %3504 = vst.msk [vmem:[#allocation2 + $0x90] sm:$0xff] %vm670, %v3472
        %3505 = vst.msk [vmem:[#allocation2 + $0x98] sm:$0xff] %vm670, %v3473
        %3506 = vst.msk [vmem:[#allocation2 + $0xa0] sm:$0xff] %vm670, %v3474
        %3507 = vst.msk [vmem:[#allocation2 + $0xa8] sm:$0xff] %vm670, %v3475
        %3508 = vst.msk [vmem:[#allocation2 + $0xb0] sm:$0xff] %vm670, %v3476
        %3509 = vst.msk [vmem:[#allocation2 + $0xb8] sm:$0xff] %vm670, %v3477
        %3510 = vst.msk [vmem:[#allocation2 + $0xc0] sm:$0xff] %vm670, %v3478
        %3511 = vst.msk [vmem:[#allocation2 + $0xc8] sm:$0xff] %vm670, %v3479
        %3512 = vst.msk [vmem:[#allocation2 + $0xd0] sm:$0xff] %vm670, %v3480
        %3513 = vst.msk [vmem:[#allocation2 + $0xd8] sm:$0xff] %vm670, %v3481
        %3514 = vst.msk [vmem:[#allocation2 + $0xe0] sm:$0xff] %vm670, %v3482
        %3515 = vst.msk [vmem:[#allocation2 + $0xe8] sm:$0xff] %vm670, %v3483
        %3516 = vst.msk [vmem:[#allocation2 + $0xf0] sm:$0xff] %vm670, %v3484
        %3517 = vst.msk [vmem:[#allocation2 + $0xf8] sm:$0xff] %vm670, %v3485
        %p3518 = scmp.eq.s32.totalorder %s23, 3
        // Predicated region
        $region128: #{tpu_custom_call.1} parent=114 // pred_check
          %p3519 = pneg %p3518
        $region129: #{tpu_custom_call.1} parent=114 // pred_check_branch
          %3521 = sbr.rel (%p3519) target = $region131
        $region130: #{tpu_custom_call.1} parent=114 // pred_region
          %v3522 = vld [vmem:[#allocation2] sm:$0xff]
          %v3523 = vld [vmem:[#allocation2 + $0x8] sm:$0xff]
          %v3524 = vld [vmem:[#allocation2 + $0x10] sm:$0xff]
          %v3525 = vld [vmem:[#allocation2 + $0x18] sm:$0xff]
          %v3526 = vld [vmem:[#allocation2 + $0x20] sm:$0xff]
          %v3527 = vld [vmem:[#allocation2 + $0x28] sm:$0xff]
          %v3528 = vld [vmem:[#allocation2 + $0x30] sm:$0xff]
          %v3529 = vld [vmem:[#allocation2 + $0x38] sm:$0xff]
          %v3530 = vld [vmem:[#allocation2 + $0x40] sm:$0xff]
          %v3531 = vld [vmem:[#allocation2 + $0x48] sm:$0xff]
          %v3532 = vld [vmem:[#allocation2 + $0x50] sm:$0xff]
          %v3533 = vld [vmem:[#allocation2 + $0x58] sm:$0xff]
          %v3534 = vld [vmem:[#allocation2 + $0x60] sm:$0xff]
          %v3535 = vld [vmem:[#allocation2 + $0x68] sm:$0xff]
          %v3536 = vld [vmem:[#allocation2 + $0x70] sm:$0xff]
          %v3537 = vld [vmem:[#allocation2 + $0x78] sm:$0xff]
          %v3538 = vld [vmem:[#allocation2 + $0x80] sm:$0xff]
          %v3539 = vld [vmem:[#allocation2 + $0x88] sm:$0xff]
          %v3540 = vld [vmem:[#allocation2 + $0x90] sm:$0xff]
          %v3541 = vld [vmem:[#allocation2 + $0x98] sm:$0xff]
          %v3542 = vld [vmem:[#allocation2 + $0xa0] sm:$0xff]
          %v3543 = vld [vmem:[#allocation2 + $0xa8] sm:$0xff]
          %v3544 = vld [vmem:[#allocation2 + $0xb0] sm:$0xff]
          %v3545 = vld [vmem:[#allocation2 + $0xb8] sm:$0xff]
          %v3546 = vld [vmem:[#allocation2 + $0xc0] sm:$0xff]
          %v3547 = vld [vmem:[#allocation2 + $0xc8] sm:$0xff]
          %v3548 = vld [vmem:[#allocation2 + $0xd0] sm:$0xff]
          %v3549 = vld [vmem:[#allocation2 + $0xd8] sm:$0xff]
          %v3550 = vld [vmem:[#allocation2 + $0xe0] sm:$0xff]
          %v3551 = vld [vmem:[#allocation2 + $0xe8] sm:$0xff]
          %v3552 = vld [vmem:[#allocation2 + $0xf0] sm:$0xff]
          %v3553 = vld [vmem:[#allocation2 + $0xf8] sm:$0xff]
          %v3554 = vld [vmem:[%s6] sm:$0x1]
          %v3556 = vlaneseq
          %v3557 = vshrl.u32 %v3556, 7
          %v3558 = vsub.s32 0, %v3557
          %v3559 = vrot.slane %v3554, %v3558
          %v3561 = vadd.f32 %v3522, %v3559
          %v3562 = vadd.f32 %v3523, %v3559
          %v3563 = vadd.f32 %v3524, %v3559
          %v3564 = vadd.f32 %v3525, %v3559
          %v3565 = vadd.f32 %v3526, %v3559
          %v3566 = vadd.f32 %v3527, %v3559
          %v3567 = vadd.f32 %v3528, %v3559
          %v3568 = vadd.f32 %v3529, %v3559
          %v3569 = vadd.f32 %v3530, %v3559
          %v3570 = vadd.f32 %v3531, %v3559
          %v3571 = vadd.f32 %v3532, %v3559
          %v3572 = vadd.f32 %v3533, %v3559
          %v3573 = vadd.f32 %v3534, %v3559
          %v3574 = vadd.f32 %v3535, %v3559
          %v3575 = vadd.f32 %v3536, %v3559
          %v3576 = vadd.f32 %v3537, %v3559
          %v3577 = vadd.f32 %v3538, %v3559
          %v3578 = vadd.f32 %v3539, %v3559
          %v3579 = vadd.f32 %v3540, %v3559
          %v3580 = vadd.f32 %v3541, %v3559
          %v3581 = vadd.f32 %v3542, %v3559
          %v3582 = vadd.f32 %v3543, %v3559
          %v3583 = vadd.f32 %v3544, %v3559
          %v3584 = vadd.f32 %v3545, %v3559
          %v3585 = vadd.f32 %v3546, %v3559
          %v3586 = vadd.f32 %v3547, %v3559
          %v3587 = vadd.f32 %v3548, %v3559
          %v3588 = vadd.f32 %v3549, %v3559
          %v3589 = vadd.f32 %v3550, %v3559
          %v3590 = vadd.f32 %v3551, %v3559
          %v3591 = vadd.f32 %v3552, %v3559
          %v3592 = vadd.f32 %v3553, %v3559
          %3593 = vst.msk [vmem:[%s495] sm:$0xff] %vm670, %v3561
          %3594 = vst.msk [vmem:[%s495 + $0x8] sm:$0xff] %vm670, %v3562
          %3595 = vst.msk [vmem:[%s495 + $0x10] sm:$0xff] %vm670, %v3563
          %3596 = vst.msk [vmem:[%s495 + $0x18] sm:$0xff] %vm670, %v3564
          %3597 = vst.msk [vmem:[%s495 + $0x20] sm:$0xff] %vm670, %v3565
          %3598 = vst.msk [vmem:[%s495 + $0x28] sm:$0xff] %vm670, %v3566
          %3599 = vst.msk [vmem:[%s495 + $0x30] sm:$0xff] %vm670, %v3567
          %3600 = vst.msk [vmem:[%s495 + $0x38] sm:$0xff] %vm670, %v3568
          %3601 = vst.msk [vmem:[%s495 + $0x40] sm:$0xff] %vm670, %v3569
          %3602 = vst.msk [vmem:[%s495 + $0x48] sm:$0xff] %vm670, %v3570
          %3603 = vst.msk [vmem:[%s495 + $0x50] sm:$0xff] %vm670, %v3571
          %3604 = vst.msk [vmem:[%s495 + $0x58] sm:$0xff] %vm670, %v3572
          %3605 = vst.msk [vmem:[%s495 + $0x60] sm:$0xff] %vm670, %v3573
          %3606 = vst.msk [vmem:[%s495 + $0x68] sm:$0xff] %vm670, %v3574
          %3607 = vst.msk [vmem:[%s495 + $0x70] sm:$0xff] %vm670, %v3575
          %3608 = vst.msk [vmem:[%s495 + $0x78] sm:$0xff] %vm670, %v3576
          %3609 = vst.msk [vmem:[%s495 + $0x80] sm:$0xff] %vm670, %v3577
          %3610 = vst.msk [vmem:[%s495 + $0x88] sm:$0xff] %vm670, %v3578
          %3611 = vst.msk [vmem:[%s495 + $0x90] sm:$0xff] %vm670, %v3579
          %3612 = vst.msk [vmem:[%s495 + $0x98] sm:$0xff] %vm670, %v3580
          %3613 = vst.msk [vmem:[%s495 + $0xa0] sm:$0xff] %vm670, %v3581
          %3614 = vst.msk [vmem:[%s495 + $0xa8] sm:$0xff] %vm670, %v3582
          %3615 = vst.msk [vmem:[%s495 + $0xb0] sm:$0xff] %vm670, %v3583
          %3616 = vst.msk [vmem:[%s495 + $0xb8] sm:$0xff] %vm670, %v3584
          %3617 = vst.msk [vmem:[%s495 + $0xc0] sm:$0xff] %vm670, %v3585
          %3618 = vst.msk [vmem:[%s495 + $0xc8] sm:$0xff] %vm670, %v3586
          %3619 = vst.msk [vmem:[%s495 + $0xd0] sm:$0xff] %vm670, %v3587
          %3620 = vst.msk [vmem:[%s495 + $0xd8] sm:$0xff] %vm670, %v3588
          %3621 = vst.msk [vmem:[%s495 + $0xe0] sm:$0xff] %vm670, %v3589
          %3622 = vst.msk [vmem:[%s495 + $0xe8] sm:$0xff] %vm670, %v3590
          %3623 = vst.msk [vmem:[%s495 + $0xf0] sm:$0xff] %vm670, %v3591
          %3624 = vst.msk [vmem:[%s495 + $0xf8] sm:$0xff] %vm670, %v3592
        $region131: #{tpu_custom_call.1} parent=114 // pred_fallthru
          _
        %s3625 = smul.u32 32, %s22
        %p3626 = scmp.lt.s32.totalorder %s3625, 63
        %s3627 = scalar_select %p3626, %s3625, 63
        %s3628 = smul.addr %s3627, 8
        %s3629 = scalar_lea.vmem %s7, %s3628
        // Predicated region
        $region132: #{tpu_custom_call.1} parent=114 // pred_check
          %p3630 = pneg %p220
        $region133: #{tpu_custom_call.1} parent=114 // pred_check_branch
          %3632 = sbr.rel (%p3630) target = $region135
        $region134: #{tpu_custom_call.1} parent=114 // pred_region
          %s3633 = smul.u32 32, %s22
        $region135: #{tpu_custom_call.1} parent=114 // pred_fallthru
          _
      $region115: #{tpu_custom_call.1} parent=5 // pred_fallthru
        _
      %p3634 = scmp.le.s32.totalorder 2, %s13
      // Predicated region
      $region136: #{tpu_custom_call.1} parent=5 // pred_check
        %p3635 = pneg %p3634
      $region137: #{tpu_custom_call.1} parent=5 // pred_check_branch
        %3637 = sbr.rel (%p3635) target = $region139
      $region138: #{tpu_custom_call.1} parent=5 // pred_region
        %s3638 = ssub.s32 %s13, 2
        // Predicated region
        $region140: #{tpu_custom_call.1} parent=138 // pred_check
          %p3639 = pneg %p226
        $region141: #{tpu_custom_call.1} parent=138 // pred_check_branch
          %3641 = sbr.rel (%p3639) target = $region143
        $region142: #{tpu_custom_call.1} parent=138 // pred_region
          %s3642 = smul.u32 32, %s24
          %p3643 = scmp.lt.s32.totalorder %s3642, 63
          %s3644 = scalar_select %p3643, %s3642, 63
          %s3645 = smul.addr %s3644, 8
          %s3646 = scalar_lea.vmem %s7, %s3645
        $region143: #{tpu_custom_call.1} parent=138 // pred_fallthru
          _
      $region139: #{tpu_custom_call.1} parent=5 // pred_fallthru
        _
    $region6: #{tpu_custom_call.1} parent=1 // loop_footer
      %s17 = sadd.s32 1, %s13
    $region7: #{tpu_custom_call.1} parent=1 // loop_footer_branch
      %12 = sbr.rel target = $region3
    $region8: #{tpu_custom_call.1} parent=1 // loop_exit
      _

</llo_original>
